<compile_context>
chip_gen: v6e
topology: v6e:2x2x1
jax: 0.10.0
libtpu: 0.0.40
codegen_flags: <defaults>
</compile_context>

<pallas_src>
import functools

import jax
import jax.numpy as jnp
from jax.experimental import pallas as pl
from jax.experimental.pallas import tpu as pltpu

D_MODEL = 32
N_HEAD = 4
DIM_FF = 64
EPS_LN = 1e-5       # nn.LayerNorm default eps
EPS_ATTN = 1e-6     # linear-attention denominator eps


def decoder_layer_kernel(x_ref, enc_ref, mask_ref,
                         sqkv_w_ref, sqkv_b_ref, so_w_ref, so_b_ref,
                         cq_w_ref, cq_b_ref, ckv_w_ref, ckv_b_ref,
                         co_w_ref, co_b_ref,
                         w1_ref, b1_ref, w2_ref, b2_ref,
                         o_ref, *, n_head, seq_q, seq_k):
    f32, bf16 = jnp.float32, jnp.bfloat16
    N, D = x_ref.shape                 # N = b_tile * T, flat residual stream
    T, S = seq_q, seq_k
    bt = N // T
    hd = D // n_head

    x = x_ref[...].astype(f32)         # (bt*T, D) residual stream stays in f32
    enc_bf = enc_ref[...].astype(bf16)  # (bt*S, D), only consumed by the MXU
    mask = mask_ref[...]                # (bt, 1, S) f32, 1.0 = valid key

    def norm(v):
        # LayerNorm statistics only: gamma/beta are folded into the downstream
        # projection weights at param-prep time.
        mu = jnp.mean(v, axis=-1, keepdims=True)
        var = jnp.mean((v - mu) ** 2, axis=-1, keepdims=True)
        return (v - mu) * jax.lax.rsqrt(var + EPS_LN)

    def phi(z):
        # elu(z) + 1 feature map, kept in f32 (v5e has no bf16 VPU/EUP).
        return jnp.where(z > 0, z + 1.0, jnp.exp(z))

    def linear_attention(pq, pk, v_bf, wo_block, score_mask):
        """Masked linear attention with the per-head output projection folded
        into the score x V matmul:
            (num_h / den_h) @ Wo_h == (s_h @ (v_h @ Wo_h)) * recip(den_h)
        pq, pk:    (bt, Tq, D) / (bt, Tk, D) f32 feature-mapped q / k
        v_bf:      (bt*Tk, D) bf16 values
        wo_block:  (D, n_head*D) bf16 block-diagonal-per-head output weights
        score_mask broadcastable to (bt, Tq, Tk)
        returns    (bt*Tq, D) f32
        """
        Tq, Tk = pq.shape[1], pk.shape[1]
        # One lane-dense (.., D) x (D, n_head*D) matmul yields every head's
        # Wo-projected values at once (no per-head 8-lane V slice; 128 output
        # lanes on the MXU).
        vproj = jnp.dot(v_bf, wo_block, preferred_element_type=f32)
        vproj = vproj.reshape(bt, Tk, n_head * D).astype(bf16)
        pq_bf, pk_bf = pq.astype(bf16), pk.astype(bf16)

        acc = jnp.zeros((bt, Tq, D), f32)
        for h in range(n_head):
            hs = slice(h * hd, (h + 1) * hd)
            s = jnp.einsum('bqc,bkc->bqk', pq_bf[..., hs], pk_bf[..., hs],
                           preferred_element_type=f32) * score_mask
            s_bf = s.astype(bf16)
            # den derives from the same bf16-rounded scores used in the matmul
            # so numerator and denominator are precision-consistent.
            den = jnp.sum(s_bf.astype(f32), axis=-1, keepdims=True) + EPS_ATTN
            ctr = jnp.einsum('bqk,bkd->bqd', s_bf,
                             vproj[..., h * D:(h + 1) * D],
                             preferred_element_type=f32)        # (bt, Tq, D)
            acc = acc + ctr * pl.reciprocal(den, approx=True)   # EUP slot
        return acc.reshape(bt * Tq, D)

    # ---------------- causal linear self-attention ----------------
    residual = x
    h1 = norm(x).astype(bf16)
    qkv = jnp.dot(h1, sqkv_w_ref[...], preferred_element_type=f32) + sqkv_b_ref[...]
    q = phi(qkv[:, :D]).reshape(bt, T, D)
    k = phi(qkv[:, D:2 * D]).reshape(bt, T, D)
    v_bf = qkv[:, 2 * D:].astype(bf16)

    row = jax.lax.broadcasted_iota(jnp.int32, (T, T), 0)
    col = jax.lax.broadcasted_iota(jnp.int32, (T, T), 1)
    causal = (col <= row).astype(f32)                 # (T, T), broadcasts over bt

    x1 = residual + linear_attention(q, k, v_bf, so_w_ref[...], causal) + so_b_ref[...]

    # ---------------- linear cross-attention ----------------
    residual = x1
    h2 = norm(x1).astype(bf16)
    q = phi(jnp.dot(h2, cq_w_ref[...], preferred_element_type=f32) + cq_b_ref[...])
    kv = jnp.dot(enc_bf, ckv_w_ref[...], preferred_element_type=f32) + ckv_b_ref[...]
    k = phi(kv[:, :D]).reshape(bt, S, D)
    v_bf = kv[:, D:].astype(bf16)

    x2 = residual + linear_attention(q.reshape(bt, T, D), k, v_bf,
                                     co_w_ref[...], mask) + co_b_ref[...]

    # ---------------- feed-forward ----------------
    residual = x2
    h3 = norm(x2).astype(bf16)
    ff = jnp.maximum(jnp.dot(h3, w1_ref[...], preferred_element_type=f32) + b1_ref[...],
                     0.0)
    out = residual + jnp.dot(ff.astype(bf16), w2_ref[...],
                             preferred_element_type=f32) + b2_ref[...]

    o_ref[...] = out.astype(o_ref.dtype)


def prepare_params(params, *, n_head=N_HEAD):
    """One-time parameter preparation (outside the per-call path):
      * LayerNorm affine folded into downstream weights (self q/k/v, cross q,
        FFN w1):  W' = diag(gamma) @ W,  b' = beta @ W + b.
      * self q/k/v and cross k/v fused into single (D,3D) / (D,2D) weights.
      * per-head output projection expanded into a block-diagonal (D, H*D)
        weight so all heads' Wo-projected values come from one matmul.
      * all MXU operands cast to bf16 exactly once; biases stay f32.
    """
    ln, sw, sb, cw, cb, w1, b1, w2, b2 = params
    f32, bf16 = jnp.float32, jnp.bfloat16
    d_model = sw.shape[-1]
    hd = d_model // n_head

    def fold(gamma, beta, w, b):                      # LN(x)@w + b == norm(x)@w' + b'
        return gamma[:, None] * w, beta @ w + b

    def block_diag_wo(wo):                            # (D, D) -> (D, H*D)
        out = jnp.zeros((n_head, hd, n_head, d_model), f32)
        for h in range(n_head):
            out = out.at[h, :, h, :].set(wo[h * hd:(h + 1) * hd, :])
        return out.reshape(d_model, n_head * d_model)

    g1, be1 = ln[0, 0], ln[0, 1]
    sq_w, sq_b = fold(g1, be1, sw[0], sb[0])
    sk_w, sk_b = fold(g1, be1, sw[1], sb[1])
    sv_w, sv_b = fold(g1, be1, sw[2], sb[2])
    sqkv_w = jnp.concatenate([sq_w, sk_w, sv_w], axis=1)          # (D, 3D)
    sqkv_b = jnp.concatenate([sq_b, sk_b, sv_b])[None, :]         # (1, 3D)
    so_w = block_diag_wo(sw[3])
    so_b = sb[3][None, :]

    g2, be2 = ln[1, 0], ln[1, 1]
    cq_w, cq_b = fold(g2, be2, cw[0], cb[0])
    cq_b = cq_b[None, :]
    ckv_w = jnp.concatenate([cw[1], cw[2]], axis=1)               # (D, 2D)
    ckv_b = jnp.concatenate([cb[1], cb[2]])[None, :]              # (1, 2D)
    co_w = block_diag_wo(cw[3])
    co_b = cb[3][None, :]

    g3, be3 = ln[2, 0], ln[2, 1]
    w1f, b1f = fold(g3, be3, w1, b1)                              # b1 is (1, F)

    return (sqkv_w.astype(bf16), sqkv_b.astype(f32),
            so_w.astype(bf16), so_b.astype(f32),
            cq_w.astype(bf16), cq_b.astype(f32),
            ckv_w.astype(bf16), ckv_b.astype(f32),
            co_w.astype(bf16), co_b.astype(f32),
            w1f.astype(bf16), b1f.astype(f32),
            w2.astype(bf16), b2.astype(f32))


def _pick_b_tile(batch):
    """Single-TC chips (v5e/v6e): one big step (per-step overhead dominates at
    these shapes).  v7x has 2 TensorCores, so give the 'parallel' batch axis at
    least 2 grid steps there."""
    try:
        kind = jax.devices()[0].device_kind.lower()
    except Exception:
        kind = ""
    if "v7" in kind and batch >= 2 and batch % 2 == 0:
        return batch // 2
    return batch


def decoder_layer(x, encoder_output, encoder_mask, prepared_params, *,
                  n_head=N_HEAD, b_tile=None):
    B, T, D = x.shape
    S = encoder_output.shape[1]
    if b_tile is None:
        b_tile = _pick_b_tile(B)
    assert B % b_tile == 0

    # Flatten (B, T, D) -> (B*T, D) in the wrapper (free: contiguous) so the
    # kernel works on a flat residual stream with no in-kernel leading-dim
    # reshuffles.  Mask is passed lane-dense as (B, 1, S).
    x2d = x.reshape(B * T, D)
    enc2d = encoder_output.reshape(B * S, D)
    mask = encoder_mask.astype(jnp.float32).reshape(B, 1, S)

    (sqkv_w, sqkv_b, so_w, so_b, cq_w, cq_b, ckv_w, ckv_b,
     co_w, co_b, w1, b1, w2, b2) = prepared_params

    def full_spec(a):
        return pl.BlockSpec(a.shape, lambda b, _nd=a.ndim: (0,) * _nd)

    kern = functools.partial(decoder_layer_kernel,
                             n_head=n_head, seq_q=T, seq_k=S)
    out2d = pl.pallas_call(
        kern,
        out_shape=jax.ShapeDtypeStruct((B * T, D), x.dtype),
        grid=(B // b_tile,),
        in_specs=[
            pl.BlockSpec((b_tile * T, D), lambda b: (b, 0)),      # x (flat)
            pl.BlockSpec((b_tile * S, D), lambda b: (b, 0)),      # encoder out
            pl.BlockSpec((b_tile, 1, S), lambda b: (b, 0, 0)),    # key mask
            full_spec(sqkv_w), full_spec(sqkv_b), full_spec(so_w), full_spec(so_b),
            full_spec(cq_w), full_spec(cq_b), full_spec(ckv_w), full_spec(ckv_b),
            full_spec(co_w), full_spec(co_b),
            full_spec(w1), full_spec(b1), full_spec(w2), full_spec(b2),
        ],
        out_specs=pl.BlockSpec((b_tile * T, D), lambda b: (b, 0)),
        compiler_params=pltpu.CompilerParams(
            dimension_semantics=("parallel",)),    # v7x: 2 TCs share the batch
    )(x2d, enc2d, mask, sqkv_w, sqkv_b, so_w, so_b,
      cq_w, cq_b, ckv_w, ckv_b, co_w, co_b, w1, b1, w2, b2)
    return out2d.reshape(B, T, D)


def decoder_layer_ref(x, enc, enc_mask, params, n_head=N_HEAD):
    """Pure-JAX f32 reference (unfused, unfolded params) for a sanity check."""
    ln, sw, sb, cw, cb, w1, b1, w2, b2 = params
    B, T, D = x.shape
    S = enc.shape[1]
    hd = D // n_head

    def layer_norm(v, g, b):
        mu = v.mean(-1, keepdims=True)
        var = ((v - mu) ** 2).mean(-1, keepdims=True)
        return (v - mu) / jnp.sqrt(var + EPS_LN) * g + b

    def fm(z):
        return jnp.where(z > 0, z + 1.0, jnp.exp(z))

    def attn(q, k, v, score_mask):
        outs = []
        for hi in range(n_head):
            sl = slice(hi * hd, (hi + 1) * hd)
            pq, pk = fm(q[..., sl]), fm(k[..., sl])
            s = jnp.einsum('bqc,bkc->bqk', pq, pk) * score_mask
            num = jnp.einsum('bqk,bkc->bqc', s, v[..., sl])
            den = s.sum(-1, keepdims=True) + EPS_ATTN
            outs.append(num / den)
        return jnp.concatenate(outs, -1)

    mask = enc_mask.astype(jnp.float32)[:, None, :]
    causal = jnp.tril(jnp.ones((T, T), jnp.float32))

    res = x
    h = layer_norm(x, ln[0, 0], ln[0, 1])
    a = attn(h @ sw[0] + sb[0], h @ sw[1] + sb[1], h @ sw[2] + sb[2], causal)
    x1 = res + a @ sw[3] + sb[3]

    res = x1
    h = layer_norm(x1, ln[1, 0], ln[1, 1])
    a = attn(h @ cw[0] + cb[0], enc @ cw[1] + cb[1], enc @ cw[2] + cb[2], mask)
    x2 = res + a @ cw[3] + cb[3]

    res = x2
    h = layer_norm(x2, ln[2, 0], ln[2, 1])
    h = jnp.maximum(h @ w1 + b1, 0.0)
    return res + h @ w2 + b2


def init_params(key, d_model=D_MODEL, dim_ff=DIM_FF):
    ks = jax.random.split(key, 10)

    def lin(k, fan_in, shape):
        bound = 1.0 / jnp.sqrt(jnp.float32(fan_in))
        return jax.random.uniform(k, shape, jnp.float32, -bound, bound)

    # Non-trivial LN affine so the gamma/beta -> weight folding is exercised.
    gamma = 1.0 + 0.1 * jax.random.normal(ks[8], (3, d_model), jnp.float32)
    beta = 0.1 * jax.random.normal(ks[9], (3, d_model), jnp.float32)
    ln = jnp.stack([gamma, beta], axis=1)                     # (3, 2, D)
    sw = lin(ks[0], d_model, (4, d_model, d_model))           # self q,k,v,o (in,out)
    sb = lin(ks[1], d_model, (4, d_model))
    cw = lin(ks[2], d_model, (4, d_model, d_model))           # cross q,k,v,o
    cb = lin(ks[3], d_model, (4, d_model))
    w1 = lin(ks[4], d_model, (d_model, dim_ff))
    b1 = lin(ks[5], d_model, (1, dim_ff))
    w2 = lin(ks[6], dim_ff, (dim_ff, d_model))
    b2 = lin(ks[7], dim_ff, (1, d_model))
    return (ln, sw, sb, cw, cb, w1, b1, w2, b2)


if __name__ == "__main__":
    B, T, S = 2, 8, 8
    key = jax.random.PRNGKey(0)
    kx, ke, kp = jax.random.split(key, 3)

    x = jax.random.normal(kx, (B, T, D_MODEL), jnp.float32)
    enc = jax.random.normal(ke, (B, S, D_MODEL), jnp.float32)
    enc_mask = jnp.ones((B, S), jnp.float32).at[1, S - 2:].set(0.0)  # pad 2 keys of batch 1
    params = init_params(kp)
    prepared = prepare_params(params)        # one-time: fold LN, fuse QKV, bf16 cast

    out = decoder_layer(x, enc, enc_mask, prepared)
    out = jax.block_until_ready(out)
    assert out.shape == (B, T, D_MODEL)
    assert bool(jnp.all(jnp.isfinite(out)))

    ref = decoder_layer_ref(x, enc, enc_mask, params)
    max_err = float(jnp.max(jnp.abs(out - ref)))
    assert max_err < 0.2, f"mismatch vs f32 reference: {max_err}"  # bf16 MXU tolerance

    print("KERNEL_OK")
</pallas_src>

<mosaic_0001>
module attributes {stable_mosaic.version = 11 : i64} {
  func.func @decoder_layer_kernel(%arg0: i32, %arg1: memref<16x32xf32, #tpu.memory_space<vmem>>, %arg2: memref<16x32xf32, #tpu.memory_space<vmem>>, %arg3: memref<2x1x8xf32, #tpu.memory_space<vmem>>, %arg4: memref<32x96xbf16, #tpu.memory_space<vmem>>, %arg5: memref<1x96xf32, #tpu.memory_space<vmem>>, %arg6: memref<32x128xbf16, #tpu.memory_space<vmem>>, %arg7: memref<1x32xf32, #tpu.memory_space<vmem>>, %arg8: memref<32x32xbf16, #tpu.memory_space<vmem>>, %arg9: memref<1x32xf32, #tpu.memory_space<vmem>>, %arg10: memref<32x64xbf16, #tpu.memory_space<vmem>>, %arg11: memref<1x64xf32, #tpu.memory_space<vmem>>, %arg12: memref<32x128xbf16, #tpu.memory_space<vmem>>, %arg13: memref<1x32xf32, #tpu.memory_space<vmem>>, %arg14: memref<32x64xbf16, #tpu.memory_space<vmem>>, %arg15: memref<1x64xf32, #tpu.memory_space<vmem>>, %arg16: memref<64x32xbf16, #tpu.memory_space<vmem>>, %arg17: memref<1x32xf32, #tpu.memory_space<vmem>>, %arg18: memref<16x32xf32, #tpu.memory_space<vmem>>) attributes {dimension_semantics = [#tpu.dimension_semantics<parallel>], iteration_bounds = array<i64: 1>, scalar_prefetch = 0 : i64, scratch_operands = 0 : i64, tpu.core_type = #tpu.core_type<tc>, window_params = [{transform_indices = @transform_0, window_bounds = array<i64: 16, 32>}, {transform_indices = @transform_1, window_bounds = array<i64: 16, 32>}, {transform_indices = @transform_2, window_bounds = array<i64: 2, 1, 8>}, {pipeline_mode = #tpu.pipeline_mode<synchronous>, transform_indices = @transform_3, window_bounds = array<i64: 32, 96>}, {pipeline_mode = #tpu.pipeline_mode<synchronous>, transform_indices = @transform_4, window_bounds = array<i64: 1, 96>}, {pipeline_mode = #tpu.pipeline_mode<synchronous>, transform_indices = @transform_5, window_bounds = array<i64: 32, 128>}, {pipeline_mode = #tpu.pipeline_mode<synchronous>, transform_indices = @transform_6, window_bounds = array<i64: 1, 32>}, {pipeline_mode = #tpu.pipeline_mode<synchronous>, transform_indices = @transform_7, window_bounds = array<i64: 32, 32>}, {pipeline_mode = #tpu.pipeline_mode<synchronous>, transform_indices = @transform_8, window_bounds = array<i64: 1, 32>}, {pipeline_mode = #tpu.pipeline_mode<synchronous>, transform_indices = @transform_9, window_bounds = array<i64: 32, 64>}, {pipeline_mode = #tpu.pipeline_mode<synchronous>, transform_indices = @transform_10, window_bounds = array<i64: 1, 64>}, {pipeline_mode = #tpu.pipeline_mode<synchronous>, transform_indices = @transform_11, window_bounds = array<i64: 32, 128>}, {pipeline_mode = #tpu.pipeline_mode<synchronous>, transform_indices = @transform_12, window_bounds = array<i64: 1, 32>}, {pipeline_mode = #tpu.pipeline_mode<synchronous>, transform_indices = @transform_13, window_bounds = array<i64: 32, 64>}, {pipeline_mode = #tpu.pipeline_mode<synchronous>, transform_indices = @transform_14, window_bounds = array<i64: 1, 64>}, {pipeline_mode = #tpu.pipeline_mode<synchronous>, transform_indices = @transform_15, window_bounds = array<i64: 64, 32>}, {pipeline_mode = #tpu.pipeline_mode<synchronous>, transform_indices = @transform_16, window_bounds = array<i64: 1, 32>}, {transform_indices = @transform_17, window_bounds = array<i64: 16, 32>}]} {
    %c0 = arith.constant 0 : index
    %c0_0 = arith.constant 0 : index
    %0 = vector.load %arg1[%c0, %c0_0] : memref<16x32xf32, #tpu.memory_space<vmem>>, vector<16x32xf32>
    %c0_1 = arith.constant 0 : index
    %c0_2 = arith.constant 0 : index
    %1 = vector.load %arg2[%c0_1, %c0_2] : memref<16x32xf32, #tpu.memory_space<vmem>>, vector<16x32xf32>
    %2 = arith.truncf %1 : vector<16x32xf32> to vector<16x32xbf16>
    %c0_3 = arith.constant 0 : index
    %c0_4 = arith.constant 0 : index
    %c0_5 = arith.constant 0 : index
    %3 = vector.load %arg3[%c0_3, %c0_4, %c0_5] : memref<2x1x8xf32, #tpu.memory_space<vmem>>, vector<2x1x8xf32>
    %cst = arith.constant dense<0.000000e+00> : vector<16xf32>
    %4 = vector.multi_reduction <add>, %0, %cst [1] : vector<16x32xf32> to vector<16xf32>
    %5 = vector.shape_cast %4 : vector<16xf32> to vector<16x1xf32>
    %cst_6 = arith.constant 3.200000e+01 : f32
    %6 = vector.broadcast %cst_6 : f32 to vector<16x1xf32>
    %7 = arith.divf %5, %6 : vector<16x1xf32>
    %8 = vector.broadcast %7 : vector<16x1xf32> to vector<16x32xf32>
    %9 = arith.subf %0, %8 : vector<16x32xf32>
    %10 = arith.mulf %9, %9 : vector<16x32xf32>
    %cst_7 = arith.constant dense<0.000000e+00> : vector<16xf32>
    %11 = vector.multi_reduction <add>, %10, %cst_7 [1] : vector<16x32xf32> to vector<16xf32>
    %12 = vector.shape_cast %11 : vector<16xf32> to vector<16x1xf32>
    %cst_8 = arith.constant 3.200000e+01 : f32
    %13 = vector.broadcast %cst_8 : f32 to vector<16x1xf32>
    %14 = arith.divf %12, %13 : vector<16x1xf32>
    %15 = vector.broadcast %7 : vector<16x1xf32> to vector<16x32xf32>
    %16 = arith.subf %0, %15 : vector<16x32xf32>
    %cst_9 = arith.constant 9.99999974E-6 : f32
    %17 = vector.broadcast %cst_9 : f32 to vector<16x1xf32>
    %18 = arith.addf %14, %17 : vector<16x1xf32>
    %19 = math.rsqrt %18 : vector<16x1xf32>
    %20 = vector.broadcast %19 : vector<16x1xf32> to vector<16x32xf32>
    %21 = arith.mulf %16, %20 : vector<16x32xf32>
    %22 = arith.truncf %21 : vector<16x32xf32> to vector<16x32xbf16>
    %c0_10 = arith.constant 0 : index
    %c0_11 = arith.constant 0 : index
    %23 = vector.load %arg4[%c0_10, %c0_11] : memref<32x96xbf16, #tpu.memory_space<vmem>>, vector<32x96xbf16>
    %cst_12 = arith.constant dense<0.000000e+00> : vector<16x96xf32>
    %24 = tpu.matmul %22, %23, %cst_12 {dimension_numbers = #tpu.dot_dimension_numbers<[1], [0], [0], [1], [0, 0, 1, 1], [], []>} : vector<16x32xbf16>, vector<32x96xbf16>, vector<16x96xf32> -> vector<16x96xf32>
    %c0_13 = arith.constant 0 : index
    %c0_14 = arith.constant 0 : index
    %25 = vector.load %arg5[%c0_13, %c0_14] : memref<1x96xf32, #tpu.memory_space<vmem>>, vector<1x96xf32>
    %26 = vector.broadcast %25 : vector<1x96xf32> to vector<16x96xf32>
    %27 = arith.addf %24, %26 : vector<16x96xf32>
    %28 = vector.extract_strided_slice %27 {offsets = [0, 0], sizes = [16, 32], strides = [1, 1]} : vector<16x96xf32> to vector<16x32xf32>
    %cst_15 = arith.constant 0.000000e+00 : f32
    %29 = vector.broadcast %cst_15 : f32 to vector<16x32xf32>
    %30 = arith.cmpf ogt, %28, %29 : vector<16x32xf32>
    %cst_16 = arith.constant 1.000000e+00 : f32
    %31 = vector.broadcast %cst_16 : f32 to vector<16x32xf32>
    %32 = arith.addf %28, %31 : vector<16x32xf32>
    %33 = math.exp %28 : vector<16x32xf32>
    %34 = arith.select %30, %32, %33 : vector<16x32xi1>, vector<16x32xf32>
    %35 = vector.shape_cast %34 : vector<16x32xf32> to vector<2x8x32xf32>
    %36 = vector.extract_strided_slice %27 {offsets = [0, 32], sizes = [16, 32], strides = [1, 1]} : vector<16x96xf32> to vector<16x32xf32>
    %cst_17 = arith.constant 0.000000e+00 : f32
    %37 = vector.broadcast %cst_17 : f32 to vector<16x32xf32>
    %38 = arith.cmpf ogt, %36, %37 : vector<16x32xf32>
    %cst_18 = arith.constant 1.000000e+00 : f32
    %39 = vector.broadcast %cst_18 : f32 to vector<16x32xf32>
    %40 = arith.addf %36, %39 : vector<16x32xf32>
    %41 = math.exp %36 : vector<16x32xf32>
    %42 = arith.select %38, %40, %41 : vector<16x32xi1>, vector<16x32xf32>
    %43 = vector.shape_cast %42 : vector<16x32xf32> to vector<2x8x32xf32>
    %44 = vector.extract_strided_slice %27 {offsets = [0, 64], sizes = [16, 32], strides = [1, 1]} : vector<16x96xf32> to vector<16x32xf32>
    %45 = arith.truncf %44 : vector<16x32xf32> to vector<16x32xbf16>
    %46 = tpu.iota {dimensions = array<i32: 0>} : vector<8x8xi32>
    %47 = tpu.iota {dimensions = array<i32: 1>} : vector<8x8xi32>
    %48 = arith.cmpi sle, %47, %46 : vector<8x8xi32>
    %49 = arith.extui %48 : vector<8x8xi1> to vector<8x8xi32>
    %50 = arith.sitofp %49 : vector<8x8xi32> to vector<8x8xf32>
    %c0_19 = arith.constant 0 : index
    %c0_20 = arith.constant 0 : index
    %51 = vector.load %arg6[%c0_19, %c0_20] : memref<32x128xbf16, #tpu.memory_space<vmem>>, vector<32x128xbf16>
    %cst_21 = arith.constant dense<0.000000e+00> : vector<16x128xf32>
    %52 = tpu.matmul %45, %51, %cst_21 {dimension_numbers = #tpu.dot_dimension_numbers<[1], [0], [0], [1], [0, 0, 1, 1], [], []>} : vector<16x32xbf16>, vector<32x128xbf16>, vector<16x128xf32> -> vector<16x128xf32>
    %53 = vector.shape_cast %52 : vector<16x128xf32> to vector<2x8x128xf32>
    %54 = arith.truncf %53 : vector<2x8x128xf32> to vector<2x8x128xbf16>
    %55 = arith.truncf %35 : vector<2x8x32xf32> to vector<2x8x32xbf16>
    %56 = arith.truncf %43 : vector<2x8x32xf32> to vector<2x8x32xbf16>
    %cst_22 = arith.constant 0.000000e+00 : f32
    %57 = vector.broadcast %cst_22 : f32 to vector<2x8x32xf32>
    %58 = vector.extract_strided_slice %55 {offsets = [0, 0, 0], sizes = [2, 8, 8], strides = [1, 1, 1]} : vector<2x8x32xbf16> to vector<2x8x8xbf16>
    %59 = vector.extract_strided_slice %56 {offsets = [0, 0, 0], sizes = [2, 8, 8], strides = [1, 1, 1]} : vector<2x8x32xbf16> to vector<2x8x8xbf16>
    "tpu.trace_start"() <{level = 10 : i32, message = "bqc,bkc->bqk"}> : () -> ()
    %cst_23 = arith.constant dense<0.000000e+00> : vector<2x8x8xf32>
    %60 = tpu.matmul %58, %59, %cst_23 {dimension_numbers = #tpu.dot_dimension_numbers<[2], [2], [1], [1], [0, 0, 0, 1, 1, 1], [0], [0]>} : vector<2x8x8xbf16>, vector<2x8x8xbf16>, vector<2x8x8xf32> -> vector<2x8x8xf32>
    "tpu.trace_stop"() : () -> ()
    %61 = vector.shape_cast %50 : vector<8x8xf32> to vector<1x8x8xf32>
    %62 = vector.broadcast %61 : vector<1x8x8xf32> to vector<2x8x8xf32>
    %63 = arith.mulf %60, %62 : vector<2x8x8xf32>
    %64 = arith.truncf %63 : vector<2x8x8xf32> to vector<2x8x8xbf16>
    %65 = arith.extf %64 : vector<2x8x8xbf16> to vector<2x8x8xf32>
    %cst_24 = arith.constant dense<0.000000e+00> : vector<2x8xf32>
    %66 = vector.multi_reduction <add>, %65, %cst_24 [2] : vector<2x8x8xf32> to vector<2x8xf32>
    %67 = vector.shape_cast %66 : vector<2x8xf32> to vector<2x8x1xf32>
    %cst_25 = arith.constant 9.99999997E-7 : f32
    %68 = vector.broadcast %cst_25 : f32 to vector<2x8x1xf32>
    %69 = arith.addf %67, %68 : vector<2x8x1xf32>
    %70 = vector.extract_strided_slice %54 {offsets = [0, 0, 0], sizes = [2, 8, 32], strides = [1, 1, 1]} : vector<2x8x128xbf16> to vector<2x8x32xbf16>
    "tpu.trace_start"() <{level = 10 : i32, message = "bqk,bkd->bqd"}> : () -> ()
    %cst_26 = arith.constant dense<0.000000e+00> : vector<2x8x32xf32>
    %71 = tpu.matmul %64, %70, %cst_26 {dimension_numbers = #tpu.dot_dimension_numbers<[2], [1], [1], [2], [0, 0, 0, 1, 1, 2], [0], [0]>} : vector<2x8x8xbf16>, vector<2x8x32xbf16>, vector<2x8x32xf32> -> vector<2x8x32xf32>
    "tpu.trace_stop"() : () -> ()
    %72 = tpu.reciprocal %69 {approx = true} : vector<2x8x1xf32> -> vector<2x8x1xf32>
    %73 = vector.broadcast %72 : vector<2x8x1xf32> to vector<2x8x32xf32>
    %74 = arith.mulf %71, %73 : vector<2x8x32xf32>
    %75 = arith.addf %57, %74 : vector<2x8x32xf32>
    %76 = vector.extract_strided_slice %55 {offsets = [0, 0, 8], sizes = [2, 8, 8], strides = [1, 1, 1]} : vector<2x8x32xbf16> to vector<2x8x8xbf16>
    %77 = vector.extract_strided_slice %56 {offsets = [0, 0, 8], sizes = [2, 8, 8], strides = [1, 1, 1]} : vector<2x8x32xbf16> to vector<2x8x8xbf16>
    "tpu.trace_start"() <{level = 10 : i32, message = "bqc,bkc->bqk"}> : () -> ()
    %cst_27 = arith.constant dense<0.000000e+00> : vector<2x8x8xf32>
    %78 = tpu.matmul %76, %77, %cst_27 {dimension_numbers = #tpu.dot_dimension_numbers<[2], [2], [1], [1], [0, 0, 0, 1, 1, 1], [0], [0]>} : vector<2x8x8xbf16>, vector<2x8x8xbf16>, vector<2x8x8xf32> -> vector<2x8x8xf32>
    "tpu.trace_stop"() : () -> ()
    %79 = vector.shape_cast %50 : vector<8x8xf32> to vector<1x8x8xf32>
    %80 = vector.broadcast %79 : vector<1x8x8xf32> to vector<2x8x8xf32>
    %81 = arith.mulf %78, %80 : vector<2x8x8xf32>
    %82 = arith.truncf %81 : vector<2x8x8xf32> to vector<2x8x8xbf16>
    %83 = arith.extf %82 : vector<2x8x8xbf16> to vector<2x8x8xf32>
    %cst_28 = arith.constant dense<0.000000e+00> : vector<2x8xf32>
    %84 = vector.multi_reduction <add>, %83, %cst_28 [2] : vector<2x8x8xf32> to vector<2x8xf32>
    %85 = vector.shape_cast %84 : vector<2x8xf32> to vector<2x8x1xf32>
    %cst_29 = arith.constant 9.99999997E-7 : f32
    %86 = vector.broadcast %cst_29 : f32 to vector<2x8x1xf32>
    %87 = arith.addf %85, %86 : vector<2x8x1xf32>
    %88 = vector.extract_strided_slice %54 {offsets = [0, 0, 32], sizes = [2, 8, 32], strides = [1, 1, 1]} : vector<2x8x128xbf16> to vector<2x8x32xbf16>
    "tpu.trace_start"() <{level = 10 : i32, message = "bqk,bkd->bqd"}> : () -> ()
    %cst_30 = arith.constant dense<0.000000e+00> : vector<2x8x32xf32>
    %89 = tpu.matmul %82, %88, %cst_30 {dimension_numbers = #tpu.dot_dimension_numbers<[2], [1], [1], [2], [0, 0, 0, 1, 1, 2], [0], [0]>} : vector<2x8x8xbf16>, vector<2x8x32xbf16>, vector<2x8x32xf32> -> vector<2x8x32xf32>
    "tpu.trace_stop"() : () -> ()
    %90 = tpu.reciprocal %87 {approx = true} : vector<2x8x1xf32> -> vector<2x8x1xf32>
    %91 = vector.broadcast %90 : vector<2x8x1xf32> to vector<2x8x32xf32>
    %92 = arith.mulf %89, %91 : vector<2x8x32xf32>
    %93 = arith.addf %75, %92 : vector<2x8x32xf32>
    %94 = vector.extract_strided_slice %55 {offsets = [0, 0, 16], sizes = [2, 8, 8], strides = [1, 1, 1]} : vector<2x8x32xbf16> to vector<2x8x8xbf16>
    %95 = vector.extract_strided_slice %56 {offsets = [0, 0, 16], sizes = [2, 8, 8], strides = [1, 1, 1]} : vector<2x8x32xbf16> to vector<2x8x8xbf16>
    "tpu.trace_start"() <{level = 10 : i32, message = "bqc,bkc->bqk"}> : () -> ()
    %cst_31 = arith.constant dense<0.000000e+00> : vector<2x8x8xf32>
    %96 = tpu.matmul %94, %95, %cst_31 {dimension_numbers = #tpu.dot_dimension_numbers<[2], [2], [1], [1], [0, 0, 0, 1, 1, 1], [0], [0]>} : vector<2x8x8xbf16>, vector<2x8x8xbf16>, vector<2x8x8xf32> -> vector<2x8x8xf32>
    "tpu.trace_stop"() : () -> ()
    %97 = vector.shape_cast %50 : vector<8x8xf32> to vector<1x8x8xf32>
    %98 = vector.broadcast %97 : vector<1x8x8xf32> to vector<2x8x8xf32>
    %99 = arith.mulf %96, %98 : vector<2x8x8xf32>
    %100 = arith.truncf %99 : vector<2x8x8xf32> to vector<2x8x8xbf16>
    %101 = arith.extf %100 : vector<2x8x8xbf16> to vector<2x8x8xf32>
    %cst_32 = arith.constant dense<0.000000e+00> : vector<2x8xf32>
    %102 = vector.multi_reduction <add>, %101, %cst_32 [2] : vector<2x8x8xf32> to vector<2x8xf32>
    %103 = vector.shape_cast %102 : vector<2x8xf32> to vector<2x8x1xf32>
    %cst_33 = arith.constant 9.99999997E-7 : f32
    %104 = vector.broadcast %cst_33 : f32 to vector<2x8x1xf32>
    %105 = arith.addf %103, %104 : vector<2x8x1xf32>
    %106 = vector.extract_strided_slice %54 {offsets = [0, 0, 64], sizes = [2, 8, 32], strides = [1, 1, 1]} : vector<2x8x128xbf16> to vector<2x8x32xbf16>
    "tpu.trace_start"() <{level = 10 : i32, message = "bqk,bkd->bqd"}> : () -> ()
    %cst_34 = arith.constant dense<0.000000e+00> : vector<2x8x32xf32>
    %107 = tpu.matmul %100, %106, %cst_34 {dimension_numbers = #tpu.dot_dimension_numbers<[2], [1], [1], [2], [0, 0, 0, 1, 1, 2], [0], [0]>} : vector<2x8x8xbf16>, vector<2x8x32xbf16>, vector<2x8x32xf32> -> vector<2x8x32xf32>
    "tpu.trace_stop"() : () -> ()
    %108 = tpu.reciprocal %105 {approx = true} : vector<2x8x1xf32> -> vector<2x8x1xf32>
    %109 = vector.broadcast %108 : vector<2x8x1xf32> to vector<2x8x32xf32>
    %110 = arith.mulf %107, %109 : vector<2x8x32xf32>
    %111 = arith.addf %93, %110 : vector<2x8x32xf32>
    %112 = vector.extract_strided_slice %55 {offsets = [0, 0, 24], sizes = [2, 8, 8], strides = [1, 1, 1]} : vector<2x8x32xbf16> to vector<2x8x8xbf16>
    %113 = vector.extract_strided_slice %56 {offsets = [0, 0, 24], sizes = [2, 8, 8], strides = [1, 1, 1]} : vector<2x8x32xbf16> to vector<2x8x8xbf16>
    "tpu.trace_start"() <{level = 10 : i32, message = "bqc,bkc->bqk"}> : () -> ()
    %cst_35 = arith.constant dense<0.000000e+00> : vector<2x8x8xf32>
    %114 = tpu.matmul %112, %113, %cst_35 {dimension_numbers = #tpu.dot_dimension_numbers<[2], [2], [1], [1], [0, 0, 0, 1, 1, 1], [0], [0]>} : vector<2x8x8xbf16>, vector<2x8x8xbf16>, vector<2x8x8xf32> -> vector<2x8x8xf32>
    "tpu.trace_stop"() : () -> ()
    %115 = vector.shape_cast %50 : vector<8x8xf32> to vector<1x8x8xf32>
    %116 = vector.broadcast %115 : vector<1x8x8xf32> to vector<2x8x8xf32>
    %117 = arith.mulf %114, %116 : vector<2x8x8xf32>
    %118 = arith.truncf %117 : vector<2x8x8xf32> to vector<2x8x8xbf16>
    %119 = arith.extf %118 : vector<2x8x8xbf16> to vector<2x8x8xf32>
    %cst_36 = arith.constant dense<0.000000e+00> : vector<2x8xf32>
    %120 = vector.multi_reduction <add>, %119, %cst_36 [2] : vector<2x8x8xf32> to vector<2x8xf32>
    %121 = vector.shape_cast %120 : vector<2x8xf32> to vector<2x8x1xf32>
    %cst_37 = arith.constant 9.99999997E-7 : f32
    %122 = vector.broadcast %cst_37 : f32 to vector<2x8x1xf32>
    %123 = arith.addf %121, %122 : vector<2x8x1xf32>
    %124 = vector.extract_strided_slice %54 {offsets = [0, 0, 96], sizes = [2, 8, 32], strides = [1, 1, 1]} : vector<2x8x128xbf16> to vector<2x8x32xbf16>
    "tpu.trace_start"() <{level = 10 : i32, message = "bqk,bkd->bqd"}> : () -> ()
    %cst_38 = arith.constant dense<0.000000e+00> : vector<2x8x32xf32>
    %125 = tpu.matmul %118, %124, %cst_38 {dimension_numbers = #tpu.dot_dimension_numbers<[2], [1], [1], [2], [0, 0, 0, 1, 1, 2], [0], [0]>} : vector<2x8x8xbf16>, vector<2x8x32xbf16>, vector<2x8x32xf32> -> vector<2x8x32xf32>
    "tpu.trace_stop"() : () -> ()
    %126 = tpu.reciprocal %123 {approx = true} : vector<2x8x1xf32> -> vector<2x8x1xf32>
    %127 = vector.broadcast %126 : vector<2x8x1xf32> to vector<2x8x32xf32>
    %128 = arith.mulf %125, %127 : vector<2x8x32xf32>
    %129 = arith.addf %111, %128 : vector<2x8x32xf32>
    %130 = vector.shape_cast %129 : vector<2x8x32xf32> to vector<16x32xf32>
    %131 = arith.addf %0, %130 : vector<16x32xf32>
    %c0_39 = arith.constant 0 : index
    %c0_40 = arith.constant 0 : index
    %132 = vector.load %arg7[%c0_39, %c0_40] : memref<1x32xf32, #tpu.memory_space<vmem>>, vector<1x32xf32>
    %133 = vector.broadcast %132 : vector<1x32xf32> to vector<16x32xf32>
    %134 = arith.addf %131, %133 : vector<16x32xf32>
    %cst_41 = arith.constant dense<0.000000e+00> : vector<16xf32>
    %135 = vector.multi_reduction <add>, %134, %cst_41 [1] : vector<16x32xf32> to vector<16xf32>
    %136 = vector.shape_cast %135 : vector<16xf32> to vector<16x1xf32>
    %cst_42 = arith.constant 3.200000e+01 : f32
    %137 = vector.broadcast %cst_42 : f32 to vector<16x1xf32>
    %138 = arith.divf %136, %137 : vector<16x1xf32>
    %139 = vector.broadcast %138 : vector<16x1xf32> to vector<16x32xf32>
    %140 = arith.subf %134, %139 : vector<16x32xf32>
    %141 = arith.mulf %140, %140 : vector<16x32xf32>
    %cst_43 = arith.constant dense<0.000000e+00> : vector<16xf32>
    %142 = vector.multi_reduction <add>, %141, %cst_43 [1] : vector<16x32xf32> to vector<16xf32>
    %143 = vector.shape_cast %142 : vector<16xf32> to vector<16x1xf32>
    %cst_44 = arith.constant 3.200000e+01 : f32
    %144 = vector.broadcast %cst_44 : f32 to vector<16x1xf32>
    %145 = arith.divf %143, %144 : vector<16x1xf32>
    %146 = vector.broadcast %138 : vector<16x1xf32> to vector<16x32xf32>
    %147 = arith.subf %134, %146 : vector<16x32xf32>
    %cst_45 = arith.constant 9.99999974E-6 : f32
    %148 = vector.broadcast %cst_45 : f32 to vector<16x1xf32>
    %149 = arith.addf %145, %148 : vector<16x1xf32>
    %150 = math.rsqrt %149 : vector<16x1xf32>
    %151 = vector.broadcast %150 : vector<16x1xf32> to vector<16x32xf32>
    %152 = arith.mulf %147, %151 : vector<16x32xf32>
    %153 = arith.truncf %152 : vector<16x32xf32> to vector<16x32xbf16>
    %c0_46 = arith.constant 0 : index
    %c0_47 = arith.constant 0 : index
    %154 = vector.load %arg8[%c0_46, %c0_47] : memref<32x32xbf16, #tpu.memory_space<vmem>>, vector<32x32xbf16>
    %cst_48 = arith.constant dense<0.000000e+00> : vector<16x32xf32>
    %155 = tpu.matmul %153, %154, %cst_48 {dimension_numbers = #tpu.dot_dimension_numbers<[1], [0], [0], [1], [0, 0, 1, 1], [], []>} : vector<16x32xbf16>, vector<32x32xbf16>, vector<16x32xf32> -> vector<16x32xf32>
    %c0_49 = arith.constant 0 : index
    %c0_50 = arith.constant 0 : index
    %156 = vector.load %arg9[%c0_49, %c0_50] : memref<1x32xf32, #tpu.memory_space<vmem>>, vector<1x32xf32>
    %157 = vector.broadcast %156 : vector<1x32xf32> to vector<16x32xf32>
    %158 = arith.addf %155, %157 : vector<16x32xf32>
    %cst_51 = arith.constant 0.000000e+00 : f32
    %159 = vector.broadcast %cst_51 : f32 to vector<16x32xf32>
    %160 = arith.cmpf ogt, %158, %159 : vector<16x32xf32>
    %cst_52 = arith.constant 1.000000e+00 : f32
    %161 = vector.broadcast %cst_52 : f32 to vector<16x32xf32>
    %162 = arith.addf %158, %161 : vector<16x32xf32>
    %163 = math.exp %158 : vector<16x32xf32>
    %164 = arith.select %160, %162, %163 : vector<16x32xi1>, vector<16x32xf32>
    %c0_53 = arith.constant 0 : index
    %c0_54 = arith.constant 0 : index
    %165 = vector.load %arg10[%c0_53, %c0_54] : memref<32x64xbf16, #tpu.memory_space<vmem>>, vector<32x64xbf16>
    %cst_55 = arith.constant dense<0.000000e+00> : vector<16x64xf32>
    %166 = tpu.matmul %2, %165, %cst_55 {dimension_numbers = #tpu.dot_dimension_numbers<[1], [0], [0], [1], [0, 0, 1, 1], [], []>} : vector<16x32xbf16>, vector<32x64xbf16>, vector<16x64xf32> -> vector<16x64xf32>
    %c0_56 = arith.constant 0 : index
    %c0_57 = arith.constant 0 : index
    %167 = vector.load %arg11[%c0_56, %c0_57] : memref<1x64xf32, #tpu.memory_space<vmem>>, vector<1x64xf32>
    %168 = vector.broadcast %167 : vector<1x64xf32> to vector<16x64xf32>
    %169 = arith.addf %166, %168 : vector<16x64xf32>
    %170 = vector.extract_strided_slice %169 {offsets = [0, 0], sizes = [16, 32], strides = [1, 1]} : vector<16x64xf32> to vector<16x32xf32>
    %cst_58 = arith.constant 0.000000e+00 : f32
    %171 = vector.broadcast %cst_58 : f32 to vector<16x32xf32>
    %172 = arith.cmpf ogt, %170, %171 : vector<16x32xf32>
    %cst_59 = arith.constant 1.000000e+00 : f32
    %173 = vector.broadcast %cst_59 : f32 to vector<16x32xf32>
    %174 = arith.addf %170, %173 : vector<16x32xf32>
    %175 = math.exp %170 : vector<16x32xf32>
    %176 = arith.select %172, %174, %175 : vector<16x32xi1>, vector<16x32xf32>
    %177 = vector.shape_cast %176 : vector<16x32xf32> to vector<2x8x32xf32>
    %178 = vector.extract_strided_slice %169 {offsets = [0, 32], sizes = [16, 32], strides = [1, 1]} : vector<16x64xf32> to vector<16x32xf32>
    %179 = arith.truncf %178 : vector<16x32xf32> to vector<16x32xbf16>
    %180 = vector.shape_cast %164 : vector<16x32xf32> to vector<2x8x32xf32>
    %c0_60 = arith.constant 0 : index
    %c0_61 = arith.constant 0 : index
    %181 = vector.load %arg12[%c0_60, %c0_61] : memref<32x128xbf16, #tpu.memory_space<vmem>>, vector<32x128xbf16>
    %cst_62 = arith.constant dense<0.000000e+00> : vector<16x128xf32>
    %182 = tpu.matmul %179, %181, %cst_62 {dimension_numbers = #tpu.dot_dimension_numbers<[1], [0], [0], [1], [0, 0, 1, 1], [], []>} : vector<16x32xbf16>, vector<32x128xbf16>, vector<16x128xf32> -> vector<16x128xf32>
    %183 = vector.shape_cast %182 : vector<16x128xf32> to vector<2x8x128xf32>
    %184 = arith.truncf %183 : vector<2x8x128xf32> to vector<2x8x128xbf16>
    %185 = arith.truncf %180 : vector<2x8x32xf32> to vector<2x8x32xbf16>
    %186 = arith.truncf %177 : vector<2x8x32xf32> to vector<2x8x32xbf16>
    %cst_63 = arith.constant 0.000000e+00 : f32
    %187 = vector.broadcast %cst_63 : f32 to vector<2x8x32xf32>
    %188 = vector.extract_strided_slice %185 {offsets = [0, 0, 0], sizes = [2, 8, 8], strides = [1, 1, 1]} : vector<2x8x32xbf16> to vector<2x8x8xbf16>
    %189 = vector.extract_strided_slice %186 {offsets = [0, 0, 0], sizes = [2, 8, 8], strides = [1, 1, 1]} : vector<2x8x32xbf16> to vector<2x8x8xbf16>
    "tpu.trace_start"() <{level = 10 : i32, message = "bqc,bkc->bqk"}> : () -> ()
    %cst_64 = arith.constant dense<0.000000e+00> : vector<2x8x8xf32>
    %190 = tpu.matmul %188, %189, %cst_64 {dimension_numbers = #tpu.dot_dimension_numbers<[2], [2], [1], [1], [0, 0, 0, 1, 1, 1], [0], [0]>} : vector<2x8x8xbf16>, vector<2x8x8xbf16>, vector<2x8x8xf32> -> vector<2x8x8xf32>
    "tpu.trace_stop"() : () -> ()
    %191 = vector.broadcast %3 : vector<2x1x8xf32> to vector<2x8x8xf32>
    %192 = arith.mulf %190, %191 : vector<2x8x8xf32>
    %193 = arith.truncf %192 : vector<2x8x8xf32> to vector<2x8x8xbf16>
    %194 = arith.extf %193 : vector<2x8x8xbf16> to vector<2x8x8xf32>
    %cst_65 = arith.constant dense<0.000000e+00> : vector<2x8xf32>
    %195 = vector.multi_reduction <add>, %194, %cst_65 [2] : vector<2x8x8xf32> to vector<2x8xf32>
    %196 = vector.shape_cast %195 : vector<2x8xf32> to vector<2x8x1xf32>
    %cst_66 = arith.constant 9.99999997E-7 : f32
    %197 = vector.broadcast %cst_66 : f32 to vector<2x8x1xf32>
    %198 = arith.addf %196, %197 : vector<2x8x1xf32>
    %199 = vector.extract_strided_slice %184 {offsets = [0, 0, 0], sizes = [2, 8, 32], strides = [1, 1, 1]} : vector<2x8x128xbf16> to vector<2x8x32xbf16>
    "tpu.trace_start"() <{level = 10 : i32, message = "bqk,bkd->bqd"}> : () -> ()
    %cst_67 = arith.constant dense<0.000000e+00> : vector<2x8x32xf32>
    %200 = tpu.matmul %193, %199, %cst_67 {dimension_numbers = #tpu.dot_dimension_numbers<[2], [1], [1], [2], [0, 0, 0, 1, 1, 2], [0], [0]>} : vector<2x8x8xbf16>, vector<2x8x32xbf16>, vector<2x8x32xf32> -> vector<2x8x32xf32>
    "tpu.trace_stop"() : () -> ()
    %201 = tpu.reciprocal %198 {approx = true} : vector<2x8x1xf32> -> vector<2x8x1xf32>
    %202 = vector.broadcast %201 : vector<2x8x1xf32> to vector<2x8x32xf32>
    %203 = arith.mulf %200, %202 : vector<2x8x32xf32>
    %204 = arith.addf %187, %203 : vector<2x8x32xf32>
    %205 = vector.extract_strided_slice %185 {offsets = [0, 0, 8], sizes = [2, 8, 8], strides = [1, 1, 1]} : vector<2x8x32xbf16> to vector<2x8x8xbf16>
    %206 = vector.extract_strided_slice %186 {offsets = [0, 0, 8], sizes = [2, 8, 8], strides = [1, 1, 1]} : vector<2x8x32xbf16> to vector<2x8x8xbf16>
    "tpu.trace_start"() <{level = 10 : i32, message = "bqc,bkc->bqk"}> : () -> ()
    %cst_68 = arith.constant dense<0.000000e+00> : vector<2x8x8xf32>
    %207 = tpu.matmul %205, %206, %cst_68 {dimension_numbers = #tpu.dot_dimension_numbers<[2], [2], [1], [1], [0, 0, 0, 1, 1, 1], [0], [0]>} : vector<2x8x8xbf16>, vector<2x8x8xbf16>, vector<2x8x8xf32> -> vector<2x8x8xf32>
    "tpu.trace_stop"() : () -> ()
    %208 = vector.broadcast %3 : vector<2x1x8xf32> to vector<2x8x8xf32>
    %209 = arith.mulf %207, %208 : vector<2x8x8xf32>
    %210 = arith.truncf %209 : vector<2x8x8xf32> to vector<2x8x8xbf16>
    %211 = arith.extf %210 : vector<2x8x8xbf16> to vector<2x8x8xf32>
    %cst_69 = arith.constant dense<0.000000e+00> : vector<2x8xf32>
    %212 = vector.multi_reduction <add>, %211, %cst_69 [2] : vector<2x8x8xf32> to vector<2x8xf32>
    %213 = vector.shape_cast %212 : vector<2x8xf32> to vector<2x8x1xf32>
    %cst_70 = arith.constant 9.99999997E-7 : f32
    %214 = vector.broadcast %cst_70 : f32 to vector<2x8x1xf32>
    %215 = arith.addf %213, %214 : vector<2x8x1xf32>
    %216 = vector.extract_strided_slice %184 {offsets = [0, 0, 32], sizes = [2, 8, 32], strides = [1, 1, 1]} : vector<2x8x128xbf16> to vector<2x8x32xbf16>
    "tpu.trace_start"() <{level = 10 : i32, message = "bqk,bkd->bqd"}> : () -> ()
    %cst_71 = arith.constant dense<0.000000e+00> : vector<2x8x32xf32>
    %217 = tpu.matmul %210, %216, %cst_71 {dimension_numbers = #tpu.dot_dimension_numbers<[2], [1], [1], [2], [0, 0, 0, 1, 1, 2], [0], [0]>} : vector<2x8x8xbf16>, vector<2x8x32xbf16>, vector<2x8x32xf32> -> vector<2x8x32xf32>
    "tpu.trace_stop"() : () -> ()
    %218 = tpu.reciprocal %215 {approx = true} : vector<2x8x1xf32> -> vector<2x8x1xf32>
    %219 = vector.broadcast %218 : vector<2x8x1xf32> to vector<2x8x32xf32>
    %220 = arith.mulf %217, %219 : vector<2x8x32xf32>
    %221 = arith.addf %204, %220 : vector<2x8x32xf32>
    %222 = vector.extract_strided_slice %185 {offsets = [0, 0, 16], sizes = [2, 8, 8], strides = [1, 1, 1]} : vector<2x8x32xbf16> to vector<2x8x8xbf16>
    %223 = vector.extract_strided_slice %186 {offsets = [0, 0, 16], sizes = [2, 8, 8], strides = [1, 1, 1]} : vector<2x8x32xbf16> to vector<2x8x8xbf16>
    "tpu.trace_start"() <{level = 10 : i32, message = "bqc,bkc->bqk"}> : () -> ()
    %cst_72 = arith.constant dense<0.000000e+00> : vector<2x8x8xf32>
    %224 = tpu.matmul %222, %223, %cst_72 {dimension_numbers = #tpu.dot_dimension_numbers<[2], [2], [1], [1], [0, 0, 0, 1, 1, 1], [0], [0]>} : vector<2x8x8xbf16>, vector<2x8x8xbf16>, vector<2x8x8xf32> -> vector<2x8x8xf32>
    "tpu.trace_stop"() : () -> ()
    %225 = vector.broadcast %3 : vector<2x1x8xf32> to vector<2x8x8xf32>
    %226 = arith.mulf %224, %225 : vector<2x8x8xf32>
    %227 = arith.truncf %226 : vector<2x8x8xf32> to vector<2x8x8xbf16>
    %228 = arith.extf %227 : vector<2x8x8xbf16> to vector<2x8x8xf32>
    %cst_73 = arith.constant dense<0.000000e+00> : vector<2x8xf32>
    %229 = vector.multi_reduction <add>, %228, %cst_73 [2] : vector<2x8x8xf32> to vector<2x8xf32>
    %230 = vector.shape_cast %229 : vector<2x8xf32> to vector<2x8x1xf32>
    %cst_74 = arith.constant 9.99999997E-7 : f32
    %231 = vector.broadcast %cst_74 : f32 to vector<2x8x1xf32>
    %232 = arith.addf %230, %231 : vector<2x8x1xf32>
    %233 = vector.extract_strided_slice %184 {offsets = [0, 0, 64], sizes = [2, 8, 32], strides = [1, 1, 1]} : vector<2x8x128xbf16> to vector<2x8x32xbf16>
    "tpu.trace_start"() <{level = 10 : i32, message = "bqk,bkd->bqd"}> : () -> ()
    %cst_75 = arith.constant dense<0.000000e+00> : vector<2x8x32xf32>
    %234 = tpu.matmul %227, %233, %cst_75 {dimension_numbers = #tpu.dot_dimension_numbers<[2], [1], [1], [2], [0, 0, 0, 1, 1, 2], [0], [0]>} : vector<2x8x8xbf16>, vector<2x8x32xbf16>, vector<2x8x32xf32> -> vector<2x8x32xf32>
    "tpu.trace_stop"() : () -> ()
    %235 = tpu.reciprocal %232 {approx = true} : vector<2x8x1xf32> -> vector<2x8x1xf32>
    %236 = vector.broadcast %235 : vector<2x8x1xf32> to vector<2x8x32xf32>
    %237 = arith.mulf %234, %236 : vector<2x8x32xf32>
    %238 = arith.addf %221, %237 : vector<2x8x32xf32>
    %239 = vector.extract_strided_slice %185 {offsets = [0, 0, 24], sizes = [2, 8, 8], strides = [1, 1, 1]} : vector<2x8x32xbf16> to vector<2x8x8xbf16>
    %240 = vector.extract_strided_slice %186 {offsets = [0, 0, 24], sizes = [2, 8, 8], strides = [1, 1, 1]} : vector<2x8x32xbf16> to vector<2x8x8xbf16>
    "tpu.trace_start"() <{level = 10 : i32, message = "bqc,bkc->bqk"}> : () -> ()
    %cst_76 = arith.constant dense<0.000000e+00> : vector<2x8x8xf32>
    %241 = tpu.matmul %239, %240, %cst_76 {dimension_numbers = #tpu.dot_dimension_numbers<[2], [2], [1], [1], [0, 0, 0, 1, 1, 1], [0], [0]>} : vector<2x8x8xbf16>, vector<2x8x8xbf16>, vector<2x8x8xf32> -> vector<2x8x8xf32>
    "tpu.trace_stop"() : () -> ()
    %242 = vector.broadcast %3 : vector<2x1x8xf32> to vector<2x8x8xf32>
    %243 = arith.mulf %241, %242 : vector<2x8x8xf32>
    %244 = arith.truncf %243 : vector<2x8x8xf32> to vector<2x8x8xbf16>
    %245 = arith.extf %244 : vector<2x8x8xbf16> to vector<2x8x8xf32>
    %cst_77 = arith.constant dense<0.000000e+00> : vector<2x8xf32>
    %246 = vector.multi_reduction <add>, %245, %cst_77 [2] : vector<2x8x8xf32> to vector<2x8xf32>
    %247 = vector.shape_cast %246 : vector<2x8xf32> to vector<2x8x1xf32>
    %cst_78 = arith.constant 9.99999997E-7 : f32
    %248 = vector.broadcast %cst_78 : f32 to vector<2x8x1xf32>
    %249 = arith.addf %247, %248 : vector<2x8x1xf32>
    %250 = vector.extract_strided_slice %184 {offsets = [0, 0, 96], sizes = [2, 8, 32], strides = [1, 1, 1]} : vector<2x8x128xbf16> to vector<2x8x32xbf16>
    "tpu.trace_start"() <{level = 10 : i32, message = "bqk,bkd->bqd"}> : () -> ()
    %cst_79 = arith.constant dense<0.000000e+00> : vector<2x8x32xf32>
    %251 = tpu.matmul %244, %250, %cst_79 {dimension_numbers = #tpu.dot_dimension_numbers<[2], [1], [1], [2], [0, 0, 0, 1, 1, 2], [0], [0]>} : vector<2x8x8xbf16>, vector<2x8x32xbf16>, vector<2x8x32xf32> -> vector<2x8x32xf32>
    "tpu.trace_stop"() : () -> ()
    %252 = tpu.reciprocal %249 {approx = true} : vector<2x8x1xf32> -> vector<2x8x1xf32>
    %253 = vector.broadcast %252 : vector<2x8x1xf32> to vector<2x8x32xf32>
    %254 = arith.mulf %251, %253 : vector<2x8x32xf32>
    %255 = arith.addf %238, %254 : vector<2x8x32xf32>
    %256 = vector.shape_cast %255 : vector<2x8x32xf32> to vector<16x32xf32>
    %257 = arith.addf %134, %256 : vector<16x32xf32>
    %c0_80 = arith.constant 0 : index
    %c0_81 = arith.constant 0 : index
    %258 = vector.load %arg13[%c0_80, %c0_81] : memref<1x32xf32, #tpu.memory_space<vmem>>, vector<1x32xf32>
    %259 = vector.broadcast %258 : vector<1x32xf32> to vector<16x32xf32>
    %260 = arith.addf %257, %259 : vector<16x32xf32>
    %cst_82 = arith.constant dense<0.000000e+00> : vector<16xf32>
    %261 = vector.multi_reduction <add>, %260, %cst_82 [1] : vector<16x32xf32> to vector<16xf32>
    %262 = vector.shape_cast %261 : vector<16xf32> to vector<16x1xf32>
    %cst_83 = arith.constant 3.200000e+01 : f32
    %263 = vector.broadcast %cst_83 : f32 to vector<16x1xf32>
    %264 = arith.divf %262, %263 : vector<16x1xf32>
    %265 = vector.broadcast %264 : vector<16x1xf32> to vector<16x32xf32>
    %266 = arith.subf %260, %265 : vector<16x32xf32>
    %267 = arith.mulf %266, %266 : vector<16x32xf32>
    %cst_84 = arith.constant dense<0.000000e+00> : vector<16xf32>
    %268 = vector.multi_reduction <add>, %267, %cst_84 [1] : vector<16x32xf32> to vector<16xf32>
    %269 = vector.shape_cast %268 : vector<16xf32> to vector<16x1xf32>
    %cst_85 = arith.constant 3.200000e+01 : f32
    %270 = vector.broadcast %cst_85 : f32 to vector<16x1xf32>
    %271 = arith.divf %269, %270 : vector<16x1xf32>
    %272 = vector.broadcast %264 : vector<16x1xf32> to vector<16x32xf32>
    %273 = arith.subf %260, %272 : vector<16x32xf32>
    %cst_86 = arith.constant 9.99999974E-6 : f32
    %274 = vector.broadcast %cst_86 : f32 to vector<16x1xf32>
    %275 = arith.addf %271, %274 : vector<16x1xf32>
    %276 = math.rsqrt %275 : vector<16x1xf32>
    %277 = vector.broadcast %276 : vector<16x1xf32> to vector<16x32xf32>
    %278 = arith.mulf %273, %277 : vector<16x32xf32>
    %279 = arith.truncf %278 : vector<16x32xf32> to vector<16x32xbf16>
    %c0_87 = arith.constant 0 : index
    %c0_88 = arith.constant 0 : index
    %280 = vector.load %arg14[%c0_87, %c0_88] : memref<32x64xbf16, #tpu.memory_space<vmem>>, vector<32x64xbf16>
    %cst_89 = arith.constant dense<0.000000e+00> : vector<16x64xf32>
    %281 = tpu.matmul %279, %280, %cst_89 {dimension_numbers = #tpu.dot_dimension_numbers<[1], [0], [0], [1], [0, 0, 1, 1], [], []>} : vector<16x32xbf16>, vector<32x64xbf16>, vector<16x64xf32> -> vector<16x64xf32>
    %c0_90 = arith.constant 0 : index
    %c0_91 = arith.constant 0 : index
    %282 = vector.load %arg15[%c0_90, %c0_91] : memref<1x64xf32, #tpu.memory_space<vmem>>, vector<1x64xf32>
    %283 = vector.broadcast %282 : vector<1x64xf32> to vector<16x64xf32>
    %284 = arith.addf %281, %283 : vector<16x64xf32>
    %cst_92 = arith.constant 0.000000e+00 : f32
    %285 = vector.broadcast %cst_92 : f32 to vector<16x64xf32>
    %286 = arith.maximumf %284, %285 : vector<16x64xf32>
    %287 = arith.truncf %286 : vector<16x64xf32> to vector<16x64xbf16>
    %c0_93 = arith.constant 0 : index
    %c0_94 = arith.constant 0 : index
    %288 = vector.load %arg16[%c0_93, %c0_94] : memref<64x32xbf16, #tpu.memory_space<vmem>>, vector<64x32xbf16>
    %cst_95 = arith.constant dense<0.000000e+00> : vector<16x32xf32>
    %289 = tpu.matmul %287, %288, %cst_95 {dimension_numbers = #tpu.dot_dimension_numbers<[1], [0], [0], [1], [0, 0, 1, 1], [], []>} : vector<16x64xbf16>, vector<64x32xbf16>, vector<16x32xf32> -> vector<16x32xf32>
    %290 = arith.addf %260, %289 : vector<16x32xf32>
    %c0_96 = arith.constant 0 : index
    %c0_97 = arith.constant 0 : index
    %291 = vector.load %arg17[%c0_96, %c0_97] : memref<1x32xf32, #tpu.memory_space<vmem>>, vector<1x32xf32>
    %292 = vector.broadcast %291 : vector<1x32xf32> to vector<16x32xf32>
    %293 = arith.addf %290, %292 : vector<16x32xf32>
    %c0_98 = arith.constant 0 : index
    %c0_99 = arith.constant 0 : index
    %294 = vector.load %arg18[%c0_98, %c0_99] : memref<16x32xf32, #tpu.memory_space<vmem>>, vector<16x32xf32>
    tpu.vector_store %arg18[%c0_98, %c0_99], %293 {strides = array<i32>} : memref<16x32xf32, #tpu.memory_space<vmem>>, vector<16x32xf32>,
    return
  }
  func.func @transform_0(%arg0: i32) -> (i32, i32) {
    %c0_i32 = arith.constant 0 : i32
    %c0_i32_0 = arith.constant 0 : i32
    return %arg0, %c0_i32 : i32, i32
  }
  func.func @transform_1(%arg0: i32) -> (i32, i32) {
    %c0_i32 = arith.constant 0 : i32
    %c0_i32_0 = arith.constant 0 : i32
    return %arg0, %c0_i32 : i32, i32
  }
  func.func @transform_2(%arg0: i32) -> (i32, i32, i32) {
    %c0_i32 = arith.constant 0 : i32
    %c0_i32_0 = arith.constant 0 : i32
    %c0_i32_1 = arith.constant 0 : i32
    return %arg0, %c0_i32, %c0_i32_0 : i32, i32, i32
  }
  func.func @transform_3(%arg0: i32) -> (i32, i32) {
    %c0_i32 = arith.constant 0 : i32
    %c0_i32_0 = arith.constant 0 : i32
    %c0_i32_1 = arith.constant 0 : i32
    return %c0_i32, %c0_i32_0 : i32, i32
  }
  func.func @transform_4(%arg0: i32) -> (i32, i32) {
    %c0_i32 = arith.constant 0 : i32
    %c0_i32_0 = arith.constant 0 : i32
    %c0_i32_1 = arith.constant 0 : i32
    return %c0_i32, %c0_i32_0 : i32, i32
  }
  func.func @transform_5(%arg0: i32) -> (i32, i32) {
    %c0_i32 = arith.constant 0 : i32
    %c0_i32_0 = arith.constant 0 : i32
    %c0_i32_1 = arith.constant 0 : i32
    return %c0_i32, %c0_i32_0 : i32, i32
  }
  func.func @transform_6(%arg0: i32) -> (i32, i32) {
    %c0_i32 = arith.constant 0 : i32
    %c0_i32_0 = arith.constant 0 : i32
    %c0_i32_1 = arith.constant 0 : i32
    return %c0_i32, %c0_i32_0 : i32, i32
  }
  func.func @transform_7(%arg0: i32) -> (i32, i32) {
    %c0_i32 = arith.constant 0 : i32
    %c0_i32_0 = arith.constant 0 : i32
    %c0_i32_1 = arith.constant 0 : i32
    return %c0_i32, %c0_i32_0 : i32, i32
  }
  func.func @transform_8(%arg0: i32) -> (i32, i32) {
    %c0_i32 = arith.constant 0 : i32
    %c0_i32_0 = arith.constant 0 : i32
    %c0_i32_1 = arith.constant 0 : i32
    return %c0_i32, %c0_i32_0 : i32, i32
  }
  func.func @transform_9(%arg0: i32) -> (i32, i32) {
    %c0_i32 = arith.constant 0 : i32
    %c0_i32_0 = arith.constant 0 : i32
    %c0_i32_1 = arith.constant 0 : i32
    return %c0_i32, %c0_i32_0 : i32, i32
  }
  func.func @transform_10(%arg0: i32) -> (i32, i32) {
    %c0_i32 = arith.constant 0 : i32
    %c0_i32_0 = arith.constant 0 : i32
    %c0_i32_1 = arith.constant 0 : i32
    return %c0_i32, %c0_i32_0 : i32, i32
  }
  func.func @transform_11(%arg0: i32) -> (i32, i32) {
    %c0_i32 = arith.constant 0 : i32
    %c0_i32_0 = arith.constant 0 : i32
    %c0_i32_1 = arith.constant 0 : i32
    return %c0_i32, %c0_i32_0 : i32, i32
  }
  func.func @transform_12(%arg0: i32) -> (i32, i32) {
    %c0_i32 = arith.constant 0 : i32
    %c0_i32_0 = arith.constant 0 : i32
    %c0_i32_1 = arith.constant 0 : i32
    return %c0_i32, %c0_i32_0 : i32, i32
  }
  func.func @transform_13(%arg0: i32) -> (i32, i32) {
    %c0_i32 = arith.constant 0 : i32
    %c0_i32_0 = arith.constant 0 : i32
    %c0_i32_1 = arith.constant 0 : i32
    return %c0_i32, %c0_i32_0 : i32, i32
  }
  func.func @transform_14(%arg0: i32) -> (i32, i32) {
    %c0_i32 = arith.constant 0 : i32
    %c0_i32_0 = arith.constant 0 : i32
    %c0_i32_1 = arith.constant 0 : i32
    return %c0_i32, %c0_i32_0 : i32, i32
  }
  func.func @transform_15(%arg0: i32) -> (i32, i32) {
    %c0_i32 = arith.constant 0 : i32
    %c0_i32_0 = arith.constant 0 : i32
    %c0_i32_1 = arith.constant 0 : i32
    return %c0_i32, %c0_i32_0 : i32, i32
  }
  func.func @transform_16(%arg0: i32) -> (i32, i32) {
    %c0_i32 = arith.constant 0 : i32
    %c0_i32_0 = arith.constant 0 : i32
    %c0_i32_1 = arith.constant 0 : i32
    return %c0_i32, %c0_i32_0 : i32, i32
  }
  func.func @transform_17(%arg0: i32) -> (i32, i32) {
    %c0_i32 = arith.constant 0 : i32
    %c0_i32_0 = arith.constant 0 : i32
    return %arg0, %c0_i32 : i32, i32
  }
}

</mosaic_0001>

<llo_original>
// kernel: tpu_custom_call.1
$region0: #{tpu_custom_call.1}
  #allocation0 [shape = 'u32[]', space=smem, size = 0x4, offset = 0x4, fixed_abs, tag = 'smem constant byte address 0x4 - core index']
  #allocation1 [shape = 'u32[144,128]{1,0:T(1,128)}', space=vmem, size = 0x12000, scoped, tag = 'internal scratch']
  %s0 = inlined_call_operand.vmem [shape: f32[16,32], index: 0, kind: input, shape index: {}]
  %s1 = inlined_call_operand.vmem [shape: f32[16,32], index: 1, kind: input, shape index: {}]
  %s2 = inlined_call_operand.hbm [shape: f32[2,1,8], index: 2, kind: input, shape index: {}]
  %s3 = inlined_call_operand.vmem [shape: bf16[32,96], index: 3, kind: input, shape index: {}]
  %s4 = inlined_call_operand.hbm [shape: f32[1,96], index: 4, kind: input, shape index: {}]
  %s5 = inlined_call_operand.hbm [shape: bf16[32,128], index: 5, kind: input, shape index: {}]
  %s6 = inlined_call_operand.hbm [shape: f32[1,32], index: 6, kind: input, shape index: {}]
  %s7 = inlined_call_operand.hbm [shape: bf16[32,32], index: 7, kind: input, shape index: {}]
  %s8 = inlined_call_operand.hbm [shape: f32[1,32], index: 8, kind: input, shape index: {}]
  %s9 = inlined_call_operand.vmem [shape: bf16[32,64], index: 9, kind: input, shape index: {}]
  %s10 = inlined_call_operand.vmem [shape: f32[1,64], index: 10, kind: input, shape index: {}]
  %s11 = inlined_call_operand.hbm [shape: bf16[32,128], index: 11, kind: input, shape index: {}]
  %s12 = inlined_call_operand.vmem [shape: f32[1,32], index: 12, kind: input, shape index: {}]
  %s13 = inlined_call_operand.hbm [shape: bf16[32,64], index: 13, kind: input, shape index: {}]
  %s14 = inlined_call_operand.vmem [shape: f32[1,64], index: 14, kind: input, shape index: {}]
  %s15 = inlined_call_operand.vmem [shape: bf16[64,32], index: 15, kind: input, shape index: {}]
  %s16 = inlined_call_operand.vmem [shape: f32[1,32], index: 16, kind: input, shape index: {}]
  %s17 = inlined_call_operand.hbm [shape: f32[16,32], index: 17, kind: output, shape index: {}]
  %s18 = sld [smem:[#allocation0]]
  $region110: #{tpu_custom_call.1} parent=0
    _
  %s20 = ssub.s32 1, %s18
  %s21 = scalar_select 0, %s20, %s18
  $region1: #{tpu_custom_call.1} parent=0
    #allocation2 [shape = 'u8[1024]{0}', space=vmem, size = 0x400, scoped, tag = 'input window, operand 2, single buffered']
    #allocation3 [shape = 's32[1]{0}', space=sflag, size = 0x4, scoped, tag = 'scoped memory for tpu_custom_call.1']
    #allocation4 [shape = 's32[1]{0}', space=sflag, size = 0x4, scoped, tag = 'scoped memory for tpu_custom_call.1']
    #allocation5 [shape = 'u8[512]{0}', space=vmem, size = 0x400, scoped, tag = 'input window, operand 4, single buffered']
    #allocation6 [shape = 's32[1]{0}', space=sflag, size = 0x4, scoped, tag = 'scoped memory for tpu_custom_call.1']
    #allocation7 [shape = 'u8[8192]{0}', space=vmem, size = 0x2000, scoped, tag = 'input window, operand 5, single buffered']
    #allocation8 [shape = 'u8[512]{0}', space=vmem, size = 0x400, scoped, tag = 'input window, operand 6, single buffered']
    #allocation9 [shape = 's32[1]{0}', space=sflag, size = 0x4, scoped, tag = 'scoped memory for tpu_custom_call.1']
    #allocation10 [shape = 'u8[8192]{0}', space=vmem, size = 0x2000, scoped, tag = 'input window, operand 7, single buffered']
    #allocation11 [shape = 'u8[512]{0}', space=vmem, size = 0x400, scoped, tag = 'input window, operand 8, single buffered']
    #allocation12 [shape = 's32[1]{0}', space=sflag, size = 0x4, scoped, tag = 'scoped memory for tpu_custom_call.1']
    #allocation13 [shape = 'u8[8192]{0}', space=vmem, size = 0x2000, scoped, tag = 'input window, operand 11, single buffered']
    #allocation14 [shape = 'u8[8192]{0}', space=vmem, size = 0x2000, scoped, tag = 'input window, operand 13, single buffered']
    #allocation15 [shape = 's32[1]{0}', space=sflag, size = 0x4, scoped, tag = 'scoped memory for tpu_custom_call.1']
    #allocation16 [shape = 'u8[8192]{0}', space=vmem, size = 0x2000, scoped, tag = 'output window, operand 0, single buffered']
    %22 = vsyncpa [#allocation3], 0
    %23 = vsyncpa [#allocation6], 0
    %24 = vsyncpa [#allocation9], 0
    %25 = vsyncpa [#allocation12], 0
    %26 = vsyncpa [#allocation15], 0
    %27 = vsyncpa [#allocation4], 0
    // Predicated region
    $region2: #{tpu_custom_call.1} parent=1 // pred_check
      _
    $region3: #{tpu_custom_call.1} parent=1 // pred_check_branch
      %29 = sbr.rel (0) target = $region5
    $region4: #{tpu_custom_call.1} parent=1 // pred_region
      _
    $region5: #{tpu_custom_call.1} parent=1 // pred_fallthru
      _
    // Predicated region
    $region6: #{tpu_custom_call.1} parent=1 // pred_check
      _
    $region7: #{tpu_custom_call.1} parent=1 // pred_check_branch
      %31 = sbr.rel (0) target = $region9
    $region8: #{tpu_custom_call.1} parent=1 // pred_region
      _
    $region9: #{tpu_custom_call.1} parent=1 // pred_fallthru
      _
    // Predicated region
    $region10: #{tpu_custom_call.1} parent=1 // pred_check
      _
    $region11: #{tpu_custom_call.1} parent=1 // pred_check_branch
      %33 = sbr.rel (0) target = $region13
    $region12: #{tpu_custom_call.1} parent=1 // pred_region
      %s35 = ssub.s32 32, 32
      %36 = vsyncadd [#allocation3], %s35
      %s37 = sshll.u32 [#allocation2], 4
      %s38 = int_to_ptr.vmem [resolvable:$true] %s37
      %43 = dma.hbm_to_vmem [thread:$0]  %s2, 32, %s38, [#allocation3], 16, 16, 1
    $region13: #{tpu_custom_call.1} parent=1 // pred_fallthru
      _
    // Predicated region
    $region14: #{tpu_custom_call.1} parent=1 // pred_check
      _
    $region15: #{tpu_custom_call.1} parent=1 // pred_check_branch
      %45 = sbr.rel (0) target = $region17
    $region16: #{tpu_custom_call.1} parent=1 // pred_region
      _
    $region17: #{tpu_custom_call.1} parent=1 // pred_fallthru
      _
    // Predicated region
    $region18: #{tpu_custom_call.1} parent=1 // pred_check
      _
    $region19: #{tpu_custom_call.1} parent=1 // pred_check_branch
      %47 = sbr.rel (0) target = $region21
    $region20: #{tpu_custom_call.1} parent=1 // pred_region
      %s49 = ssub.s32 16, 16
      %50 = vsyncadd [#allocation6], %s49
      %s52 = sshll.u32 [#allocation5], 4
      %s53 = int_to_ptr.vmem [resolvable:$true] %s52
      %55 = dma.hbm_to_vmem [thread:$0]  %s4, 16, %s53, [#allocation6]
    $region21: #{tpu_custom_call.1} parent=1 // pred_fallthru
      _
    // Predicated region
    $region22: #{tpu_custom_call.1} parent=1 // pred_check
      _
    $region23: #{tpu_custom_call.1} parent=1 // pred_check_branch
      %57 = sbr.rel (0) target = $region25
    $region24: #{tpu_custom_call.1} parent=1 // pred_region
      %s59 = ssub.s32 256, 256
      %60 = vsyncadd [#allocation6], %s59
      %s61 = sshll.u32 [#allocation7], 4
      %s62 = int_to_ptr.vmem [resolvable:$true] %s61
      %67 = dma.hbm_to_vmem [thread:$0]  %s5, 256, %s62, [#allocation6], 64, 64, 4
    $region25: #{tpu_custom_call.1} parent=1 // pred_fallthru
      _
    // Predicated region
    $region26: #{tpu_custom_call.1} parent=1 // pred_check
      _
    $region27: #{tpu_custom_call.1} parent=1 // pred_check_branch
      %69 = sbr.rel (0) target = $region29
    $region28: #{tpu_custom_call.1} parent=1 // pred_region
      %s71 = ssub.s32 16, 16
      %72 = vsyncadd [#allocation9], %s71
      %s74 = sshll.u32 [#allocation8], 4
      %s75 = int_to_ptr.vmem [resolvable:$true] %s74
      %77 = dma.hbm_to_vmem [thread:$0]  %s6, 16, %s75, [#allocation9]
    $region29: #{tpu_custom_call.1} parent=1 // pred_fallthru
      _
    // Predicated region
    $region30: #{tpu_custom_call.1} parent=1 // pred_check
      _
    $region31: #{tpu_custom_call.1} parent=1 // pred_check_branch
      %79 = sbr.rel (0) target = $region33
    $region32: #{tpu_custom_call.1} parent=1 // pred_region
      %s81 = ssub.s32 256, 256
      %82 = vsyncadd [#allocation9], %s81
      %s83 = sshll.u32 [#allocation10], 4
      %s84 = int_to_ptr.vmem [resolvable:$true] %s83
      %89 = dma.hbm_to_vmem [thread:$0]  %s7, 256, %s84, [#allocation9], 64, 64, 4
    $region33: #{tpu_custom_call.1} parent=1 // pred_fallthru
      _
    // Predicated region
    $region34: #{tpu_custom_call.1} parent=1 // pred_check
      _
    $region35: #{tpu_custom_call.1} parent=1 // pred_check_branch
      %91 = sbr.rel (0) target = $region37
    $region36: #{tpu_custom_call.1} parent=1 // pred_region
      %s93 = ssub.s32 16, 16
      %94 = vsyncadd [#allocation12], %s93
      %s96 = sshll.u32 [#allocation11], 4
      %s97 = int_to_ptr.vmem [resolvable:$true] %s96
      %99 = dma.hbm_to_vmem [thread:$0]  %s8, 16, %s97, [#allocation12]
    $region37: #{tpu_custom_call.1} parent=1 // pred_fallthru
      _
    // Predicated region
    $region38: #{tpu_custom_call.1} parent=1 // pred_check
      _
    $region39: #{tpu_custom_call.1} parent=1 // pred_check_branch
      %101 = sbr.rel (0) target = $region41
    $region40: #{tpu_custom_call.1} parent=1 // pred_region
      _
    $region41: #{tpu_custom_call.1} parent=1 // pred_fallthru
      _
    // Predicated region
    $region42: #{tpu_custom_call.1} parent=1 // pred_check
      _
    $region43: #{tpu_custom_call.1} parent=1 // pred_check_branch
      %103 = sbr.rel (0) target = $region45
    $region44: #{tpu_custom_call.1} parent=1 // pred_region
      _
    $region45: #{tpu_custom_call.1} parent=1 // pred_fallthru
      _
    // Predicated region
    $region46: #{tpu_custom_call.1} parent=1 // pred_check
      _
    $region47: #{tpu_custom_call.1} parent=1 // pred_check_branch
      %105 = sbr.rel (0) target = $region49
    $region48: #{tpu_custom_call.1} parent=1 // pred_region
      %s107 = ssub.s32 256, 256
      %108 = vsyncadd [#allocation12], %s107
      %s109 = sshll.u32 [#allocation13], 4
      %s110 = int_to_ptr.vmem [resolvable:$true] %s109
      %115 = dma.hbm_to_vmem [thread:$0]  %s11, 256, %s110, [#allocation12], 64, 64, 4
    $region49: #{tpu_custom_call.1} parent=1 // pred_fallthru
      _
    // Predicated region
    $region50: #{tpu_custom_call.1} parent=1 // pred_check
      _
    $region51: #{tpu_custom_call.1} parent=1 // pred_check_branch
      %117 = sbr.rel (0) target = $region53
    $region52: #{tpu_custom_call.1} parent=1 // pred_region
      _
    $region53: #{tpu_custom_call.1} parent=1 // pred_fallthru
      _
    // Predicated region
    $region54: #{tpu_custom_call.1} parent=1 // pred_check
      _
    $region55: #{tpu_custom_call.1} parent=1 // pred_check_branch
      %119 = sbr.rel (0) target = $region57
    $region56: #{tpu_custom_call.1} parent=1 // pred_region
      %s121 = ssub.s32 256, 256
      %122 = vsyncadd [#allocation15], %s121
      %s123 = sshll.u32 [#allocation14], 4
      %s124 = int_to_ptr.vmem [resolvable:$true] %s123
      %129 = dma.hbm_to_vmem [thread:$0]  %s13, 256, %s124, [#allocation15], 64, 64, 4
    $region57: #{tpu_custom_call.1} parent=1 // pred_fallthru
      _
    // Predicated region
    $region58: #{tpu_custom_call.1} parent=1 // pred_check
      _
    $region59: #{tpu_custom_call.1} parent=1 // pred_check_branch
      %131 = sbr.rel (0) target = $region61
    $region60: #{tpu_custom_call.1} parent=1 // pred_region
      _
    $region61: #{tpu_custom_call.1} parent=1 // pred_fallthru
      _
    // Predicated region
    $region62: #{tpu_custom_call.1} parent=1 // pred_check
      _
    $region63: #{tpu_custom_call.1} parent=1 // pred_check_branch
      %133 = sbr.rel (0) target = $region65
    $region64: #{tpu_custom_call.1} parent=1 // pred_region
      _
    $region65: #{tpu_custom_call.1} parent=1 // pred_fallthru
      _
    // Predicated region
    $region66: #{tpu_custom_call.1} parent=1 // pred_check
      _
    $region67: #{tpu_custom_call.1} parent=1 // pred_check_branch
      %135 = sbr.rel (0) target = $region69
    $region68: #{tpu_custom_call.1} parent=1 // pred_region
      _
    $region69: #{tpu_custom_call.1} parent=1 // pred_fallthru
      _
    // Predicated region
    $region70: #{tpu_custom_call.1} parent=1 // pred_check
      _
    $region71: #{tpu_custom_call.1} parent=1 // pred_check_branch
      %137 = sbr.rel (0) target = $region73
    $region72: #{tpu_custom_call.1} parent=1 // pred_region
      %138 = dma.done [#allocation3], 32
    $region73: #{tpu_custom_call.1} parent=1 // pred_fallthru
      _
    // Predicated region
    $region74: #{tpu_custom_call.1} parent=1 // pred_check
      _
    $region75: #{tpu_custom_call.1} parent=1 // pred_check_branch
      %140 = sbr.rel (0) target = $region77
    $region76: #{tpu_custom_call.1} parent=1 // pred_region
      %141 = dma.done [#allocation6], 16
    $region77: #{tpu_custom_call.1} parent=1 // pred_fallthru
      _
    // Predicated region
    $region78: #{tpu_custom_call.1} parent=1 // pred_check
      _
    $region79: #{tpu_custom_call.1} parent=1 // pred_check_branch
      %143 = sbr.rel (0) target = $region81
    $region80: #{tpu_custom_call.1} parent=1 // pred_region
      %144 = dma.done [#allocation6], 256
    $region81: #{tpu_custom_call.1} parent=1 // pred_fallthru
      _
    // Predicated region
    $region82: #{tpu_custom_call.1} parent=1 // pred_check
      _
    $region83: #{tpu_custom_call.1} parent=1 // pred_check_branch
      %146 = sbr.rel (0) target = $region85
    $region84: #{tpu_custom_call.1} parent=1 // pred_region
      %147 = dma.done [#allocation9], 16
    $region85: #{tpu_custom_call.1} parent=1 // pred_fallthru
      _
    // Predicated region
    $region86: #{tpu_custom_call.1} parent=1 // pred_check
      _
    $region87: #{tpu_custom_call.1} parent=1 // pred_check_branch
      %149 = sbr.rel (0) target = $region89
    $region88: #{tpu_custom_call.1} parent=1 // pred_region
      %150 = dma.done [#allocation9], 256
    $region89: #{tpu_custom_call.1} parent=1 // pred_fallthru
      _
    // Predicated region
    $region90: #{tpu_custom_call.1} parent=1 // pred_check
      _
    $region91: #{tpu_custom_call.1} parent=1 // pred_check_branch
      %152 = sbr.rel (0) target = $region93
    $region92: #{tpu_custom_call.1} parent=1 // pred_region
      %153 = dma.done [#allocation12], 16
    $region93: #{tpu_custom_call.1} parent=1 // pred_fallthru
      _
    // Predicated region
    $region94: #{tpu_custom_call.1} parent=1 // pred_check
      _
    $region95: #{tpu_custom_call.1} parent=1 // pred_check_branch
      %155 = sbr.rel (0) target = $region97
    $region96: #{tpu_custom_call.1} parent=1 // pred_region
      %156 = dma.done [#allocation12], 256
    $region97: #{tpu_custom_call.1} parent=1 // pred_fallthru
      _
    // Predicated region
    $region98: #{tpu_custom_call.1} parent=1 // pred_check
      _
    $region99: #{tpu_custom_call.1} parent=1 // pred_check_branch
      %158 = sbr.rel (0) target = $region101
    $region100: #{tpu_custom_call.1} parent=1 // pred_region
      %159 = dma.done [#allocation15], 256
    $region101: #{tpu_custom_call.1} parent=1 // pred_fallthru
      _
    %v161 = vld [vmem:[%s0] sm:$0xff]
    %v162 = vld [vmem:[%s0 + $0x8] sm:$0xff]
    %v163 = vld [vmem:[%s1] sm:$0xff]
    %v164 = vld [vmem:[%s1 + $0x8] sm:$0xff]
    %v165 = vpack.c.bf16 %v164, %v163
    %v166 = vld [vmem:[#allocation2] sm:$0x1]
    %v167 = vld [vmem:[#allocation2 + $0x1] sm:$0x1]
    %vm168 = vcmask 261120
    %v169 = vsel %vm168, %v161, 0.0
    %170 = vadd.xlane.f32.xlu0 %v169
    %v171 = vpop.xlane.xlu0 %170
    %v172 = vsel %vm168, %v162, 0.0
    %173 = vadd.xlane.f32.xlu0 %v172
    %v174 = vpop.xlane.xlu0 %173
    %v175 = vrcp.pop 32.0
    %v176 = vmul.f32 %v171, %v175
    %v177 = vmul.f32 %v174, %v175
    %v178 = vsub.f32 %v161, %v176
    %v179 = vsub.f32 %v162, %v177
    %v180 = vmul.f32 %v178, %v178
    %v181 = vmul.f32 %v179, %v179
    %v182 = vsel %vm168, %v180, 0.0
    %183 = vadd.xlane.f32.xlu0 %v182
    %v184 = vpop.xlane.xlu0 %183
    %v185 = vsel %vm168, %v181, 0.0
    %186 = vadd.xlane.f32.xlu0 %v185
    %v187 = vpop.xlane.xlu0 %186
    %v188 = vmul.f32 %v184, %v175
    %v189 = vmul.f32 %v187, %v175
    %v190 = vadd.f32 %v188, 1e-05
    %v191 = vadd.f32 %v189, 1e-05
    %v192 = vrsqrt.pop %v190
    %v193 = vrsqrt.pop %v191
    %v194 = vmul.f32 %v178, %v192
    %v195 = vmul.f32 %v179, %v193
    %v196 = vpack.c.bf16 %v195, %v194
    %v197 = vld [vmem:[%s3] sm:$0xf]
    %v198 = vld [vmem:[%s3 + $0x4] sm:$0xf]
    %v199 = vld [vmem:[%s3 + $0x8] sm:$0xf]
    %v200 = vld [vmem:[%s3 + $0xc] sm:$0xf]
    %v201 = vld [vmem:[#allocation5] sm:$0x1]
    %v203 = vlaneseq
    %v204 = vshrl.u32 %v203, 7
    %v205 = vsub.s32 0, %v204
    %v206 = vrot.slane %v201, %v205
    %v212 = vunpack.c.l.b16 %v197
    %v213 = vunpack.c.l.b16 %v198
    %v214 = vunpack.c.l.b16 %v199
    %v215 = vunpack.c.l.b16 %v200
    %v216 = vpack.c.b16 %v213, %v212
    %v217 = vpack.c.b16 %v215, %v214
    %v221 = vsel %vm168, %v196, 0
    %223 = vmatprep.subr.bf16.mxu0 0
    %224 = vmatpush1.bf16.msra.mxu0 0
    %225 = vmatprep.subr.bf16.mxu0 0
    %226 = vmatpush1.bf16.msra.mxu0 0
    %227 = vmatprep.subr.bf16.mxu0 0
    %228 = vmatpush1.bf16.msra.mxu0 0
    %229 = vmatprep.subr.bf16.mxu0 0
    %230 = vmatpush1.bf16.msra.mxu0 0
    %231 = vmatprep.subr.bf16.mxu0 0
    %232 = vmatpush1.bf16.msra.mxu0 0
    %233 = vmatprep.subr.bf16.mxu0 0
    %234 = vmatpush1.bf16.msra.mxu0 0
    %235 = vmatprep.subr.bf16.mxu0 0
    %236 = vmatpush1.bf16.msra.mxu0 %v217
    %237 = vmatprep.subr.bf16.mxu0 0
    %238 = vmatpush1.bf16.msra.mxu0 %v216
    %239 = vmatprep.subr.bf16.mxu0 0
    %240 = vmatpush2.bf16.msra.mxu0 0
    %241 = vmatprep.subr.bf16.mxu0 0
    %242 = vmatpush2.bf16.msra.mxu0 0
    %243 = vmatprep.subr.bf16.mxu0 0
    %244 = vmatpush2.bf16.msra.mxu0 0
    %245 = vmatprep.subr.bf16.mxu0 0
    %246 = vmatpush2.bf16.msra.mxu0 0
    %247 = vmatprep.subr.bf16.mxu0 0
    %248 = vmatpush2.bf16.msra.mxu0 0
    %249 = vmatprep.subr.bf16.mxu0 0
    %250 = vmatpush2.bf16.msra.mxu0 0
    %251 = vmatprep.subr.bf16.mxu0 0
    %252 = vmatpush2.bf16.msra.mxu0 0
    %253 = vmatprep.subr.bf16.mxu0 0
    %254 = vmatpush2.bf16.msra.mxu0 0
    %255 = vmatprep.mubr.bf16.mxu0 0
    %256 = vmatmul.mubr.bf16.gmra.mxu0 %v221
    %v257 = vpop.f32.mrf.mxu0
    %v258 = vadd.f32 %v206, %v257
    %v259 = vpop.f32.mrf.mxu0
    %v260 = vpop.f32.mrf.mxu0
    %v261 = vadd.f32 %v206, %v260
    %v262 = vpop.f32.mrf.mxu0
    %263 = vdwg.mxu0
    %vm264 = vcmp.gt.f32.partialorder %v258, 0.0
    %vm265 = vcmp.gt.f32.partialorder %v261, 0.0
    %v266 = vadd.f32 %v258, 1.0
    %v267 = vadd.f32 %v261, 1.0
    %v268 = vmul.f32 %v258, 1.442695
    %v269 = vpow.pop %v268
    %v270 = vmul.f32 %v261, 1.442695
    %v271 = vpow.pop %v270
    %v272 = vsel %vm264, %v266, %v269
    %v273 = vsel %vm265, %v267, %v271
    %v274 = vpack.c.bf16 %v261, %v258
    %v275 = vlaneseq
    %v276 = vshrl.u32 %v275, 7
    %v277 = vlaneseq
    %v278 = vand.u32 %v277, 127
    %vm279 = vcmp.le.s32.totalorder %v278, %v276
    %v280 = vsel %vm279, 1, 0
    %v281 = vcvt.s32.f32 %v280
    %v282 = vld [vmem:[#allocation7] sm:$0xf]
    %v283 = vld [vmem:[#allocation7 + $0x4] sm:$0xf]
    %v284 = vld [vmem:[#allocation7 + $0x8] sm:$0xf]
    %v285 = vld [vmem:[#allocation7 + $0xc] sm:$0xf]
    %287 = vrot.lane.b32.xlu0 %v274, 64
    %v288 = vpop.permute.xlu0 %287
    %v293 = vunpack.c.l.b16 %v282
    %v294 = vunpack.c.l.b16 %v283
    %v295 = vunpack.c.l.b16 %v284
    %v296 = vunpack.c.l.b16 %v285
    %v297 = vpack.c.b16 %v294, %v293
    %v298 = vpack.c.b16 %v296, %v295
    %v302 = vsel %vm168, %v288, 0
    %304 = vmatprep.subr.bf16.mxu0 0
    %305 = vmatpush1.bf16.msra.mxu0 0
    %306 = vmatprep.subr.bf16.mxu0 0
    %307 = vmatpush1.bf16.msra.mxu0 0
    %308 = vmatprep.subr.bf16.mxu0 0
    %309 = vmatpush1.bf16.msra.mxu0 0
    %310 = vmatprep.subr.bf16.mxu0 0
    %311 = vmatpush1.bf16.msra.mxu0 0
    %312 = vmatprep.subr.bf16.mxu0 0
    %313 = vmatpush1.bf16.msra.mxu0 0
    %314 = vmatprep.subr.bf16.mxu0 0
    %315 = vmatpush1.bf16.msra.mxu0 0
    %316 = vmatprep.subr.bf16.mxu0 0
    %317 = vmatpush1.bf16.msra.mxu0 %v298
    %318 = vmatprep.subr.bf16.mxu0 0
    %319 = vmatpush1.bf16.msra.mxu0 %v297
    %320 = vmatprep.subr.bf16.mxu0 0
    %321 = vmatpush2.bf16.msra.mxu0 0
    %322 = vmatprep.subr.bf16.mxu0 0
    %323 = vmatpush2.bf16.msra.mxu0 0
    %324 = vmatprep.subr.bf16.mxu0 0
    %325 = vmatpush2.bf16.msra.mxu0 0
    %326 = vmatprep.subr.bf16.mxu0 0
    %327 = vmatpush2.bf16.msra.mxu0 0
    %328 = vmatprep.subr.bf16.mxu0 0
    %329 = vmatpush2.bf16.msra.mxu0 0
    %330 = vmatprep.subr.bf16.mxu0 0
    %331 = vmatpush2.bf16.msra.mxu0 0
    %332 = vmatprep.subr.bf16.mxu0 0
    %333 = vmatpush2.bf16.msra.mxu0 0
    %334 = vmatprep.subr.bf16.mxu0 0
    %335 = vmatpush2.bf16.msra.mxu0 0
    %336 = vmatprep.mubr.bf16.mxu0 0
    %337 = vmatmul.mubr.bf16.gmra.mxu0 %v302
    %v338 = vpop.f32.mrf.mxu0
    %v339 = vadd.f32 0.0, %v338
    %v340 = vpop.f32.mrf.mxu0
    %v341 = vpop.f32.mrf.mxu0
    %v342 = vadd.f32 0.0, %v341
    %v343 = vpop.f32.mrf.mxu0
    %344 = vdwg.mxu0
    %v345 = vpack.c.bf16 %v339, %v339
    %v346 = vpack.c.bf16 %v342, %v342
    %v347 = vpack.c.bf16 %v272, %v272
    %v348 = vpack.c.bf16 %v273, %v273
    %350 = vrot.lane.b32.xlu0 %v347, 96
    %v351 = vpop.permute.xlu0 %350
    %vm352 = vcmask 64512
    %v354 = vsel %vm352, %v347, 0
    %v357 = vsel %vm352, %v351, 0
    %359 = vmatprep.subr.bf16.mxu0 0
    %360 = vmatpush1.bf16.xpose.msra.mxu0 0
    %361 = vmatprep.subr.bf16.mxu0 0
    %362 = vmatpush1.bf16.xpose.msra.mxu0 0
    %363 = vmatprep.subr.bf16.mxu0 0
    %364 = vmatpush1.bf16.xpose.msra.mxu0 0
    %365 = vmatprep.subr.bf16.mxu0 0
    %366 = vmatpush1.bf16.xpose.msra.mxu0 0
    %367 = vmatprep.subr.bf16.mxu0 0
    %368 = vmatpush1.bf16.xpose.msra.mxu0 0
    %369 = vmatprep.subr.bf16.mxu0 0
    %370 = vmatpush1.bf16.xpose.msra.mxu0 0
    %371 = vmatprep.subr.bf16.mxu0 0
    %372 = vmatpush1.bf16.xpose.msra.mxu0 0
    %373 = vmatprep.subr.bf16.mxu0 0
    %374 = vmatpush1.bf16.xpose.msra.mxu0 %v357
    %375 = vmatprep.subr.bf16.mxu0 0
    %376 = vmatpush2.bf16.xpose.msra.mxu0 0
    %377 = vmatprep.subr.bf16.mxu0 0
    %378 = vmatpush2.bf16.xpose.msra.mxu0 0
    %379 = vmatprep.subr.bf16.mxu0 0
    %380 = vmatpush2.bf16.xpose.msra.mxu0 0
    %381 = vmatprep.subr.bf16.mxu0 0
    %382 = vmatpush2.bf16.xpose.msra.mxu0 0
    %383 = vmatprep.subr.bf16.mxu0 0
    %384 = vmatpush2.bf16.xpose.msra.mxu0 0
    %385 = vmatprep.subr.bf16.mxu0 0
    %386 = vmatpush2.bf16.xpose.msra.mxu0 0
    %387 = vmatprep.subr.bf16.mxu0 0
    %388 = vmatpush2.bf16.xpose.msra.mxu0 0
    %389 = vmatprep.subr.bf16.mxu0 0
    %390 = vmatpush2.bf16.xpose.msra.mxu0 0
    %391 = vmatprep.mubr.bf16.mxu0 0
    %392 = vmatmul.mubr.bf16.gmra.mxu0 %v354
    %v393 = vpop.f32.mrf.mxu0
    %v394 = vadd.f32 0.0, %v393
    %v395 = vpop.f32.mrf.mxu0
    %v396 = vpop.f32.mrf.mxu0
    %v397 = vpop.f32.mrf.mxu0
    %398 = vdwg.mxu0
    %400 = vrot.lane.b32.xlu0 %v348, 96
    %v401 = vpop.permute.xlu0 %400
    %v403 = vsel %vm352, %v348, 0
    %v406 = vsel %vm352, %v401, 0
    %408 = vmatprep.subr.bf16.mxu0 0
    %409 = vmatpush1.bf16.xpose.msra.mxu0 0
    %410 = vmatprep.subr.bf16.mxu0 0
    %411 = vmatpush1.bf16.xpose.msra.mxu0 0
    %412 = vmatprep.subr.bf16.mxu0 0
    %413 = vmatpush1.bf16.xpose.msra.mxu0 0
    %414 = vmatprep.subr.bf16.mxu0 0
    %415 = vmatpush1.bf16.xpose.msra.mxu0 0
    %416 = vmatprep.subr.bf16.mxu0 0
    %417 = vmatpush1.bf16.xpose.msra.mxu0 0
    %418 = vmatprep.subr.bf16.mxu0 0
    %419 = vmatpush1.bf16.xpose.msra.mxu0 0
    %420 = vmatprep.subr.bf16.mxu0 0
    %421 = vmatpush1.bf16.xpose.msra.mxu0 0
    %422 = vmatprep.subr.bf16.mxu0 0
    %423 = vmatpush1.bf16.xpose.msra.mxu0 %v406
    %424 = vmatprep.subr.bf16.mxu0 0
    %425 = vmatpush2.bf16.xpose.msra.mxu0 0
    %426 = vmatprep.subr.bf16.mxu0 0
    %427 = vmatpush2.bf16.xpose.msra.mxu0 0
    %428 = vmatprep.subr.bf16.mxu0 0
    %429 = vmatpush2.bf16.xpose.msra.mxu0 0
    %430 = vmatprep.subr.bf16.mxu0 0
    %431 = vmatpush2.bf16.xpose.msra.mxu0 0
    %432 = vmatprep.subr.bf16.mxu0 0
    %433 = vmatpush2.bf16.xpose.msra.mxu0 0
    %434 = vmatprep.subr.bf16.mxu0 0
    %435 = vmatpush2.bf16.xpose.msra.mxu0 0
    %436 = vmatprep.subr.bf16.mxu0 0
    %437 = vmatpush2.bf16.xpose.msra.mxu0 0
    %438 = vmatprep.subr.bf16.mxu0 0
    %439 = vmatpush2.bf16.xpose.msra.mxu0 0
    %440 = vmatprep.mubr.bf16.mxu0 0
    %441 = vmatmul.mubr.bf16.gmra.mxu0 %v403
    %v442 = vpop.f32.mrf.mxu0
    %v443 = vadd.f32 0.0, %v442
    %v444 = vpop.f32.mrf.mxu0
    %v445 = vpop.f32.mrf.mxu0
    %v446 = vpop.f32.mrf.mxu0
    %447 = vdwg.mxu0
    %v448 = vmul.f32 %v394, %v281
    %v449 = vmul.f32 %v443, %v281
    %v450 = vpack.c.bf16 %v448, %v448
    %v451 = vpack.c.bf16 %v449, %v449
    %v452 = vunpack.c.l.bf16 %v450
    %v453 = vunpack.c.l.bf16 %v451
    %v454 = vsel %vm352, %v452, 0.0
    %455 = vadd.xlane.f32.xlu0 %v454
    %v456 = vpop.xlane.xlu0 %455
    %v457 = vsel %vm352, %v453, 0.0
    %458 = vadd.xlane.f32.xlu0 %v457
    %v459 = vpop.xlane.xlu0 %458
    %v460 = vadd.f32 %v456, 1e-06
    %v461 = vadd.f32 %v459, 1e-06
    %v463 = vsel %vm352, %v450, 0
    %vm465 = vcmask 1043456
    %v467 = vsel %vm465, %v345, 0
    %469 = vmatprep.subr.bf16.mxu0 0
    %470 = vmatpush1.bf16.msra.mxu0 0
    %471 = vmatprep.subr.bf16.mxu0 0
    %472 = vmatpush1.bf16.msra.mxu0 0
    %473 = vmatprep.subr.bf16.mxu0 0
    %474 = vmatpush1.bf16.msra.mxu0 0
    %475 = vmatprep.subr.bf16.mxu0 0
    %476 = vmatpush1.bf16.msra.mxu0 0
    %477 = vmatprep.subr.bf16.mxu0 0
    %478 = vmatpush1.bf16.msra.mxu0 0
    %479 = vmatprep.subr.bf16.mxu0 0
    %480 = vmatpush1.bf16.msra.mxu0 0
    %481 = vmatprep.subr.bf16.mxu0 0
    %482 = vmatpush1.bf16.msra.mxu0 0
    %483 = vmatprep.subr.bf16.mxu0 0
    %484 = vmatpush1.bf16.msra.mxu0 %v467
    %485 = vmatprep.subr.bf16.mxu0 0
    %486 = vmatpush2.bf16.msra.mxu0 0
    %487 = vmatprep.subr.bf16.mxu0 0
    %488 = vmatpush2.bf16.msra.mxu0 0
    %489 = vmatprep.subr.bf16.mxu0 0
    %490 = vmatpush2.bf16.msra.mxu0 0
    %491 = vmatprep.subr.bf16.mxu0 0
    %492 = vmatpush2.bf16.msra.mxu0 0
    %493 = vmatprep.subr.bf16.mxu0 0
    %494 = vmatpush2.bf16.msra.mxu0 0
    %495 = vmatprep.subr.bf16.mxu0 0
    %496 = vmatpush2.bf16.msra.mxu0 0
    %497 = vmatprep.subr.bf16.mxu0 0
    %498 = vmatpush2.bf16.msra.mxu0 0
    %499 = vmatprep.subr.bf16.mxu0 0
    %500 = vmatpush2.bf16.msra.mxu0 0
    %501 = vmatprep.mubr.bf16.mxu0 0
    %502 = vmatmul.mubr.bf16.gmra.mxu0 %v463
    %v503 = vpop.f32.mrf.mxu0
    %v504 = vadd.f32 0.0, %v503
    %v505 = vpop.f32.mrf.mxu0
    %v506 = vpop.f32.mrf.mxu0
    %v507 = vpop.f32.mrf.mxu0
    %508 = vdwg.mxu0
    %v510 = vsel %vm352, %v451, 0
    %v513 = vsel %vm465, %v346, 0
    %515 = vmatprep.subr.bf16.mxu0 0
    %516 = vmatpush1.bf16.msra.mxu0 0
    %517 = vmatprep.subr.bf16.mxu0 0
    %518 = vmatpush1.bf16.msra.mxu0 0
    %519 = vmatprep.subr.bf16.mxu0 0
    %520 = vmatpush1.bf16.msra.mxu0 0
    %521 = vmatprep.subr.bf16.mxu0 0
    %522 = vmatpush1.bf16.msra.mxu0 0
    %523 = vmatprep.subr.bf16.mxu0 0
    %524 = vmatpush1.bf16.msra.mxu0 0
    %525 = vmatprep.subr.bf16.mxu0 0
    %526 = vmatpush1.bf16.msra.mxu0 0
    %527 = vmatprep.subr.bf16.mxu0 0
    %528 = vmatpush1.bf16.msra.mxu0 0
    %529 = vmatprep.subr.bf16.mxu0 0
    %530 = vmatpush1.bf16.msra.mxu0 %v513
    %531 = vmatprep.subr.bf16.mxu0 0
    %532 = vmatpush2.bf16.msra.mxu0 0
    %533 = vmatprep.subr.bf16.mxu0 0
    %534 = vmatpush2.bf16.msra.mxu0 0
    %535 = vmatprep.subr.bf16.mxu0 0
    %536 = vmatpush2.bf16.msra.mxu0 0
    %537 = vmatprep.subr.bf16.mxu0 0
    %538 = vmatpush2.bf16.msra.mxu0 0
    %539 = vmatprep.subr.bf16.mxu0 0
    %540 = vmatpush2.bf16.msra.mxu0 0
    %541 = vmatprep.subr.bf16.mxu0 0
    %542 = vmatpush2.bf16.msra.mxu0 0
    %543 = vmatprep.subr.bf16.mxu0 0
    %544 = vmatpush2.bf16.msra.mxu0 0
    %545 = vmatprep.subr.bf16.mxu0 0
    %546 = vmatpush2.bf16.msra.mxu0 0
    %547 = vmatprep.mubr.bf16.mxu0 0
    %548 = vmatmul.mubr.bf16.gmra.mxu0 %v510
    %v549 = vpop.f32.mrf.mxu0
    %v550 = vadd.f32 0.0, %v549
    %v551 = vpop.f32.mrf.mxu0
    %v552 = vpop.f32.mrf.mxu0
    %v553 = vpop.f32.mrf.mxu0
    %554 = vdwg.mxu0
    %v555 = vrcp.pop %v460
    %v556 = vrcp.pop %v461
    %v557 = vmul.f32 %v504, %v555
    %v558 = vmul.f32 %v550, %v556
    %v559 = vadd.f32 %v557, 0.0
    %v560 = vadd.f32 %v558, 0.0
    %561 = vrot.lane.b32.xlu0 %v347, 120
    %v562 = vpop.permute.xlu0 %561
    %563 = vrot.lane.b32.xlu0 %v347, 88
    %v564 = vpop.permute.xlu0 %563
    %v566 = vsel %vm352, %v562, 0
    %v569 = vsel %vm352, %v564, 0
    %571 = vmatprep.subr.bf16.mxu0 0
    %572 = vmatpush1.bf16.xpose.msra.mxu0 0
    %573 = vmatprep.subr.bf16.mxu0 0
    %574 = vmatpush1.bf16.xpose.msra.mxu0 0
    %575 = vmatprep.subr.bf16.mxu0 0
    %576 = vmatpush1.bf16.xpose.msra.mxu0 0
    %577 = vmatprep.subr.bf16.mxu0 0
    %578 = vmatpush1.bf16.xpose.msra.mxu0 0
    %579 = vmatprep.subr.bf16.mxu0 0
    %580 = vmatpush1.bf16.xpose.msra.mxu0 0
    %581 = vmatprep.subr.bf16.mxu0 0
    %582 = vmatpush1.bf16.xpose.msra.mxu0 0
    %583 = vmatprep.subr.bf16.mxu0 0
    %584 = vmatpush1.bf16.xpose.msra.mxu0 0
    %585 = vmatprep.subr.bf16.mxu0 0
    %586 = vmatpush1.bf16.xpose.msra.mxu0 %v569
    %587 = vmatprep.subr.bf16.mxu0 0
    %588 = vmatpush2.bf16.xpose.msra.mxu0 0
    %589 = vmatprep.subr.bf16.mxu0 0
    %590 = vmatpush2.bf16.xpose.msra.mxu0 0
    %591 = vmatprep.subr.bf16.mxu0 0
    %592 = vmatpush2.bf16.xpose.msra.mxu0 0
    %593 = vmatprep.subr.bf16.mxu0 0
    %594 = vmatpush2.bf16.xpose.msra.mxu0 0
    %595 = vmatprep.subr.bf16.mxu0 0
    %596 = vmatpush2.bf16.xpose.msra.mxu0 0
    %597 = vmatprep.subr.bf16.mxu0 0
    %598 = vmatpush2.bf16.xpose.msra.mxu0 0
    %599 = vmatprep.subr.bf16.mxu0 0
    %600 = vmatpush2.bf16.xpose.msra.mxu0 0
    %601 = vmatprep.subr.bf16.mxu0 0
    %602 = vmatpush2.bf16.xpose.msra.mxu0 0
    %603 = vmatprep.mubr.bf16.mxu0 0
    %604 = vmatmul.mubr.bf16.gmra.mxu0 %v566
    %v605 = vpop.f32.mrf.mxu0
    %v606 = vadd.f32 0.0, %v605
    %v607 = vpop.f32.mrf.mxu0
    %v608 = vpop.f32.mrf.mxu0
    %v609 = vpop.f32.mrf.mxu0
    %610 = vdwg.mxu0
    %611 = vrot.lane.b32.xlu0 %v348, 120
    %v612 = vpop.permute.xlu0 %611
    %613 = vrot.lane.b32.xlu0 %v348, 88
    %v614 = vpop.permute.xlu0 %613
    %v616 = vsel %vm352, %v612, 0
    %v619 = vsel %vm352, %v614, 0
    %621 = vmatprep.subr.bf16.mxu0 0
    %622 = vmatpush1.bf16.xpose.msra.mxu0 0
    %623 = vmatprep.subr.bf16.mxu0 0
    %624 = vmatpush1.bf16.xpose.msra.mxu0 0
    %625 = vmatprep.subr.bf16.mxu0 0
    %626 = vmatpush1.bf16.xpose.msra.mxu0 0
    %627 = vmatprep.subr.bf16.mxu0 0
    %628 = vmatpush1.bf16.xpose.msra.mxu0 0
    %629 = vmatprep.subr.bf16.mxu0 0
    %630 = vmatpush1.bf16.xpose.msra.mxu0 0
    %631 = vmatprep.subr.bf16.mxu0 0
    %632 = vmatpush1.bf16.xpose.msra.mxu0 0
    %633 = vmatprep.subr.bf16.mxu0 0
    %634 = vmatpush1.bf16.xpose.msra.mxu0 0
    %635 = vmatprep.subr.bf16.mxu0 0
    %636 = vmatpush1.bf16.xpose.msra.mxu0 %v619
    %637 = vmatprep.subr.bf16.mxu0 0
    %638 = vmatpush2.bf16.xpose.msra.mxu0 0
    %639 = vmatprep.subr.bf16.mxu0 0
    %640 = vmatpush2.bf16.xpose.msra.mxu0 0
    %641 = vmatprep.subr.bf16.mxu0 0
    %642 = vmatpush2.bf16.xpose.msra.mxu0 0
    %643 = vmatprep.subr.bf16.mxu0 0
    %644 = vmatpush2.bf16.xpose.msra.mxu0 0
    %645 = vmatprep.subr.bf16.mxu0 0
    %646 = vmatpush2.bf16.xpose.msra.mxu0 0
    %647 = vmatprep.subr.bf16.mxu0 0
    %648 = vmatpush2.bf16.xpose.msra.mxu0 0
    %649 = vmatprep.subr.bf16.mxu0 0
    %650 = vmatpush2.bf16.xpose.msra.mxu0 0
    %651 = vmatprep.subr.bf16.mxu0 0
    %652 = vmatpush2.bf16.xpose.msra.mxu0 0
    %653 = vmatprep.mubr.bf16.mxu0 0
    %654 = vmatmul.mubr.bf16.gmra.mxu0 %v616
    %v655 = vpop.f32.mrf.mxu0
    %v656 = vadd.f32 0.0, %v655
    %v657 = vpop.f32.mrf.mxu0
    %v658 = vpop.f32.mrf.mxu0
    %v659 = vpop.f32.mrf.mxu0
    %660 = vdwg.mxu0
    %v661 = vmul.f32 %v606, %v281
    %v662 = vmul.f32 %v656, %v281
    %v663 = vpack.c.bf16 %v661, %v661
    %v664 = vpack.c.bf16 %v662, %v662
    %v665 = vunpack.c.l.bf16 %v663
    %v666 = vunpack.c.l.bf16 %v664
    %v667 = vsel %vm352, %v665, 0.0
    %668 = vadd.xlane.f32.xlu0 %v667
    %v669 = vpop.xlane.xlu0 %668
    %v670 = vsel %vm352, %v666, 0.0
    %671 = vadd.xlane.f32.xlu0 %v670
    %v672 = vpop.xlane.xlu0 %671
    %v673 = vadd.f32 %v669, 1e-06
    %v674 = vadd.f32 %v672, 1e-06
    %676 = vrot.lane.b32.xlu0 %v345, 96
    %v677 = vpop.permute.xlu0 %676
    %v679 = vsel %vm352, %v663, 0
    %v682 = vsel %vm465, %v677, 0
    %684 = vmatprep.subr.bf16.mxu0 0
    %685 = vmatpush1.bf16.msra.mxu0 0
    %686 = vmatprep.subr.bf16.mxu0 0
    %687 = vmatpush1.bf16.msra.mxu0 0
    %688 = vmatprep.subr.bf16.mxu0 0
    %689 = vmatpush1.bf16.msra.mxu0 0
    %690 = vmatprep.subr.bf16.mxu0 0
    %691 = vmatpush1.bf16.msra.mxu0 0
    %692 = vmatprep.subr.bf16.mxu0 0
    %693 = vmatpush1.bf16.msra.mxu0 0
    %694 = vmatprep.subr.bf16.mxu0 0
    %695 = vmatpush1.bf16.msra.mxu0 0
    %696 = vmatprep.subr.bf16.mxu0 0
    %697 = vmatpush1.bf16.msra.mxu0 0
    %698 = vmatprep.subr.bf16.mxu0 0
    %699 = vmatpush1.bf16.msra.mxu0 %v682
    %700 = vmatprep.subr.bf16.mxu0 0
    %701 = vmatpush2.bf16.msra.mxu0 0
    %702 = vmatprep.subr.bf16.mxu0 0
    %703 = vmatpush2.bf16.msra.mxu0 0
    %704 = vmatprep.subr.bf16.mxu0 0
    %705 = vmatpush2.bf16.msra.mxu0 0
    %706 = vmatprep.subr.bf16.mxu0 0
    %707 = vmatpush2.bf16.msra.mxu0 0
    %708 = vmatprep.subr.bf16.mxu0 0
    %709 = vmatpush2.bf16.msra.mxu0 0
    %710 = vmatprep.subr.bf16.mxu0 0
    %711 = vmatpush2.bf16.msra.mxu0 0
    %712 = vmatprep.subr.bf16.mxu0 0
    %713 = vmatpush2.bf16.msra.mxu0 0
    %714 = vmatprep.subr.bf16.mxu0 0
    %715 = vmatpush2.bf16.msra.mxu0 0
    %716 = vmatprep.mubr.bf16.mxu0 0
    %717 = vmatmul.mubr.bf16.gmra.mxu0 %v679
    %v718 = vpop.f32.mrf.mxu0
    %v719 = vadd.f32 0.0, %v718
    %v720 = vpop.f32.mrf.mxu0
    %v721 = vpop.f32.mrf.mxu0
    %v722 = vpop.f32.mrf.mxu0
    %723 = vdwg.mxu0
    %725 = vrot.lane.b32.xlu0 %v346, 96
    %v726 = vpop.permute.xlu0 %725
    %v728 = vsel %vm352, %v664, 0
    %v731 = vsel %vm465, %v726, 0
    %733 = vmatprep.subr.bf16.mxu0 0
    %734 = vmatpush1.bf16.msra.mxu0 0
    %735 = vmatprep.subr.bf16.mxu0 0
    %736 = vmatpush1.bf16.msra.mxu0 0
    %737 = vmatprep.subr.bf16.mxu0 0
    %738 = vmatpush1.bf16.msra.mxu0 0
    %739 = vmatprep.subr.bf16.mxu0 0
    %740 = vmatpush1.bf16.msra.mxu0 0
    %741 = vmatprep.subr.bf16.mxu0 0
    %742 = vmatpush1.bf16.msra.mxu0 0
    %743 = vmatprep.subr.bf16.mxu0 0
    %744 = vmatpush1.bf16.msra.mxu0 0
    %745 = vmatprep.subr.bf16.mxu0 0
    %746 = vmatpush1.bf16.msra.mxu0 0
    %747 = vmatprep.subr.bf16.mxu0 0
    %748 = vmatpush1.bf16.msra.mxu0 %v731
    %749 = vmatprep.subr.bf16.mxu0 0
    %750 = vmatpush2.bf16.msra.mxu0 0
    %751 = vmatprep.subr.bf16.mxu0 0
    %752 = vmatpush2.bf16.msra.mxu0 0
    %753 = vmatprep.subr.bf16.mxu0 0
    %754 = vmatpush2.bf16.msra.mxu0 0
    %755 = vmatprep.subr.bf16.mxu0 0
    %756 = vmatpush2.bf16.msra.mxu0 0
    %757 = vmatprep.subr.bf16.mxu0 0
    %758 = vmatpush2.bf16.msra.mxu0 0
    %759 = vmatprep.subr.bf16.mxu0 0
    %760 = vmatpush2.bf16.msra.mxu0 0
    %761 = vmatprep.subr.bf16.mxu0 0
    %762 = vmatpush2.bf16.msra.mxu0 0
    %763 = vmatprep.subr.bf16.mxu0 0
    %764 = vmatpush2.bf16.msra.mxu0 0
    %765 = vmatprep.mubr.bf16.mxu0 0
    %766 = vmatmul.mubr.bf16.gmra.mxu0 %v728
    %v767 = vpop.f32.mrf.mxu0
    %v768 = vadd.f32 0.0, %v767
    %v769 = vpop.f32.mrf.mxu0
    %v770 = vpop.f32.mrf.mxu0
    %v771 = vpop.f32.mrf.mxu0
    %772 = vdwg.mxu0
    %v773 = vrcp.pop %v673
    %v774 = vrcp.pop %v674
    %v775 = vmul.f32 %v719, %v773
    %v776 = vmul.f32 %v768, %v774
    %v777 = vadd.f32 %v559, %v775
    %v778 = vadd.f32 %v560, %v776
    %779 = vrot.lane.b32.xlu0 %v347, 112
    %v780 = vpop.permute.xlu0 %779
    %781 = vrot.lane.b32.xlu0 %v347, 80
    %v782 = vpop.permute.xlu0 %781
    %v784 = vsel %vm352, %v780, 0
    %v787 = vsel %vm352, %v782, 0
    %789 = vmatprep.subr.bf16.mxu0 0
    %790 = vmatpush1.bf16.xpose.msra.mxu0 0
    %791 = vmatprep.subr.bf16.mxu0 0
    %792 = vmatpush1.bf16.xpose.msra.mxu0 0
    %793 = vmatprep.subr.bf16.mxu0 0
    %794 = vmatpush1.bf16.xpose.msra.mxu0 0
    %795 = vmatprep.subr.bf16.mxu0 0
    %796 = vmatpush1.bf16.xpose.msra.mxu0 0
    %797 = vmatprep.subr.bf16.mxu0 0
    %798 = vmatpush1.bf16.xpose.msra.mxu0 0
    %799 = vmatprep.subr.bf16.mxu0 0
    %800 = vmatpush1.bf16.xpose.msra.mxu0 0
    %801 = vmatprep.subr.bf16.mxu0 0
    %802 = vmatpush1.bf16.xpose.msra.mxu0 0
    %803 = vmatprep.subr.bf16.mxu0 0
    %804 = vmatpush1.bf16.xpose.msra.mxu0 %v787
    %805 = vmatprep.subr.bf16.mxu0 0
    %806 = vmatpush2.bf16.xpose.msra.mxu0 0
    %807 = vmatprep.subr.bf16.mxu0 0
    %808 = vmatpush2.bf16.xpose.msra.mxu0 0
    %809 = vmatprep.subr.bf16.mxu0 0
    %810 = vmatpush2.bf16.xpose.msra.mxu0 0
    %811 = vmatprep.subr.bf16.mxu0 0
    %812 = vmatpush2.bf16.xpose.msra.mxu0 0
    %813 = vmatprep.subr.bf16.mxu0 0
    %814 = vmatpush2.bf16.xpose.msra.mxu0 0
    %815 = vmatprep.subr.bf16.mxu0 0
    %816 = vmatpush2.bf16.xpose.msra.mxu0 0
    %817 = vmatprep.subr.bf16.mxu0 0
    %818 = vmatpush2.bf16.xpose.msra.mxu0 0
    %819 = vmatprep.subr.bf16.mxu0 0
    %820 = vmatpush2.bf16.xpose.msra.mxu0 0
    %821 = vmatprep.mubr.bf16.mxu0 0
    %822 = vmatmul.mubr.bf16.gmra.mxu0 %v784
    %v823 = vpop.f32.mrf.mxu0
    %v824 = vadd.f32 0.0, %v823
    %v825 = vpop.f32.mrf.mxu0
    %v826 = vpop.f32.mrf.mxu0
    %v827 = vpop.f32.mrf.mxu0
    %828 = vdwg.mxu0
    %829 = vrot.lane.b32.xlu0 %v348, 112
    %v830 = vpop.permute.xlu0 %829
    %831 = vrot.lane.b32.xlu0 %v348, 80
    %v832 = vpop.permute.xlu0 %831
    %v834 = vsel %vm352, %v830, 0
    %v837 = vsel %vm352, %v832, 0
    %839 = vmatprep.subr.bf16.mxu0 0
    %840 = vmatpush1.bf16.xpose.msra.mxu0 0
    %841 = vmatprep.subr.bf16.mxu0 0
    %842 = vmatpush1.bf16.xpose.msra.mxu0 0
    %843 = vmatprep.subr.bf16.mxu0 0
    %844 = vmatpush1.bf16.xpose.msra.mxu0 0
    %845 = vmatprep.subr.bf16.mxu0 0
    %846 = vmatpush1.bf16.xpose.msra.mxu0 0
    %847 = vmatprep.subr.bf16.mxu0 0
    %848 = vmatpush1.bf16.xpose.msra.mxu0 0
    %849 = vmatprep.subr.bf16.mxu0 0
    %850 = vmatpush1.bf16.xpose.msra.mxu0 0
    %851 = vmatprep.subr.bf16.mxu0 0
    %852 = vmatpush1.bf16.xpose.msra.mxu0 0
    %853 = vmatprep.subr.bf16.mxu0 0
    %854 = vmatpush1.bf16.xpose.msra.mxu0 %v837
    %855 = vmatprep.subr.bf16.mxu0 0
    %856 = vmatpush2.bf16.xpose.msra.mxu0 0
    %857 = vmatprep.subr.bf16.mxu0 0
    %858 = vmatpush2.bf16.xpose.msra.mxu0 0
    %859 = vmatprep.subr.bf16.mxu0 0
    %860 = vmatpush2.bf16.xpose.msra.mxu0 0
    %861 = vmatprep.subr.bf16.mxu0 0
    %862 = vmatpush2.bf16.xpose.msra.mxu0 0
    %863 = vmatprep.subr.bf16.mxu0 0
    %864 = vmatpush2.bf16.xpose.msra.mxu0 0
    %865 = vmatprep.subr.bf16.mxu0 0
    %866 = vmatpush2.bf16.xpose.msra.mxu0 0
    %867 = vmatprep.subr.bf16.mxu0 0
    %868 = vmatpush2.bf16.xpose.msra.mxu0 0
    %869 = vmatprep.subr.bf16.mxu0 0
    %870 = vmatpush2.bf16.xpose.msra.mxu0 0
    %871 = vmatprep.mubr.bf16.mxu0 0
    %872 = vmatmul.mubr.bf16.gmra.mxu0 %v834
    %v873 = vpop.f32.mrf.mxu0
    %v874 = vadd.f32 0.0, %v873
    %v875 = vpop.f32.mrf.mxu0
    %v876 = vpop.f32.mrf.mxu0
    %v877 = vpop.f32.mrf.mxu0
    %878 = vdwg.mxu0
    %v879 = vmul.f32 %v824, %v281
    %v880 = vmul.f32 %v874, %v281
    %v881 = vpack.c.bf16 %v879, %v879
    %v882 = vpack.c.bf16 %v880, %v880
    %v883 = vunpack.c.l.bf16 %v881
    %v884 = vunpack.c.l.bf16 %v882
    %v885 = vsel %vm352, %v883, 0.0
    %886 = vadd.xlane.f32.xlu0 %v885
    %v887 = vpop.xlane.xlu0 %886
    %v888 = vsel %vm352, %v884, 0.0
    %889 = vadd.xlane.f32.xlu0 %v888
    %v890 = vpop.xlane.xlu0 %889
    %v891 = vadd.f32 %v887, 1e-06
    %v892 = vadd.f32 %v890, 1e-06
    %893 = vrot.lane.b32.xlu0 %v345, 64
    %v894 = vpop.permute.xlu0 %893
    %v896 = vsel %vm352, %v881, 0
    %v899 = vsel %vm465, %v894, 0
    %901 = vmatprep.subr.bf16.mxu0 0
    %902 = vmatpush1.bf16.msra.mxu0 0
    %903 = vmatprep.subr.bf16.mxu0 0
    %904 = vmatpush1.bf16.msra.mxu0 0
    %905 = vmatprep.subr.bf16.mxu0 0
    %906 = vmatpush1.bf16.msra.mxu0 0
    %907 = vmatprep.subr.bf16.mxu0 0
    %908 = vmatpush1.bf16.msra.mxu0 0
    %909 = vmatprep.subr.bf16.mxu0 0
    %910 = vmatpush1.bf16.msra.mxu0 0
    %911 = vmatprep.subr.bf16.mxu0 0
    %912 = vmatpush1.bf16.msra.mxu0 0
    %913 = vmatprep.subr.bf16.mxu0 0
    %914 = vmatpush1.bf16.msra.mxu0 0
    %915 = vmatprep.subr.bf16.mxu0 0
    %916 = vmatpush1.bf16.msra.mxu0 %v899
    %917 = vmatprep.subr.bf16.mxu0 0
    %918 = vmatpush2.bf16.msra.mxu0 0
    %919 = vmatprep.subr.bf16.mxu0 0
    %920 = vmatpush2.bf16.msra.mxu0 0
    %921 = vmatprep.subr.bf16.mxu0 0
    %922 = vmatpush2.bf16.msra.mxu0 0
    %923 = vmatprep.subr.bf16.mxu0 0
    %924 = vmatpush2.bf16.msra.mxu0 0
    %925 = vmatprep.subr.bf16.mxu0 0
    %926 = vmatpush2.bf16.msra.mxu0 0
    %927 = vmatprep.subr.bf16.mxu0 0
    %928 = vmatpush2.bf16.msra.mxu0 0
    %929 = vmatprep.subr.bf16.mxu0 0
    %930 = vmatpush2.bf16.msra.mxu0 0
    %931 = vmatprep.subr.bf16.mxu0 0
    %932 = vmatpush2.bf16.msra.mxu0 0
    %933 = vmatprep.mubr.bf16.mxu0 0
    %934 = vmatmul.mubr.bf16.gmra.mxu0 %v896
    %v935 = vpop.f32.mrf.mxu0
    %v936 = vadd.f32 0.0, %v935
    %v937 = vpop.f32.mrf.mxu0
    %v938 = vpop.f32.mrf.mxu0
    %v939 = vpop.f32.mrf.mxu0
    %940 = vdwg.mxu0
    %941 = vrot.lane.b32.xlu0 %v346, 64
    %v942 = vpop.permute.xlu0 %941
    %v944 = vsel %vm352, %v882, 0
    %v947 = vsel %vm465, %v942, 0
    %949 = vmatprep.subr.bf16.mxu0 0
    %950 = vmatpush1.bf16.msra.mxu0 0
    %951 = vmatprep.subr.bf16.mxu0 0
    %952 = vmatpush1.bf16.msra.mxu0 0
    %953 = vmatprep.subr.bf16.mxu0 0
    %954 = vmatpush1.bf16.msra.mxu0 0
    %955 = vmatprep.subr.bf16.mxu0 0
    %956 = vmatpush1.bf16.msra.mxu0 0
    %957 = vmatprep.subr.bf16.mxu0 0
    %958 = vmatpush1.bf16.msra.mxu0 0
    %959 = vmatprep.subr.bf16.mxu0 0
    %960 = vmatpush1.bf16.msra.mxu0 0
    %961 = vmatprep.subr.bf16.mxu0 0
    %962 = vmatpush1.bf16.msra.mxu0 0
    %963 = vmatprep.subr.bf16.mxu0 0
    %964 = vmatpush1.bf16.msra.mxu0 %v947
    %965 = vmatprep.subr.bf16.mxu0 0
    %966 = vmatpush2.bf16.msra.mxu0 0
    %967 = vmatprep.subr.bf16.mxu0 0
    %968 = vmatpush2.bf16.msra.mxu0 0
    %969 = vmatprep.subr.bf16.mxu0 0
    %970 = vmatpush2.bf16.msra.mxu0 0
    %971 = vmatprep.subr.bf16.mxu0 0
    %972 = vmatpush2.bf16.msra.mxu0 0
    %973 = vmatprep.subr.bf16.mxu0 0
    %974 = vmatpush2.bf16.msra.mxu0 0
    %975 = vmatprep.subr.bf16.mxu0 0
    %976 = vmatpush2.bf16.msra.mxu0 0
    %977 = vmatprep.subr.bf16.mxu0 0
    %978 = vmatpush2.bf16.msra.mxu0 0
    %979 = vmatprep.subr.bf16.mxu0 0
    %980 = vmatpush2.bf16.msra.mxu0 0
    %981 = vmatprep.mubr.bf16.mxu0 0
    %982 = vmatmul.mubr.bf16.gmra.mxu0 %v944
    %v983 = vpop.f32.mrf.mxu0
    %v984 = vadd.f32 0.0, %v983
    %v985 = vpop.f32.mrf.mxu0
    %v986 = vpop.f32.mrf.mxu0
    %v987 = vpop.f32.mrf.mxu0
    %988 = vdwg.mxu0
    %v989 = vrcp.pop %v891
    %v990 = vrcp.pop %v892
    %v991 = vmul.f32 %v936, %v989
    %v992 = vmul.f32 %v984, %v990
    %v993 = vadd.f32 %v777, %v991
    %v994 = vadd.f32 %v778, %v992
    %995 = vrot.lane.b32.xlu0 %v347, 104
    %v996 = vpop.permute.xlu0 %995
    %997 = vrot.lane.b32.xlu0 %v347, 72
    %v998 = vpop.permute.xlu0 %997
    %v1000 = vsel %vm352, %v996, 0
    %v1003 = vsel %vm352, %v998, 0
    %1005 = vmatprep.subr.bf16.mxu0 0
    %1006 = vmatpush1.bf16.xpose.msra.mxu0 0
    %1007 = vmatprep.subr.bf16.mxu0 0
    %1008 = vmatpush1.bf16.xpose.msra.mxu0 0
    %1009 = vmatprep.subr.bf16.mxu0 0
    %1010 = vmatpush1.bf16.xpose.msra.mxu0 0
    %1011 = vmatprep.subr.bf16.mxu0 0
    %1012 = vmatpush1.bf16.xpose.msra.mxu0 0
    %1013 = vmatprep.subr.bf16.mxu0 0
    %1014 = vmatpush1.bf16.xpose.msra.mxu0 0
    %1015 = vmatprep.subr.bf16.mxu0 0
    %1016 = vmatpush1.bf16.xpose.msra.mxu0 0
    %1017 = vmatprep.subr.bf16.mxu0 0
    %1018 = vmatpush1.bf16.xpose.msra.mxu0 0
    %1019 = vmatprep.subr.bf16.mxu0 0
    %1020 = vmatpush1.bf16.xpose.msra.mxu0 %v1003
    %1021 = vmatprep.subr.bf16.mxu0 0
    %1022 = vmatpush2.bf16.xpose.msra.mxu0 0
    %1023 = vmatprep.subr.bf16.mxu0 0
    %1024 = vmatpush2.bf16.xpose.msra.mxu0 0
    %1025 = vmatprep.subr.bf16.mxu0 0
    %1026 = vmatpush2.bf16.xpose.msra.mxu0 0
    %1027 = vmatprep.subr.bf16.mxu0 0
    %1028 = vmatpush2.bf16.xpose.msra.mxu0 0
    %1029 = vmatprep.subr.bf16.mxu0 0
    %1030 = vmatpush2.bf16.xpose.msra.mxu0 0
    %1031 = vmatprep.subr.bf16.mxu0 0
    %1032 = vmatpush2.bf16.xpose.msra.mxu0 0
    %1033 = vmatprep.subr.bf16.mxu0 0
    %1034 = vmatpush2.bf16.xpose.msra.mxu0 0
    %1035 = vmatprep.subr.bf16.mxu0 0
    %1036 = vmatpush2.bf16.xpose.msra.mxu0 0
    %1037 = vmatprep.mubr.bf16.mxu0 0
    %1038 = vmatmul.mubr.bf16.gmra.mxu0 %v1000
    %v1039 = vpop.f32.mrf.mxu0
    %v1040 = vadd.f32 0.0, %v1039
    %v1041 = vpop.f32.mrf.mxu0
    %v1042 = vpop.f32.mrf.mxu0
    %v1043 = vpop.f32.mrf.mxu0
    %1044 = vdwg.mxu0
    %1045 = vrot.lane.b32.xlu0 %v348, 104
    %v1046 = vpop.permute.xlu0 %1045
    %1047 = vrot.lane.b32.xlu0 %v348, 72
    %v1048 = vpop.permute.xlu0 %1047
    %v1050 = vsel %vm352, %v1046, 0
    %v1053 = vsel %vm352, %v1048, 0
    %1055 = vmatprep.subr.bf16.mxu0 0
    %1056 = vmatpush1.bf16.xpose.msra.mxu0 0
    %1057 = vmatprep.subr.bf16.mxu0 0
    %1058 = vmatpush1.bf16.xpose.msra.mxu0 0
    %1059 = vmatprep.subr.bf16.mxu0 0
    %1060 = vmatpush1.bf16.xpose.msra.mxu0 0
    %1061 = vmatprep.subr.bf16.mxu0 0
    %1062 = vmatpush1.bf16.xpose.msra.mxu0 0
    %1063 = vmatprep.subr.bf16.mxu0 0
    %1064 = vmatpush1.bf16.xpose.msra.mxu0 0
    %1065 = vmatprep.subr.bf16.mxu0 0
    %1066 = vmatpush1.bf16.xpose.msra.mxu0 0
    %1067 = vmatprep.subr.bf16.mxu0 0
    %1068 = vmatpush1.bf16.xpose.msra.mxu0 0
    %1069 = vmatprep.subr.bf16.mxu0 0
    %1070 = vmatpush1.bf16.xpose.msra.mxu0 %v1053
    %1071 = vmatprep.subr.bf16.mxu0 0
    %1072 = vmatpush2.bf16.xpose.msra.mxu0 0
    %1073 = vmatprep.subr.bf16.mxu0 0
    %1074 = vmatpush2.bf16.xpose.msra.mxu0 0
    %1075 = vmatprep.subr.bf16.mxu0 0
    %1076 = vmatpush2.bf16.xpose.msra.mxu0 0
    %1077 = vmatprep.subr.bf16.mxu0 0
    %1078 = vmatpush2.bf16.xpose.msra.mxu0 0
    %1079 = vmatprep.subr.bf16.mxu0 0
    %1080 = vmatpush2.bf16.xpose.msra.mxu0 0
    %1081 = vmatprep.subr.bf16.mxu0 0
    %1082 = vmatpush2.bf16.xpose.msra.mxu0 0
    %1083 = vmatprep.subr.bf16.mxu0 0
    %1084 = vmatpush2.bf16.xpose.msra.mxu0 0
    %1085 = vmatprep.subr.bf16.mxu0 0
    %1086 = vmatpush2.bf16.xpose.msra.mxu0 0
    %1087 = vmatprep.mubr.bf16.mxu0 0
    %1088 = vmatmul.mubr.bf16.gmra.mxu0 %v1050
    %v1089 = vpop.f32.mrf.mxu0
    %v1090 = vadd.f32 0.0, %v1089
    %v1091 = vpop.f32.mrf.mxu0
    %v1092 = vpop.f32.mrf.mxu0
    %v1093 = vpop.f32.mrf.mxu0
    %1094 = vdwg.mxu0
    %v1095 = vmul.f32 %v1040, %v281
    %v1096 = vmul.f32 %v1090, %v281
    %v1097 = vpack.c.bf16 %v1095, %v1095
    %v1098 = vpack.c.bf16 %v1096, %v1096
    %v1099 = vunpack.c.l.bf16 %v1097
    %v1100 = vunpack.c.l.bf16 %v1098
    %v1101 = vsel %vm352, %v1099, 0.0
    %1102 = vadd.xlane.f32.xlu0 %v1101
    %v1103 = vpop.xlane.xlu0 %1102
    %v1104 = vsel %vm352, %v1100, 0.0
    %1105 = vadd.xlane.f32.xlu0 %v1104
    %v1106 = vpop.xlane.xlu0 %1105
    %v1107 = vadd.f32 %v1103, 1e-06
    %v1108 = vadd.f32 %v1106, 1e-06
    %1109 = vrot.lane.b32.xlu0 %v345, 32
    %v1110 = vpop.permute.xlu0 %1109
    %v1112 = vsel %vm352, %v1097, 0
    %v1115 = vsel %vm465, %v1110, 0
    %1117 = vmatprep.subr.bf16.mxu0 0
    %1118 = vmatpush1.bf16.msra.mxu0 0
    %1119 = vmatprep.subr.bf16.mxu0 0
    %1120 = vmatpush1.bf16.msra.mxu0 0
    %1121 = vmatprep.subr.bf16.mxu0 0
    %1122 = vmatpush1.bf16.msra.mxu0 0
    %1123 = vmatprep.subr.bf16.mxu0 0
    %1124 = vmatpush1.bf16.msra.mxu0 0
    %1125 = vmatprep.subr.bf16.mxu0 0
    %1126 = vmatpush1.bf16.msra.mxu0 0
    %1127 = vmatprep.subr.bf16.mxu0 0
    %1128 = vmatpush1.bf16.msra.mxu0 0
    %1129 = vmatprep.subr.bf16.mxu0 0
    %1130 = vmatpush1.bf16.msra.mxu0 0
    %1131 = vmatprep.subr.bf16.mxu0 0
    %1132 = vmatpush1.bf16.msra.mxu0 %v1115
    %1133 = vmatprep.subr.bf16.mxu0 0
    %1134 = vmatpush2.bf16.msra.mxu0 0
    %1135 = vmatprep.subr.bf16.mxu0 0
    %1136 = vmatpush2.bf16.msra.mxu0 0
    %1137 = vmatprep.subr.bf16.mxu0 0
    %1138 = vmatpush2.bf16.msra.mxu0 0
    %1139 = vmatprep.subr.bf16.mxu0 0
    %1140 = vmatpush2.bf16.msra.mxu0 0
    %1141 = vmatprep.subr.bf16.mxu0 0
    %1142 = vmatpush2.bf16.msra.mxu0 0
    %1143 = vmatprep.subr.bf16.mxu0 0
    %1144 = vmatpush2.bf16.msra.mxu0 0
    %1145 = vmatprep.subr.bf16.mxu0 0
    %1146 = vmatpush2.bf16.msra.mxu0 0
    %1147 = vmatprep.subr.bf16.mxu0 0
    %1148 = vmatpush2.bf16.msra.mxu0 0
    %1149 = vmatprep.mubr.bf16.mxu0 0
    %1150 = vmatmul.mubr.bf16.gmra.mxu0 %v1112
    %v1151 = vpop.f32.mrf.mxu0
    %v1152 = vadd.f32 0.0, %v1151
    %v1153 = vpop.f32.mrf.mxu0
    %v1154 = vpop.f32.mrf.mxu0
    %v1155 = vpop.f32.mrf.mxu0
    %1156 = vdwg.mxu0
    %1157 = vrot.lane.b32.xlu0 %v346, 32
    %v1158 = vpop.permute.xlu0 %1157
    %v1160 = vsel %vm352, %v1098, 0
    %v1163 = vsel %vm465, %v1158, 0
    %1165 = vmatprep.subr.bf16.mxu0 0
    %1166 = vmatpush1.bf16.msra.mxu0 0
    %1167 = vmatprep.subr.bf16.mxu0 0
    %1168 = vmatpush1.bf16.msra.mxu0 0
    %1169 = vmatprep.subr.bf16.mxu0 0
    %1170 = vmatpush1.bf16.msra.mxu0 0
    %1171 = vmatprep.subr.bf16.mxu0 0
    %1172 = vmatpush1.bf16.msra.mxu0 0
    %1173 = vmatprep.subr.bf16.mxu0 0
    %1174 = vmatpush1.bf16.msra.mxu0 0
    %1175 = vmatprep.subr.bf16.mxu0 0
    %1176 = vmatpush1.bf16.msra.mxu0 0
    %1177 = vmatprep.subr.bf16.mxu0 0
    %1178 = vmatpush1.bf16.msra.mxu0 0
    %1179 = vmatprep.subr.bf16.mxu0 0
    %1180 = vmatpush1.bf16.msra.mxu0 %v1163
    %1181 = vmatprep.subr.bf16.mxu0 0
    %1182 = vmatpush2.bf16.msra.mxu0 0
    %1183 = vmatprep.subr.bf16.mxu0 0
    %1184 = vmatpush2.bf16.msra.mxu0 0
    %1185 = vmatprep.subr.bf16.mxu0 0
    %1186 = vmatpush2.bf16.msra.mxu0 0
    %1187 = vmatprep.subr.bf16.mxu0 0
    %1188 = vmatpush2.bf16.msra.mxu0 0
    %1189 = vmatprep.subr.bf16.mxu0 0
    %1190 = vmatpush2.bf16.msra.mxu0 0
    %1191 = vmatprep.subr.bf16.mxu0 0
    %1192 = vmatpush2.bf16.msra.mxu0 0
    %1193 = vmatprep.subr.bf16.mxu0 0
    %1194 = vmatpush2.bf16.msra.mxu0 0
    %1195 = vmatprep.subr.bf16.mxu0 0
    %1196 = vmatpush2.bf16.msra.mxu0 0
    %1197 = vmatprep.mubr.bf16.mxu0 0
    %1198 = vmatmul.mubr.bf16.gmra.mxu0 %v1160
    %v1199 = vpop.f32.mrf.mxu0
    %v1200 = vadd.f32 0.0, %v1199
    %v1201 = vpop.f32.mrf.mxu0
    %v1202 = vpop.f32.mrf.mxu0
    %v1203 = vpop.f32.mrf.mxu0
    %1204 = vdwg.mxu0
    %v1205 = vrcp.pop %v1107
    %v1206 = vrcp.pop %v1108
    %v1207 = vmul.f32 %v1152, %v1205
    %v1208 = vmul.f32 %v1200, %v1206
    %v1209 = vadd.f32 %v993, %v1207
    %v1210 = vadd.f32 %v994, %v1208
    %v1211 = vadd.f32 %v161, %v1209
    %v1212 = vadd.f32 %v162, %v1210
    %v1213 = vld [vmem:[#allocation8] sm:$0x1]
    %v1215 = vlaneseq
    %v1216 = vshrl.u32 %v1215, 7
    %v1217 = vsub.s32 0, %v1216
    %v1218 = vrot.slane %v1213, %v1217
    %v1220 = vadd.f32 %v1211, %v1218
    %v1221 = vadd.f32 %v1212, %v1218
    %v1222 = vsel %vm168, %v1220, 0.0
    %1223 = vadd.xlane.f32.xlu0 %v1222
    %v1224 = vpop.xlane.xlu0 %1223
    %v1225 = vsel %vm168, %v1221, 0.0
    %1226 = vadd.xlane.f32.xlu0 %v1225
    %v1227 = vpop.xlane.xlu0 %1226
    %v1228 = vmul.f32 %v1224, %v175
    %v1229 = vmul.f32 %v1227, %v175
    %v1230 = vsub.f32 %v1220, %v1228
    %v1231 = vsub.f32 %v1221, %v1229
    %v1232 = vmul.f32 %v1230, %v1230
    %v1233 = vmul.f32 %v1231, %v1231
    %v1234 = vsel %vm168, %v1232, 0.0
    %1235 = vadd.xlane.f32.xlu0 %v1234
    %v1236 = vpop.xlane.xlu0 %1235
    %v1237 = vsel %vm168, %v1233, 0.0
    %1238 = vadd.xlane.f32.xlu0 %v1237
    %v1239 = vpop.xlane.xlu0 %1238
    %v1240 = vmul.f32 %v1236, %v175
    %v1241 = vmul.f32 %v1239, %v175
    %v1242 = vadd.f32 %v1240, 1e-05
    %v1243 = vadd.f32 %v1241, 1e-05
    %v1244 = vrsqrt.pop %v1242
    %v1245 = vrsqrt.pop %v1243
    %v1246 = vmul.f32 %v1230, %v1244
    %v1247 = vmul.f32 %v1231, %v1245
    %v1248 = vpack.c.bf16 %v1247, %v1246
    %v1249 = vld [vmem:[#allocation10] sm:$0xf]
    %v1250 = vld [vmem:[#allocation10 + $0x4] sm:$0xf]
    %v1251 = vld [vmem:[#allocation10 + $0x8] sm:$0xf]
    %v1252 = vld [vmem:[#allocation10 + $0xc] sm:$0xf]
    %v1253 = vld [vmem:[#allocation11] sm:$0x1]
    %v1255 = vlaneseq
    %v1256 = vshrl.u32 %v1255, 7
    %v1257 = vsub.s32 0, %v1256
    %v1258 = vrot.slane %v1253, %v1257
    %v1264 = vunpack.c.l.b16 %v1249
    %v1265 = vunpack.c.l.b16 %v1250
    %v1266 = vunpack.c.l.b16 %v1251
    %v1267 = vunpack.c.l.b16 %v1252
    %v1268 = vpack.c.b16 %v1265, %v1264
    %v1269 = vpack.c.b16 %v1267, %v1266
    %v1273 = vsel %vm168, %v1248, 0
    %1275 = vmatprep.subr.bf16.mxu0 0
    %1276 = vmatpush1.bf16.msra.mxu0 0
    %1277 = vmatprep.subr.bf16.mxu0 0
    %1278 = vmatpush1.bf16.msra.mxu0 0
    %1279 = vmatprep.subr.bf16.mxu0 0
    %1280 = vmatpush1.bf16.msra.mxu0 0
    %1281 = vmatprep.subr.bf16.mxu0 0
    %1282 = vmatpush1.bf16.msra.mxu0 0
    %1283 = vmatprep.subr.bf16.mxu0 0
    %1284 = vmatpush1.bf16.msra.mxu0 0
    %1285 = vmatprep.subr.bf16.mxu0 0
    %1286 = vmatpush1.bf16.msra.mxu0 0
    %1287 = vmatprep.subr.bf16.mxu0 0
    %1288 = vmatpush1.bf16.msra.mxu0 %v1269
    %1289 = vmatprep.subr.bf16.mxu0 0
    %1290 = vmatpush1.bf16.msra.mxu0 %v1268
    %1291 = vmatprep.subr.bf16.mxu0 0
    %1292 = vmatpush2.bf16.msra.mxu0 0
    %1293 = vmatprep.subr.bf16.mxu0 0
    %1294 = vmatpush2.bf16.msra.mxu0 0
    %1295 = vmatprep.subr.bf16.mxu0 0
    %1296 = vmatpush2.bf16.msra.mxu0 0
    %1297 = vmatprep.subr.bf16.mxu0 0
    %1298 = vmatpush2.bf16.msra.mxu0 0
    %1299 = vmatprep.subr.bf16.mxu0 0
    %1300 = vmatpush2.bf16.msra.mxu0 0
    %1301 = vmatprep.subr.bf16.mxu0 0
    %1302 = vmatpush2.bf16.msra.mxu0 0
    %1303 = vmatprep.subr.bf16.mxu0 0
    %1304 = vmatpush2.bf16.msra.mxu0 0
    %1305 = vmatprep.subr.bf16.mxu0 0
    %1306 = vmatpush2.bf16.msra.mxu0 0
    %1307 = vmatprep.mubr.bf16.mxu0 0
    %1308 = vmatmul.mubr.bf16.gmra.mxu0 %v1273
    %v1309 = vpop.f32.mrf.mxu0
    %v1310 = vadd.f32 %v1258, %v1309
    %v1311 = vpop.f32.mrf.mxu0
    %v1312 = vpop.f32.mrf.mxu0
    %v1313 = vadd.f32 %v1258, %v1312
    %v1314 = vpop.f32.mrf.mxu0
    %1315 = vdwg.mxu0
    %vm1316 = vcmp.gt.f32.partialorder %v1310, 0.0
    %vm1317 = vcmp.gt.f32.partialorder %v1313, 0.0
    %v1318 = vadd.f32 %v1310, 1.0
    %v1319 = vadd.f32 %v1313, 1.0
    %v1320 = vmul.f32 %v1310, 1.442695
    %v1321 = vpow.pop %v1320
    %v1322 = vmul.f32 %v1313, 1.442695
    %v1323 = vpow.pop %v1322
    %v1324 = vsel %vm1316, %v1318, %v1321
    %v1325 = vsel %vm1317, %v1319, %v1323
    %v1326 = vld [vmem:[%s9] sm:$0xf]
    %v1327 = vld [vmem:[%s9 + $0x4] sm:$0xf]
    %v1328 = vld [vmem:[%s9 + $0x8] sm:$0xf]
    %v1329 = vld [vmem:[%s9 + $0xc] sm:$0xf]
    %v1330 = vld [vmem:[%s10] sm:$0x1]
    %v1332 = vlaneseq
    %v1333 = vshrl.u32 %v1332, 7
    %v1334 = vsub.s32 0, %v1333
    %v1335 = vrot.slane %v1330, %v1334
    %v1341 = vunpack.c.l.b16 %v1326
    %v1342 = vunpack.c.l.b16 %v1327
    %v1343 = vunpack.c.l.b16 %v1328
    %v1344 = vunpack.c.l.b16 %v1329
    %v1345 = vpack.c.b16 %v1342, %v1341
    %v1346 = vpack.c.b16 %v1344, %v1343
    %v1350 = vsel %vm168, %v165, 0
    %1352 = vmatprep.subr.bf16.mxu0 0
    %1353 = vmatpush1.bf16.msra.mxu0 0
    %1354 = vmatprep.subr.bf16.mxu0 0
    %1355 = vmatpush1.bf16.msra.mxu0 0
    %1356 = vmatprep.subr.bf16.mxu0 0
    %1357 = vmatpush1.bf16.msra.mxu0 0
    %1358 = vmatprep.subr.bf16.mxu0 0
    %1359 = vmatpush1.bf16.msra.mxu0 0
    %1360 = vmatprep.subr.bf16.mxu0 0
    %1361 = vmatpush1.bf16.msra.mxu0 0
    %1362 = vmatprep.subr.bf16.mxu0 0
    %1363 = vmatpush1.bf16.msra.mxu0 0
    %1364 = vmatprep.subr.bf16.mxu0 0
    %1365 = vmatpush1.bf16.msra.mxu0 %v1346
    %1366 = vmatprep.subr.bf16.mxu0 0
    %1367 = vmatpush1.bf16.msra.mxu0 %v1345
    %1368 = vmatprep.subr.bf16.mxu0 0
    %1369 = vmatpush2.bf16.msra.mxu0 0
    %1370 = vmatprep.subr.bf16.mxu0 0
    %1371 = vmatpush2.bf16.msra.mxu0 0
    %1372 = vmatprep.subr.bf16.mxu0 0
    %1373 = vmatpush2.bf16.msra.mxu0 0
    %1374 = vmatprep.subr.bf16.mxu0 0
    %1375 = vmatpush2.bf16.msra.mxu0 0
    %1376 = vmatprep.subr.bf16.mxu0 0
    %1377 = vmatpush2.bf16.msra.mxu0 0
    %1378 = vmatprep.subr.bf16.mxu0 0
    %1379 = vmatpush2.bf16.msra.mxu0 0
    %1380 = vmatprep.subr.bf16.mxu0 0
    %1381 = vmatpush2.bf16.msra.mxu0 0
    %1382 = vmatprep.subr.bf16.mxu0 0
    %1383 = vmatpush2.bf16.msra.mxu0 0
    %1384 = vmatprep.mubr.bf16.mxu0 0
    %1385 = vmatmul.mubr.bf16.gmra.mxu0 %v1350
    %v1386 = vpop.f32.mrf.mxu0
    %v1387 = vadd.f32 %v1335, %v1386
    %v1388 = vpop.f32.mrf.mxu0
    %v1389 = vpop.f32.mrf.mxu0
    %v1390 = vadd.f32 %v1335, %v1389
    %v1391 = vpop.f32.mrf.mxu0
    %1392 = vdwg.mxu0
    %vm1393 = vcmp.gt.f32.partialorder %v1387, 0.0
    %vm1394 = vcmp.gt.f32.partialorder %v1390, 0.0
    %v1395 = vadd.f32 %v1387, 1.0
    %v1396 = vadd.f32 %v1390, 1.0
    %v1397 = vmul.f32 %v1387, 1.442695
    %v1398 = vpow.pop %v1397
    %v1399 = vmul.f32 %v1390, 1.442695
    %v1400 = vpow.pop %v1399
    %v1401 = vsel %vm1393, %v1395, %v1398
    %v1402 = vsel %vm1394, %v1396, %v1400
    %v1403 = vpack.c.bf16 %v1390, %v1387
    %v1404 = vld [vmem:[#allocation13] sm:$0xf]
    %v1405 = vld [vmem:[#allocation13 + $0x4] sm:$0xf]
    %v1406 = vld [vmem:[#allocation13 + $0x8] sm:$0xf]
    %v1407 = vld [vmem:[#allocation13 + $0xc] sm:$0xf]
    %1409 = vrot.lane.b32.xlu0 %v1403, 96
    %v1410 = vpop.permute.xlu0 %1409
    %v1415 = vunpack.c.l.b16 %v1404
    %v1416 = vunpack.c.l.b16 %v1405
    %v1417 = vunpack.c.l.b16 %v1406
    %v1418 = vunpack.c.l.b16 %v1407
    %v1419 = vpack.c.b16 %v1416, %v1415
    %v1420 = vpack.c.b16 %v1418, %v1417
    %v1424 = vsel %vm168, %v1410, 0
    %1426 = vmatprep.subr.bf16.mxu0 0
    %1427 = vmatpush1.bf16.msra.mxu0 0
    %1428 = vmatprep.subr.bf16.mxu0 0
    %1429 = vmatpush1.bf16.msra.mxu0 0
    %1430 = vmatprep.subr.bf16.mxu0 0
    %1431 = vmatpush1.bf16.msra.mxu0 0
    %1432 = vmatprep.subr.bf16.mxu0 0
    %1433 = vmatpush1.bf16.msra.mxu0 0
    %1434 = vmatprep.subr.bf16.mxu0 0
    %1435 = vmatpush1.bf16.msra.mxu0 0
    %1436 = vmatprep.subr.bf16.mxu0 0
    %1437 = vmatpush1.bf16.msra.mxu0 0
    %1438 = vmatprep.subr.bf16.mxu0 0
    %1439 = vmatpush1.bf16.msra.mxu0 %v1420
    %1440 = vmatprep.subr.bf16.mxu0 0
    %1441 = vmatpush1.bf16.msra.mxu0 %v1419
    %1442 = vmatprep.subr.bf16.mxu0 0
    %1443 = vmatpush2.bf16.msra.mxu0 0
    %1444 = vmatprep.subr.bf16.mxu0 0
    %1445 = vmatpush2.bf16.msra.mxu0 0
    %1446 = vmatprep.subr.bf16.mxu0 0
    %1447 = vmatpush2.bf16.msra.mxu0 0
    %1448 = vmatprep.subr.bf16.mxu0 0
    %1449 = vmatpush2.bf16.msra.mxu0 0
    %1450 = vmatprep.subr.bf16.mxu0 0
    %1451 = vmatpush2.bf16.msra.mxu0 0
    %1452 = vmatprep.subr.bf16.mxu0 0
    %1453 = vmatpush2.bf16.msra.mxu0 0
    %1454 = vmatprep.subr.bf16.mxu0 0
    %1455 = vmatpush2.bf16.msra.mxu0 0
    %1456 = vmatprep.subr.bf16.mxu0 0
    %1457 = vmatpush2.bf16.msra.mxu0 0
    %1458 = vmatprep.mubr.bf16.mxu0 0
    %1459 = vmatmul.mubr.bf16.gmra.mxu0 %v1424
    %v1460 = vpop.f32.mrf.mxu0
    %v1461 = vadd.f32 0.0, %v1460
    %v1462 = vpop.f32.mrf.mxu0
    %v1463 = vpop.f32.mrf.mxu0
    %v1464 = vadd.f32 0.0, %v1463
    %v1465 = vpop.f32.mrf.mxu0
    %1466 = vdwg.mxu0
    %v1467 = vpack.c.bf16 %v1461, %v1461
    %v1468 = vpack.c.bf16 %v1464, %v1464
    %v1469 = vpack.c.bf16 %v1324, %v1324
    %v1470 = vpack.c.bf16 %v1325, %v1325
    %v1471 = vpack.c.bf16 %v1401, %v1401
    %v1472 = vpack.c.bf16 %v1402, %v1402
    %v1474 = vsel %vm352, %v1469, 0
    %v1477 = vsel %vm352, %v1471, 0
    %1479 = vmatprep.subr.bf16.mxu0 0
    %1480 = vmatpush1.bf16.xpose.msra.mxu0 0
    %1481 = vmatprep.subr.bf16.mxu0 0
    %1482 = vmatpush1.bf16.xpose.msra.mxu0 0
    %1483 = vmatprep.subr.bf16.mxu0 0
    %1484 = vmatpush1.bf16.xpose.msra.mxu0 0
    %1485 = vmatprep.subr.bf16.mxu0 0
    %1486 = vmatpush1.bf16.xpose.msra.mxu0 0
    %1487 = vmatprep.subr.bf16.mxu0 0
    %1488 = vmatpush1.bf16.xpose.msra.mxu0 0
    %1489 = vmatprep.subr.bf16.mxu0 0
    %1490 = vmatpush1.bf16.xpose.msra.mxu0 0
    %1491 = vmatprep.subr.bf16.mxu0 0
    %1492 = vmatpush1.bf16.xpose.msra.mxu0 0
    %1493 = vmatprep.subr.bf16.mxu0 0
    %1494 = vmatpush1.bf16.xpose.msra.mxu0 %v1477
    %1495 = vmatprep.subr.bf16.mxu0 0
    %1496 = vmatpush2.bf16.xpose.msra.mxu0 0
    %1497 = vmatprep.subr.bf16.mxu0 0
    %1498 = vmatpush2.bf16.xpose.msra.mxu0 0
    %1499 = vmatprep.subr.bf16.mxu0 0
    %1500 = vmatpush2.bf16.xpose.msra.mxu0 0
    %1501 = vmatprep.subr.bf16.mxu0 0
    %1502 = vmatpush2.bf16.xpose.msra.mxu0 0
    %1503 = vmatprep.subr.bf16.mxu0 0
    %1504 = vmatpush2.bf16.xpose.msra.mxu0 0
    %1505 = vmatprep.subr.bf16.mxu0 0
    %1506 = vmatpush2.bf16.xpose.msra.mxu0 0
    %1507 = vmatprep.subr.bf16.mxu0 0
    %1508 = vmatpush2.bf16.xpose.msra.mxu0 0
    %1509 = vmatprep.subr.bf16.mxu0 0
    %1510 = vmatpush2.bf16.xpose.msra.mxu0 0
    %1511 = vmatprep.mubr.bf16.mxu0 0
    %1512 = vmatmul.mubr.bf16.gmra.mxu0 %v1474
    %v1513 = vpop.f32.mrf.mxu0
    %v1514 = vadd.f32 0.0, %v1513
    %v1515 = vpop.f32.mrf.mxu0
    %v1516 = vpop.f32.mrf.mxu0
    %v1517 = vpop.f32.mrf.mxu0
    %1518 = vdwg.mxu0
    %v1520 = vsel %vm352, %v1470, 0
    %v1523 = vsel %vm352, %v1472, 0
    %1525 = vmatprep.subr.bf16.mxu0 0
    %1526 = vmatpush1.bf16.xpose.msra.mxu0 0
    %1527 = vmatprep.subr.bf16.mxu0 0
    %1528 = vmatpush1.bf16.xpose.msra.mxu0 0
    %1529 = vmatprep.subr.bf16.mxu0 0
    %1530 = vmatpush1.bf16.xpose.msra.mxu0 0
    %1531 = vmatprep.subr.bf16.mxu0 0
    %1532 = vmatpush1.bf16.xpose.msra.mxu0 0
    %1533 = vmatprep.subr.bf16.mxu0 0
    %1534 = vmatpush1.bf16.xpose.msra.mxu0 0
    %1535 = vmatprep.subr.bf16.mxu0 0
    %1536 = vmatpush1.bf16.xpose.msra.mxu0 0
    %1537 = vmatprep.subr.bf16.mxu0 0
    %1538 = vmatpush1.bf16.xpose.msra.mxu0 0
    %1539 = vmatprep.subr.bf16.mxu0 0
    %1540 = vmatpush1.bf16.xpose.msra.mxu0 %v1523
    %1541 = vmatprep.subr.bf16.mxu0 0
    %1542 = vmatpush2.bf16.xpose.msra.mxu0 0
    %1543 = vmatprep.subr.bf16.mxu0 0
    %1544 = vmatpush2.bf16.xpose.msra.mxu0 0
    %1545 = vmatprep.subr.bf16.mxu0 0
    %1546 = vmatpush2.bf16.xpose.msra.mxu0 0
    %1547 = vmatprep.subr.bf16.mxu0 0
    %1548 = vmatpush2.bf16.xpose.msra.mxu0 0
    %1549 = vmatprep.subr.bf16.mxu0 0
    %1550 = vmatpush2.bf16.xpose.msra.mxu0 0
    %1551 = vmatprep.subr.bf16.mxu0 0
    %1552 = vmatpush2.bf16.xpose.msra.mxu0 0
    %1553 = vmatprep.subr.bf16.mxu0 0
    %1554 = vmatpush2.bf16.xpose.msra.mxu0 0
    %1555 = vmatprep.subr.bf16.mxu0 0
    %1556 = vmatpush2.bf16.xpose.msra.mxu0 0
    %1557 = vmatprep.mubr.bf16.mxu0 0
    %1558 = vmatmul.mubr.bf16.gmra.mxu0 %v1520
    %v1559 = vpop.f32.mrf.mxu0
    %v1560 = vadd.f32 0.0, %v1559
    %v1561 = vpop.f32.mrf.mxu0
    %v1562 = vpop.f32.mrf.mxu0
    %v1563 = vpop.f32.mrf.mxu0
    %1564 = vdwg.mxu0
    %v1567 = vlaneseq
    %v1568 = vshrl.u32 %v1567, 7
    %v1569 = vsub.s32 0, %v1568
    %v1570 = vrot.slane %v166, %v1569
    %v1571 = vlaneseq
    %v1572 = vshrl.u32 %v1571, 7
    %v1573 = vsub.s32 0, %v1572
    %v1574 = vrot.slane %v167, %v1573
    %v1577 = vmul.f32 %v1514, %v1570
    %v1578 = vmul.f32 %v1560, %v1574
    %v1579 = vpack.c.bf16 %v1577, %v1577
    %v1580 = vpack.c.bf16 %v1578, %v1578
    %v1581 = vunpack.c.l.bf16 %v1579
    %v1582 = vunpack.c.l.bf16 %v1580
    %v1583 = vsel %vm352, %v1581, 0.0
    %1584 = vadd.xlane.f32.xlu0 %v1583
    %v1585 = vpop.xlane.xlu0 %1584
    %v1586 = vsel %vm352, %v1582, 0.0
    %1587 = vadd.xlane.f32.xlu0 %v1586
    %v1588 = vpop.xlane.xlu0 %1587
    %v1589 = vadd.f32 %v1585, 1e-06
    %v1590 = vadd.f32 %v1588, 1e-06
    %v1592 = vsel %vm352, %v1579, 0
    %v1595 = vsel %vm465, %v1467, 0
    %1597 = vmatprep.subr.bf16.mxu0 0
    %1598 = vmatpush1.bf16.msra.mxu0 0
    %1599 = vmatprep.subr.bf16.mxu0 0
    %1600 = vmatpush1.bf16.msra.mxu0 0
    %1601 = vmatprep.subr.bf16.mxu0 0
    %1602 = vmatpush1.bf16.msra.mxu0 0
    %1603 = vmatprep.subr.bf16.mxu0 0
    %1604 = vmatpush1.bf16.msra.mxu0 0
    %1605 = vmatprep.subr.bf16.mxu0 0
    %1606 = vmatpush1.bf16.msra.mxu0 0
    %1607 = vmatprep.subr.bf16.mxu0 0
    %1608 = vmatpush1.bf16.msra.mxu0 0
    %1609 = vmatprep.subr.bf16.mxu0 0
    %1610 = vmatpush1.bf16.msra.mxu0 0
    %1611 = vmatprep.subr.bf16.mxu0 0
    %1612 = vmatpush1.bf16.msra.mxu0 %v1595
    %1613 = vmatprep.subr.bf16.mxu0 0
    %1614 = vmatpush2.bf16.msra.mxu0 0
    %1615 = vmatprep.subr.bf16.mxu0 0
    %1616 = vmatpush2.bf16.msra.mxu0 0
    %1617 = vmatprep.subr.bf16.mxu0 0
    %1618 = vmatpush2.bf16.msra.mxu0 0
    %1619 = vmatprep.subr.bf16.mxu0 0
    %1620 = vmatpush2.bf16.msra.mxu0 0
    %1621 = vmatprep.subr.bf16.mxu0 0
    %1622 = vmatpush2.bf16.msra.mxu0 0
    %1623 = vmatprep.subr.bf16.mxu0 0
    %1624 = vmatpush2.bf16.msra.mxu0 0
    %1625 = vmatprep.subr.bf16.mxu0 0
    %1626 = vmatpush2.bf16.msra.mxu0 0
    %1627 = vmatprep.subr.bf16.mxu0 0
    %1628 = vmatpush2.bf16.msra.mxu0 0
    %1629 = vmatprep.mubr.bf16.mxu0 0
    %1630 = vmatmul.mubr.bf16.gmra.mxu0 %v1592
    %v1631 = vpop.f32.mrf.mxu0
    %v1632 = vadd.f32 0.0, %v1631
    %v1633 = vpop.f32.mrf.mxu0
    %v1634 = vpop.f32.mrf.mxu0
    %v1635 = vpop.f32.mrf.mxu0
    %1636 = vdwg.mxu0
    %v1638 = vsel %vm352, %v1580, 0
    %v1641 = vsel %vm465, %v1468, 0
    %1643 = vmatprep.subr.bf16.mxu0 0
    %1644 = vmatpush1.bf16.msra.mxu0 0
    %1645 = vmatprep.subr.bf16.mxu0 0
    %1646 = vmatpush1.bf16.msra.mxu0 0
    %1647 = vmatprep.subr.bf16.mxu0 0
    %1648 = vmatpush1.bf16.msra.mxu0 0
    %1649 = vmatprep.subr.bf16.mxu0 0
    %1650 = vmatpush1.bf16.msra.mxu0 0
    %1651 = vmatprep.subr.bf16.mxu0 0
    %1652 = vmatpush1.bf16.msra.mxu0 0
    %1653 = vmatprep.subr.bf16.mxu0 0
    %1654 = vmatpush1.bf16.msra.mxu0 0
    %1655 = vmatprep.subr.bf16.mxu0 0
    %1656 = vmatpush1.bf16.msra.mxu0 0
    %1657 = vmatprep.subr.bf16.mxu0 0
    %1658 = vmatpush1.bf16.msra.mxu0 %v1641
    %1659 = vmatprep.subr.bf16.mxu0 0
    %1660 = vmatpush2.bf16.msra.mxu0 0
    %1661 = vmatprep.subr.bf16.mxu0 0
    %1662 = vmatpush2.bf16.msra.mxu0 0
    %1663 = vmatprep.subr.bf16.mxu0 0
    %1664 = vmatpush2.bf16.msra.mxu0 0
    %1665 = vmatprep.subr.bf16.mxu0 0
    %1666 = vmatpush2.bf16.msra.mxu0 0
    %1667 = vmatprep.subr.bf16.mxu0 0
    %1668 = vmatpush2.bf16.msra.mxu0 0
    %1669 = vmatprep.subr.bf16.mxu0 0
    %1670 = vmatpush2.bf16.msra.mxu0 0
    %1671 = vmatprep.subr.bf16.mxu0 0
    %1672 = vmatpush2.bf16.msra.mxu0 0
    %1673 = vmatprep.subr.bf16.mxu0 0
    %1674 = vmatpush2.bf16.msra.mxu0 0
    %1675 = vmatprep.mubr.bf16.mxu0 0
    %1676 = vmatmul.mubr.bf16.gmra.mxu0 %v1638
    %v1677 = vpop.f32.mrf.mxu0
    %v1678 = vadd.f32 0.0, %v1677
    %v1679 = vpop.f32.mrf.mxu0
    %v1680 = vpop.f32.mrf.mxu0
    %v1681 = vpop.f32.mrf.mxu0
    %1682 = vdwg.mxu0
    %v1683 = vrcp.pop %v1589
    %v1684 = vrcp.pop %v1590
    %v1685 = vmul.f32 %v1632, %v1683
    %v1686 = vmul.f32 %v1678, %v1684
    %v1687 = vadd.f32 %v1685, 0.0
    %v1688 = vadd.f32 %v1686, 0.0
    %1690 = vrot.lane.b32.xlu0 %v1469, 120
    %v1691 = vpop.permute.xlu0 %1690
    %1693 = vrot.lane.b32.xlu0 %v1471, 120
    %v1694 = vpop.permute.xlu0 %1693
    %v1696 = vsel %vm352, %v1691, 0
    %v1699 = vsel %vm352, %v1694, 0
    %1701 = vmatprep.subr.bf16.mxu0 0
    %1702 = vmatpush1.bf16.xpose.msra.mxu0 0
    %1703 = vmatprep.subr.bf16.mxu0 0
    %1704 = vmatpush1.bf16.xpose.msra.mxu0 0
    %1705 = vmatprep.subr.bf16.mxu0 0
    %1706 = vmatpush1.bf16.xpose.msra.mxu0 0
    %1707 = vmatprep.subr.bf16.mxu0 0
    %1708 = vmatpush1.bf16.xpose.msra.mxu0 0
    %1709 = vmatprep.subr.bf16.mxu0 0
    %1710 = vmatpush1.bf16.xpose.msra.mxu0 0
    %1711 = vmatprep.subr.bf16.mxu0 0
    %1712 = vmatpush1.bf16.xpose.msra.mxu0 0
    %1713 = vmatprep.subr.bf16.mxu0 0
    %1714 = vmatpush1.bf16.xpose.msra.mxu0 0
    %1715 = vmatprep.subr.bf16.mxu0 0
    %1716 = vmatpush1.bf16.xpose.msra.mxu0 %v1699
    %1717 = vmatprep.subr.bf16.mxu0 0
    %1718 = vmatpush2.bf16.xpose.msra.mxu0 0
    %1719 = vmatprep.subr.bf16.mxu0 0
    %1720 = vmatpush2.bf16.xpose.msra.mxu0 0
    %1721 = vmatprep.subr.bf16.mxu0 0
    %1722 = vmatpush2.bf16.xpose.msra.mxu0 0
    %1723 = vmatprep.subr.bf16.mxu0 0
    %1724 = vmatpush2.bf16.xpose.msra.mxu0 0
    %1725 = vmatprep.subr.bf16.mxu0 0
    %1726 = vmatpush2.bf16.xpose.msra.mxu0 0
    %1727 = vmatprep.subr.bf16.mxu0 0
    %1728 = vmatpush2.bf16.xpose.msra.mxu0 0
    %1729 = vmatprep.subr.bf16.mxu0 0
    %1730 = vmatpush2.bf16.xpose.msra.mxu0 0
    %1731 = vmatprep.subr.bf16.mxu0 0
    %1732 = vmatpush2.bf16.xpose.msra.mxu0 0
    %1733 = vmatprep.mubr.bf16.mxu0 0
    %1734 = vmatmul.mubr.bf16.gmra.mxu0 %v1696
    %v1735 = vpop.f32.mrf.mxu0
    %v1736 = vadd.f32 0.0, %v1735
    %v1737 = vpop.f32.mrf.mxu0
    %v1738 = vpop.f32.mrf.mxu0
    %v1739 = vpop.f32.mrf.mxu0
    %1740 = vdwg.mxu0
    %1742 = vrot.lane.b32.xlu0 %v1470, 120
    %v1743 = vpop.permute.xlu0 %1742
    %1745 = vrot.lane.b32.xlu0 %v1472, 120
    %v1746 = vpop.permute.xlu0 %1745
    %v1748 = vsel %vm352, %v1743, 0
    %v1751 = vsel %vm352, %v1746, 0
    %1753 = vmatprep.subr.bf16.mxu0 0
    %1754 = vmatpush1.bf16.xpose.msra.mxu0 0
    %1755 = vmatprep.subr.bf16.mxu0 0
    %1756 = vmatpush1.bf16.xpose.msra.mxu0 0
    %1757 = vmatprep.subr.bf16.mxu0 0
    %1758 = vmatpush1.bf16.xpose.msra.mxu0 0
    %1759 = vmatprep.subr.bf16.mxu0 0
    %1760 = vmatpush1.bf16.xpose.msra.mxu0 0
    %1761 = vmatprep.subr.bf16.mxu0 0
    %1762 = vmatpush1.bf16.xpose.msra.mxu0 0
    %1763 = vmatprep.subr.bf16.mxu0 0
    %1764 = vmatpush1.bf16.xpose.msra.mxu0 0
    %1765 = vmatprep.subr.bf16.mxu0 0
    %1766 = vmatpush1.bf16.xpose.msra.mxu0 0
    %1767 = vmatprep.subr.bf16.mxu0 0
    %1768 = vmatpush1.bf16.xpose.msra.mxu0 %v1751
    %1769 = vmatprep.subr.bf16.mxu0 0
    %1770 = vmatpush2.bf16.xpose.msra.mxu0 0
    %1771 = vmatprep.subr.bf16.mxu0 0
    %1772 = vmatpush2.bf16.xpose.msra.mxu0 0
    %1773 = vmatprep.subr.bf16.mxu0 0
    %1774 = vmatpush2.bf16.xpose.msra.mxu0 0
    %1775 = vmatprep.subr.bf16.mxu0 0
    %1776 = vmatpush2.bf16.xpose.msra.mxu0 0
    %1777 = vmatprep.subr.bf16.mxu0 0
    %1778 = vmatpush2.bf16.xpose.msra.mxu0 0
    %1779 = vmatprep.subr.bf16.mxu0 0
    %1780 = vmatpush2.bf16.xpose.msra.mxu0 0
    %1781 = vmatprep.subr.bf16.mxu0 0
    %1782 = vmatpush2.bf16.xpose.msra.mxu0 0
    %1783 = vmatprep.subr.bf16.mxu0 0
    %1784 = vmatpush2.bf16.xpose.msra.mxu0 0
    %1785 = vmatprep.mubr.bf16.mxu0 0
    %1786 = vmatmul.mubr.bf16.gmra.mxu0 %v1748
    %v1787 = vpop.f32.mrf.mxu0
    %v1788 = vadd.f32 0.0, %v1787
    %v1789 = vpop.f32.mrf.mxu0
    %v1790 = vpop.f32.mrf.mxu0
    %v1791 = vpop.f32.mrf.mxu0
    %1792 = vdwg.mxu0
    %v1793 = vmul.f32 %v1736, %v1570
    %v1794 = vmul.f32 %v1788, %v1574
    %v1795 = vpack.c.bf16 %v1793, %v1793
    %v1796 = vpack.c.bf16 %v1794, %v1794
    %v1797 = vunpack.c.l.bf16 %v1795
    %v1798 = vunpack.c.l.bf16 %v1796
    %v1799 = vsel %vm352, %v1797, 0.0
    %1800 = vadd.xlane.f32.xlu0 %v1799
    %v1801 = vpop.xlane.xlu0 %1800
    %v1802 = vsel %vm352, %v1798, 0.0
    %1803 = vadd.xlane.f32.xlu0 %v1802
    %v1804 = vpop.xlane.xlu0 %1803
    %v1805 = vadd.f32 %v1801, 1e-06
    %v1806 = vadd.f32 %v1804, 1e-06
    %1808 = vrot.lane.b32.xlu0 %v1467, 96
    %v1809 = vpop.permute.xlu0 %1808
    %v1811 = vsel %vm352, %v1795, 0
    %v1814 = vsel %vm465, %v1809, 0
    %1816 = vmatprep.subr.bf16.mxu0 0
    %1817 = vmatpush1.bf16.msra.mxu0 0
    %1818 = vmatprep.subr.bf16.mxu0 0
    %1819 = vmatpush1.bf16.msra.mxu0 0
    %1820 = vmatprep.subr.bf16.mxu0 0
    %1821 = vmatpush1.bf16.msra.mxu0 0
    %1822 = vmatprep.subr.bf16.mxu0 0
    %1823 = vmatpush1.bf16.msra.mxu0 0
    %1824 = vmatprep.subr.bf16.mxu0 0
    %1825 = vmatpush1.bf16.msra.mxu0 0
    %1826 = vmatprep.subr.bf16.mxu0 0
    %1827 = vmatpush1.bf16.msra.mxu0 0
    %1828 = vmatprep.subr.bf16.mxu0 0
    %1829 = vmatpush1.bf16.msra.mxu0 0
    %1830 = vmatprep.subr.bf16.mxu0 0
    %1831 = vmatpush1.bf16.msra.mxu0 %v1814
    %1832 = vmatprep.subr.bf16.mxu0 0
    %1833 = vmatpush2.bf16.msra.mxu0 0
    %1834 = vmatprep.subr.bf16.mxu0 0
    %1835 = vmatpush2.bf16.msra.mxu0 0
    %1836 = vmatprep.subr.bf16.mxu0 0
    %1837 = vmatpush2.bf16.msra.mxu0 0
    %1838 = vmatprep.subr.bf16.mxu0 0
    %1839 = vmatpush2.bf16.msra.mxu0 0
    %1840 = vmatprep.subr.bf16.mxu0 0
    %1841 = vmatpush2.bf16.msra.mxu0 0
    %1842 = vmatprep.subr.bf16.mxu0 0
    %1843 = vmatpush2.bf16.msra.mxu0 0
    %1844 = vmatprep.subr.bf16.mxu0 0
    %1845 = vmatpush2.bf16.msra.mxu0 0
    %1846 = vmatprep.subr.bf16.mxu0 0
    %1847 = vmatpush2.bf16.msra.mxu0 0
    %1848 = vmatprep.mubr.bf16.mxu0 0
    %1849 = vmatmul.mubr.bf16.gmra.mxu0 %v1811
    %v1850 = vpop.f32.mrf.mxu0
    %v1851 = vadd.f32 0.0, %v1850
    %v1852 = vpop.f32.mrf.mxu0
    %v1853 = vpop.f32.mrf.mxu0
    %v1854 = vpop.f32.mrf.mxu0
    %1855 = vdwg.mxu0
    %1857 = vrot.lane.b32.xlu0 %v1468, 96
    %v1858 = vpop.permute.xlu0 %1857
    %v1860 = vsel %vm352, %v1796, 0
    %v1863 = vsel %vm465, %v1858, 0
    %1865 = vmatprep.subr.bf16.mxu0 0
    %1866 = vmatpush1.bf16.msra.mxu0 0
    %1867 = vmatprep.subr.bf16.mxu0 0
    %1868 = vmatpush1.bf16.msra.mxu0 0
    %1869 = vmatprep.subr.bf16.mxu0 0
    %1870 = vmatpush1.bf16.msra.mxu0 0
    %1871 = vmatprep.subr.bf16.mxu0 0
    %1872 = vmatpush1.bf16.msra.mxu0 0
    %1873 = vmatprep.subr.bf16.mxu0 0
    %1874 = vmatpush1.bf16.msra.mxu0 0
    %1875 = vmatprep.subr.bf16.mxu0 0
    %1876 = vmatpush1.bf16.msra.mxu0 0
    %1877 = vmatprep.subr.bf16.mxu0 0
    %1878 = vmatpush1.bf16.msra.mxu0 0
    %1879 = vmatprep.subr.bf16.mxu0 0
    %1880 = vmatpush1.bf16.msra.mxu0 %v1863
    %1881 = vmatprep.subr.bf16.mxu0 0
    %1882 = vmatpush2.bf16.msra.mxu0 0
    %1883 = vmatprep.subr.bf16.mxu0 0
    %1884 = vmatpush2.bf16.msra.mxu0 0
    %1885 = vmatprep.subr.bf16.mxu0 0
    %1886 = vmatpush2.bf16.msra.mxu0 0
    %1887 = vmatprep.subr.bf16.mxu0 0
    %1888 = vmatpush2.bf16.msra.mxu0 0
    %1889 = vmatprep.subr.bf16.mxu0 0
    %1890 = vmatpush2.bf16.msra.mxu0 0
    %1891 = vmatprep.subr.bf16.mxu0 0
    %1892 = vmatpush2.bf16.msra.mxu0 0
    %1893 = vmatprep.subr.bf16.mxu0 0
    %1894 = vmatpush2.bf16.msra.mxu0 0
    %1895 = vmatprep.subr.bf16.mxu0 0
    %1896 = vmatpush2.bf16.msra.mxu0 0
    %1897 = vmatprep.mubr.bf16.mxu0 0
    %1898 = vmatmul.mubr.bf16.gmra.mxu0 %v1860
    %v1899 = vpop.f32.mrf.mxu0
    %v1900 = vadd.f32 0.0, %v1899
    %v1901 = vpop.f32.mrf.mxu0
    %v1902 = vpop.f32.mrf.mxu0
    %v1903 = vpop.f32.mrf.mxu0
    %1904 = vdwg.mxu0
    %v1905 = vrcp.pop %v1805
    %v1906 = vrcp.pop %v1806
    %v1907 = vmul.f32 %v1851, %v1905
    %v1908 = vmul.f32 %v1900, %v1906
    %v1909 = vadd.f32 %v1687, %v1907
    %v1910 = vadd.f32 %v1688, %v1908
    %1911 = vrot.lane.b32.xlu0 %v1469, 112
    %v1912 = vpop.permute.xlu0 %1911
    %1913 = vrot.lane.b32.xlu0 %v1471, 112
    %v1914 = vpop.permute.xlu0 %1913
    %v1916 = vsel %vm352, %v1912, 0
    %v1919 = vsel %vm352, %v1914, 0
    %1921 = vmatprep.subr.bf16.mxu0 0
    %1922 = vmatpush1.bf16.xpose.msra.mxu0 0
    %1923 = vmatprep.subr.bf16.mxu0 0
    %1924 = vmatpush1.bf16.xpose.msra.mxu0 0
    %1925 = vmatprep.subr.bf16.mxu0 0
    %1926 = vmatpush1.bf16.xpose.msra.mxu0 0
    %1927 = vmatprep.subr.bf16.mxu0 0
    %1928 = vmatpush1.bf16.xpose.msra.mxu0 0
    %1929 = vmatprep.subr.bf16.mxu0 0
    %1930 = vmatpush1.bf16.xpose.msra.mxu0 0
    %1931 = vmatprep.subr.bf16.mxu0 0
    %1932 = vmatpush1.bf16.xpose.msra.mxu0 0
    %1933 = vmatprep.subr.bf16.mxu0 0
    %1934 = vmatpush1.bf16.xpose.msra.mxu0 0
    %1935 = vmatprep.subr.bf16.mxu0 0
    %1936 = vmatpush1.bf16.xpose.msra.mxu0 %v1919
    %1937 = vmatprep.subr.bf16.mxu0 0
    %1938 = vmatpush2.bf16.xpose.msra.mxu0 0
    %1939 = vmatprep.subr.bf16.mxu0 0
    %1940 = vmatpush2.bf16.xpose.msra.mxu0 0
    %1941 = vmatprep.subr.bf16.mxu0 0
    %1942 = vmatpush2.bf16.xpose.msra.mxu0 0
    %1943 = vmatprep.subr.bf16.mxu0 0
    %1944 = vmatpush2.bf16.xpose.msra.mxu0 0
    %1945 = vmatprep.subr.bf16.mxu0 0
    %1946 = vmatpush2.bf16.xpose.msra.mxu0 0
    %1947 = vmatprep.subr.bf16.mxu0 0
    %1948 = vmatpush2.bf16.xpose.msra.mxu0 0
    %1949 = vmatprep.subr.bf16.mxu0 0
    %1950 = vmatpush2.bf16.xpose.msra.mxu0 0
    %1951 = vmatprep.subr.bf16.mxu0 0
    %1952 = vmatpush2.bf16.xpose.msra.mxu0 0
    %1953 = vmatprep.mubr.bf16.mxu0 0
    %1954 = vmatmul.mubr.bf16.gmra.mxu0 %v1916
    %v1955 = vpop.f32.mrf.mxu0
    %v1956 = vadd.f32 0.0, %v1955
    %v1957 = vpop.f32.mrf.mxu0
    %v1958 = vpop.f32.mrf.mxu0
    %v1959 = vpop.f32.mrf.mxu0
    %1960 = vdwg.mxu0
    %1961 = vrot.lane.b32.xlu0 %v1470, 112
    %v1962 = vpop.permute.xlu0 %1961
    %1963 = vrot.lane.b32.xlu0 %v1472, 112
    %v1964 = vpop.permute.xlu0 %1963
    %v1966 = vsel %vm352, %v1962, 0
    %v1969 = vsel %vm352, %v1964, 0
    %1971 = vmatprep.subr.bf16.mxu0 0
    %1972 = vmatpush1.bf16.xpose.msra.mxu0 0
    %1973 = vmatprep.subr.bf16.mxu0 0
    %1974 = vmatpush1.bf16.xpose.msra.mxu0 0
    %1975 = vmatprep.subr.bf16.mxu0 0
    %1976 = vmatpush1.bf16.xpose.msra.mxu0 0
    %1977 = vmatprep.subr.bf16.mxu0 0
    %1978 = vmatpush1.bf16.xpose.msra.mxu0 0
    %1979 = vmatprep.subr.bf16.mxu0 0
    %1980 = vmatpush1.bf16.xpose.msra.mxu0 0
    %1981 = vmatprep.subr.bf16.mxu0 0
    %1982 = vmatpush1.bf16.xpose.msra.mxu0 0
    %1983 = vmatprep.subr.bf16.mxu0 0
    %1984 = vmatpush1.bf16.xpose.msra.mxu0 0
    %1985 = vmatprep.subr.bf16.mxu0 0
    %1986 = vmatpush1.bf16.xpose.msra.mxu0 %v1969
    %1987 = vmatprep.subr.bf16.mxu0 0
    %1988 = vmatpush2.bf16.xpose.msra.mxu0 0
    %1989 = vmatprep.subr.bf16.mxu0 0
    %1990 = vmatpush2.bf16.xpose.msra.mxu0 0
    %1991 = vmatprep.subr.bf16.mxu0 0
    %1992 = vmatpush2.bf16.xpose.msra.mxu0 0
    %1993 = vmatprep.subr.bf16.mxu0 0
    %1994 = vmatpush2.bf16.xpose.msra.mxu0 0
    %1995 = vmatprep.subr.bf16.mxu0 0
    %1996 = vmatpush2.bf16.xpose.msra.mxu0 0
    %1997 = vmatprep.subr.bf16.mxu0 0
    %1998 = vmatpush2.bf16.xpose.msra.mxu0 0
    %1999 = vmatprep.subr.bf16.mxu0 0
    %2000 = vmatpush2.bf16.xpose.msra.mxu0 0
    %2001 = vmatprep.subr.bf16.mxu0 0
    %2002 = vmatpush2.bf16.xpose.msra.mxu0 0
    %2003 = vmatprep.mubr.bf16.mxu0 0
    %2004 = vmatmul.mubr.bf16.gmra.mxu0 %v1966
    %v2005 = vpop.f32.mrf.mxu0
    %v2006 = vadd.f32 0.0, %v2005
    %v2007 = vpop.f32.mrf.mxu0
    %v2008 = vpop.f32.mrf.mxu0
    %v2009 = vpop.f32.mrf.mxu0
    %2010 = vdwg.mxu0
    %v2011 = vmul.f32 %v1956, %v1570
    %v2012 = vmul.f32 %v2006, %v1574
    %v2013 = vpack.c.bf16 %v2011, %v2011
    %v2014 = vpack.c.bf16 %v2012, %v2012
    %v2015 = vunpack.c.l.bf16 %v2013
    %v2016 = vunpack.c.l.bf16 %v2014
    %v2017 = vsel %vm352, %v2015, 0.0
    %2018 = vadd.xlane.f32.xlu0 %v2017
    %v2019 = vpop.xlane.xlu0 %2018
    %v2020 = vsel %vm352, %v2016, 0.0
    %2021 = vadd.xlane.f32.xlu0 %v2020
    %v2022 = vpop.xlane.xlu0 %2021
    %v2023 = vadd.f32 %v2019, 1e-06
    %v2024 = vadd.f32 %v2022, 1e-06
    %2025 = vrot.lane.b32.xlu0 %v1467, 64
    %v2026 = vpop.permute.xlu0 %2025
    %v2028 = vsel %vm352, %v2013, 0
    %v2031 = vsel %vm465, %v2026, 0
    %2033 = vmatprep.subr.bf16.mxu0 0
    %2034 = vmatpush1.bf16.msra.mxu0 0
    %2035 = vmatprep.subr.bf16.mxu0 0
    %2036 = vmatpush1.bf16.msra.mxu0 0
    %2037 = vmatprep.subr.bf16.mxu0 0
    %2038 = vmatpush1.bf16.msra.mxu0 0
    %2039 = vmatprep.subr.bf16.mxu0 0
    %2040 = vmatpush1.bf16.msra.mxu0 0
    %2041 = vmatprep.subr.bf16.mxu0 0
    %2042 = vmatpush1.bf16.msra.mxu0 0
    %2043 = vmatprep.subr.bf16.mxu0 0
    %2044 = vmatpush1.bf16.msra.mxu0 0
    %2045 = vmatprep.subr.bf16.mxu0 0
    %2046 = vmatpush1.bf16.msra.mxu0 0
    %2047 = vmatprep.subr.bf16.mxu0 0
    %2048 = vmatpush1.bf16.msra.mxu0 %v2031
    %2049 = vmatprep.subr.bf16.mxu0 0
    %2050 = vmatpush2.bf16.msra.mxu0 0
    %2051 = vmatprep.subr.bf16.mxu0 0
    %2052 = vmatpush2.bf16.msra.mxu0 0
    %2053 = vmatprep.subr.bf16.mxu0 0
    %2054 = vmatpush2.bf16.msra.mxu0 0
    %2055 = vmatprep.subr.bf16.mxu0 0
    %2056 = vmatpush2.bf16.msra.mxu0 0
    %2057 = vmatprep.subr.bf16.mxu0 0
    %2058 = vmatpush2.bf16.msra.mxu0 0
    %2059 = vmatprep.subr.bf16.mxu0 0
    %2060 = vmatpush2.bf16.msra.mxu0 0
    %2061 = vmatprep.subr.bf16.mxu0 0
    %2062 = vmatpush2.bf16.msra.mxu0 0
    %2063 = vmatprep.subr.bf16.mxu0 0
    %2064 = vmatpush2.bf16.msra.mxu0 0
    %2065 = vmatprep.mubr.bf16.mxu0 0
    %2066 = vmatmul.mubr.bf16.gmra.mxu0 %v2028
    %v2067 = vpop.f32.mrf.mxu0
    %v2068 = vadd.f32 0.0, %v2067
    %v2069 = vpop.f32.mrf.mxu0
    %v2070 = vpop.f32.mrf.mxu0
    %v2071 = vpop.f32.mrf.mxu0
    %2072 = vdwg.mxu0
    %2073 = vrot.lane.b32.xlu0 %v1468, 64
    %v2074 = vpop.permute.xlu0 %2073
    %v2076 = vsel %vm352, %v2014, 0
    %v2079 = vsel %vm465, %v2074, 0
    %2081 = vmatprep.subr.bf16.mxu0 0
    %2082 = vmatpush1.bf16.msra.mxu0 0
    %2083 = vmatprep.subr.bf16.mxu0 0
    %2084 = vmatpush1.bf16.msra.mxu0 0
    %2085 = vmatprep.subr.bf16.mxu0 0
    %2086 = vmatpush1.bf16.msra.mxu0 0
    %2087 = vmatprep.subr.bf16.mxu0 0
    %2088 = vmatpush1.bf16.msra.mxu0 0
    %2089 = vmatprep.subr.bf16.mxu0 0
    %2090 = vmatpush1.bf16.msra.mxu0 0
    %2091 = vmatprep.subr.bf16.mxu0 0
    %2092 = vmatpush1.bf16.msra.mxu0 0
    %2093 = vmatprep.subr.bf16.mxu0 0
    %2094 = vmatpush1.bf16.msra.mxu0 0
    %2095 = vmatprep.subr.bf16.mxu0 0
    %2096 = vmatpush1.bf16.msra.mxu0 %v2079
    %2097 = vmatprep.subr.bf16.mxu0 0
    %2098 = vmatpush2.bf16.msra.mxu0 0
    %2099 = vmatprep.subr.bf16.mxu0 0
    %2100 = vmatpush2.bf16.msra.mxu0 0
    %2101 = vmatprep.subr.bf16.mxu0 0
    %2102 = vmatpush2.bf16.msra.mxu0 0
    %2103 = vmatprep.subr.bf16.mxu0 0
    %2104 = vmatpush2.bf16.msra.mxu0 0
    %2105 = vmatprep.subr.bf16.mxu0 0
    %2106 = vmatpush2.bf16.msra.mxu0 0
    %2107 = vmatprep.subr.bf16.mxu0 0
    %2108 = vmatpush2.bf16.msra.mxu0 0
    %2109 = vmatprep.subr.bf16.mxu0 0
    %2110 = vmatpush2.bf16.msra.mxu0 0
    %2111 = vmatprep.subr.bf16.mxu0 0
    %2112 = vmatpush2.bf16.msra.mxu0 0
    %2113 = vmatprep.mubr.bf16.mxu0 0
    %2114 = vmatmul.mubr.bf16.gmra.mxu0 %v2076
    %v2115 = vpop.f32.mrf.mxu0
    %v2116 = vadd.f32 0.0, %v2115
    %v2117 = vpop.f32.mrf.mxu0
    %v2118 = vpop.f32.mrf.mxu0
    %v2119 = vpop.f32.mrf.mxu0
    %2120 = vdwg.mxu0
    %v2121 = vrcp.pop %v2023
    %v2122 = vrcp.pop %v2024
    %v2123 = vmul.f32 %v2068, %v2121
    %v2124 = vmul.f32 %v2116, %v2122
    %v2125 = vadd.f32 %v1909, %v2123
    %v2126 = vadd.f32 %v1910, %v2124
    %2127 = vrot.lane.b32.xlu0 %v1469, 104
    %v2128 = vpop.permute.xlu0 %2127
    %2129 = vrot.lane.b32.xlu0 %v1471, 104
    %v2130 = vpop.permute.xlu0 %2129
    %v2132 = vsel %vm352, %v2128, 0
    %v2135 = vsel %vm352, %v2130, 0
    %2137 = vmatprep.subr.bf16.mxu0 0
    %2138 = vmatpush1.bf16.xpose.msra.mxu0 0
    %2139 = vmatprep.subr.bf16.mxu0 0
    %2140 = vmatpush1.bf16.xpose.msra.mxu0 0
    %2141 = vmatprep.subr.bf16.mxu0 0
    %2142 = vmatpush1.bf16.xpose.msra.mxu0 0
    %2143 = vmatprep.subr.bf16.mxu0 0
    %2144 = vmatpush1.bf16.xpose.msra.mxu0 0
    %2145 = vmatprep.subr.bf16.mxu0 0
    %2146 = vmatpush1.bf16.xpose.msra.mxu0 0
    %2147 = vmatprep.subr.bf16.mxu0 0
    %2148 = vmatpush1.bf16.xpose.msra.mxu0 0
    %2149 = vmatprep.subr.bf16.mxu0 0
    %2150 = vmatpush1.bf16.xpose.msra.mxu0 0
    %2151 = vmatprep.subr.bf16.mxu0 0
    %2152 = vmatpush1.bf16.xpose.msra.mxu0 %v2135
    %2153 = vmatprep.subr.bf16.mxu0 0
    %2154 = vmatpush2.bf16.xpose.msra.mxu0 0
    %2155 = vmatprep.subr.bf16.mxu0 0
    %2156 = vmatpush2.bf16.xpose.msra.mxu0 0
    %2157 = vmatprep.subr.bf16.mxu0 0
    %2158 = vmatpush2.bf16.xpose.msra.mxu0 0
    %2159 = vmatprep.subr.bf16.mxu0 0
    %2160 = vmatpush2.bf16.xpose.msra.mxu0 0
    %2161 = vmatprep.subr.bf16.mxu0 0
    %2162 = vmatpush2.bf16.xpose.msra.mxu0 0
    %2163 = vmatprep.subr.bf16.mxu0 0
    %2164 = vmatpush2.bf16.xpose.msra.mxu0 0
    %2165 = vmatprep.subr.bf16.mxu0 0
    %2166 = vmatpush2.bf16.xpose.msra.mxu0 0
    %2167 = vmatprep.subr.bf16.mxu0 0
    %2168 = vmatpush2.bf16.xpose.msra.mxu0 0
    %2169 = vmatprep.mubr.bf16.mxu0 0
    %2170 = vmatmul.mubr.bf16.gmra.mxu0 %v2132
    %v2171 = vpop.f32.mrf.mxu0
    %v2172 = vadd.f32 0.0, %v2171
    %v2173 = vpop.f32.mrf.mxu0
    %v2174 = vpop.f32.mrf.mxu0
    %v2175 = vpop.f32.mrf.mxu0
    %2176 = vdwg.mxu0
    %2177 = vrot.lane.b32.xlu0 %v1470, 104
    %v2178 = vpop.permute.xlu0 %2177
    %2179 = vrot.lane.b32.xlu0 %v1472, 104
    %v2180 = vpop.permute.xlu0 %2179
    %v2182 = vsel %vm352, %v2178, 0
    %v2185 = vsel %vm352, %v2180, 0
    %2187 = vmatprep.subr.bf16.mxu0 0
    %2188 = vmatpush1.bf16.xpose.msra.mxu0 0
    %2189 = vmatprep.subr.bf16.mxu0 0
    %2190 = vmatpush1.bf16.xpose.msra.mxu0 0
    %2191 = vmatprep.subr.bf16.mxu0 0
    %2192 = vmatpush1.bf16.xpose.msra.mxu0 0
    %2193 = vmatprep.subr.bf16.mxu0 0
    %2194 = vmatpush1.bf16.xpose.msra.mxu0 0
    %2195 = vmatprep.subr.bf16.mxu0 0
    %2196 = vmatpush1.bf16.xpose.msra.mxu0 0
    %2197 = vmatprep.subr.bf16.mxu0 0
    %2198 = vmatpush1.bf16.xpose.msra.mxu0 0
    %2199 = vmatprep.subr.bf16.mxu0 0
    %2200 = vmatpush1.bf16.xpose.msra.mxu0 0
    %2201 = vmatprep.subr.bf16.mxu0 0
    %2202 = vmatpush1.bf16.xpose.msra.mxu0 %v2185
    %2203 = vmatprep.subr.bf16.mxu0 0
    %2204 = vmatpush2.bf16.xpose.msra.mxu0 0
    %2205 = vmatprep.subr.bf16.mxu0 0
    %2206 = vmatpush2.bf16.xpose.msra.mxu0 0
    %2207 = vmatprep.subr.bf16.mxu0 0
    %2208 = vmatpush2.bf16.xpose.msra.mxu0 0
    %2209 = vmatprep.subr.bf16.mxu0 0
    %2210 = vmatpush2.bf16.xpose.msra.mxu0 0
    %2211 = vmatprep.subr.bf16.mxu0 0
    %2212 = vmatpush2.bf16.xpose.msra.mxu0 0
    %2213 = vmatprep.subr.bf16.mxu0 0
    %2214 = vmatpush2.bf16.xpose.msra.mxu0 0
    %2215 = vmatprep.subr.bf16.mxu0 0
    %2216 = vmatpush2.bf16.xpose.msra.mxu0 0
    %2217 = vmatprep.subr.bf16.mxu0 0
    %2218 = vmatpush2.bf16.xpose.msra.mxu0 0
    %2219 = vmatprep.mubr.bf16.mxu0 0
    %2220 = vmatmul.mubr.bf16.gmra.mxu0 %v2182
    %v2221 = vpop.f32.mrf.mxu0
    %v2222 = vadd.f32 0.0, %v2221
    %v2223 = vpop.f32.mrf.mxu0
    %v2224 = vpop.f32.mrf.mxu0
    %v2225 = vpop.f32.mrf.mxu0
    %2226 = vdwg.mxu0
    %v2227 = vmul.f32 %v2172, %v1570
    %v2228 = vmul.f32 %v2222, %v1574
    %v2229 = vpack.c.bf16 %v2227, %v2227
    %v2230 = vpack.c.bf16 %v2228, %v2228
    %v2231 = vunpack.c.l.bf16 %v2229
    %v2232 = vunpack.c.l.bf16 %v2230
    %v2233 = vsel %vm352, %v2231, 0.0
    %2234 = vadd.xlane.f32.xlu0 %v2233
    %v2235 = vpop.xlane.xlu0 %2234
    %v2236 = vsel %vm352, %v2232, 0.0
    %2237 = vadd.xlane.f32.xlu0 %v2236
    %v2238 = vpop.xlane.xlu0 %2237
    %v2239 = vadd.f32 %v2235, 1e-06
    %v2240 = vadd.f32 %v2238, 1e-06
    %2241 = vrot.lane.b32.xlu0 %v1467, 32
    %v2242 = vpop.permute.xlu0 %2241
    %v2244 = vsel %vm352, %v2229, 0
    %v2247 = vsel %vm465, %v2242, 0
    %2249 = vmatprep.subr.bf16.mxu0 0
    %2250 = vmatpush1.bf16.msra.mxu0 0
    %2251 = vmatprep.subr.bf16.mxu0 0
    %2252 = vmatpush1.bf16.msra.mxu0 0
    %2253 = vmatprep.subr.bf16.mxu0 0
    %2254 = vmatpush1.bf16.msra.mxu0 0
    %2255 = vmatprep.subr.bf16.mxu0 0
    %2256 = vmatpush1.bf16.msra.mxu0 0
    %2257 = vmatprep.subr.bf16.mxu0 0
    %2258 = vmatpush1.bf16.msra.mxu0 0
    %2259 = vmatprep.subr.bf16.mxu0 0
    %2260 = vmatpush1.bf16.msra.mxu0 0
    %2261 = vmatprep.subr.bf16.mxu0 0
    %2262 = vmatpush1.bf16.msra.mxu0 0
    %2263 = vmatprep.subr.bf16.mxu0 0
    %2264 = vmatpush1.bf16.msra.mxu0 %v2247
    %2265 = vmatprep.subr.bf16.mxu0 0
    %2266 = vmatpush2.bf16.msra.mxu0 0
    %2267 = vmatprep.subr.bf16.mxu0 0
    %2268 = vmatpush2.bf16.msra.mxu0 0
    %2269 = vmatprep.subr.bf16.mxu0 0
    %2270 = vmatpush2.bf16.msra.mxu0 0
    %2271 = vmatprep.subr.bf16.mxu0 0
    %2272 = vmatpush2.bf16.msra.mxu0 0
    %2273 = vmatprep.subr.bf16.mxu0 0
    %2274 = vmatpush2.bf16.msra.mxu0 0
    %2275 = vmatprep.subr.bf16.mxu0 0
    %2276 = vmatpush2.bf16.msra.mxu0 0
    %2277 = vmatprep.subr.bf16.mxu0 0
    %2278 = vmatpush2.bf16.msra.mxu0 0
    %2279 = vmatprep.subr.bf16.mxu0 0
    %2280 = vmatpush2.bf16.msra.mxu0 0
    %2281 = vmatprep.mubr.bf16.mxu0 0
    %2282 = vmatmul.mubr.bf16.gmra.mxu0 %v2244
    %v2283 = vpop.f32.mrf.mxu0
    %v2284 = vadd.f32 0.0, %v2283
    %v2285 = vpop.f32.mrf.mxu0
    %v2286 = vpop.f32.mrf.mxu0
    %v2287 = vpop.f32.mrf.mxu0
    %2288 = vdwg.mxu0
    %2289 = vrot.lane.b32.xlu0 %v1468, 32
    %v2290 = vpop.permute.xlu0 %2289
    %v2292 = vsel %vm352, %v2230, 0
    %v2295 = vsel %vm465, %v2290, 0
    %2297 = vmatprep.subr.bf16.mxu0 0
    %2298 = vmatpush1.bf16.msra.mxu0 0
    %2299 = vmatprep.subr.bf16.mxu0 0
    %2300 = vmatpush1.bf16.msra.mxu0 0
    %2301 = vmatprep.subr.bf16.mxu0 0
    %2302 = vmatpush1.bf16.msra.mxu0 0
    %2303 = vmatprep.subr.bf16.mxu0 0
    %2304 = vmatpush1.bf16.msra.mxu0 0
    %2305 = vmatprep.subr.bf16.mxu0 0
    %2306 = vmatpush1.bf16.msra.mxu0 0
    %2307 = vmatprep.subr.bf16.mxu0 0
    %2308 = vmatpush1.bf16.msra.mxu0 0
    %2309 = vmatprep.subr.bf16.mxu0 0
    %2310 = vmatpush1.bf16.msra.mxu0 0
    %2311 = vmatprep.subr.bf16.mxu0 0
    %2312 = vmatpush1.bf16.msra.mxu0 %v2295
    %2313 = vmatprep.subr.bf16.mxu0 0
    %2314 = vmatpush2.bf16.msra.mxu0 0
    %2315 = vmatprep.subr.bf16.mxu0 0
    %2316 = vmatpush2.bf16.msra.mxu0 0
    %2317 = vmatprep.subr.bf16.mxu0 0
    %2318 = vmatpush2.bf16.msra.mxu0 0
    %2319 = vmatprep.subr.bf16.mxu0 0
    %2320 = vmatpush2.bf16.msra.mxu0 0
    %2321 = vmatprep.subr.bf16.mxu0 0
    %2322 = vmatpush2.bf16.msra.mxu0 0
    %2323 = vmatprep.subr.bf16.mxu0 0
    %2324 = vmatpush2.bf16.msra.mxu0 0
    %2325 = vmatprep.subr.bf16.mxu0 0
    %2326 = vmatpush2.bf16.msra.mxu0 0
    %2327 = vmatprep.subr.bf16.mxu0 0
    %2328 = vmatpush2.bf16.msra.mxu0 0
    %2329 = vmatprep.mubr.bf16.mxu0 0
    %2330 = vmatmul.mubr.bf16.gmra.mxu0 %v2292
    %v2331 = vpop.f32.mrf.mxu0
    %v2332 = vadd.f32 0.0, %v2331
    %v2333 = vpop.f32.mrf.mxu0
    %v2334 = vpop.f32.mrf.mxu0
    %v2335 = vpop.f32.mrf.mxu0
    %2336 = vdwg.mxu0
    %v2337 = vrcp.pop %v2239
    %v2338 = vrcp.pop %v2240
    %v2339 = vmul.f32 %v2284, %v2337
    %v2340 = vmul.f32 %v2332, %v2338
    %v2341 = vadd.f32 %v2125, %v2339
    %v2342 = vadd.f32 %v2126, %v2340
    %v2343 = vadd.f32 %v1220, %v2341
    %v2344 = vadd.f32 %v1221, %v2342
    %v2345 = vld [vmem:[%s12] sm:$0x1]
    %v2347 = vlaneseq
    %v2348 = vshrl.u32 %v2347, 7
    %v2349 = vsub.s32 0, %v2348
    %v2350 = vrot.slane %v2345, %v2349
    %v2352 = vadd.f32 %v2343, %v2350
    %v2353 = vadd.f32 %v2344, %v2350
    %v2354 = vsel %vm168, %v2352, 0.0
    %2355 = vadd.xlane.f32.xlu0 %v2354
    %v2356 = vpop.xlane.xlu0 %2355
    %v2357 = vsel %vm168, %v2353, 0.0
    %2358 = vadd.xlane.f32.xlu0 %v2357
    %v2359 = vpop.xlane.xlu0 %2358
    %v2360 = vmul.f32 %v2356, %v175
    %v2361 = vmul.f32 %v2359, %v175
    %v2362 = vsub.f32 %v2352, %v2360
    %v2363 = vsub.f32 %v2353, %v2361
    %v2364 = vmul.f32 %v2362, %v2362
    %v2365 = vmul.f32 %v2363, %v2363
    %v2366 = vsel %vm168, %v2364, 0.0
    %2367 = vadd.xlane.f32.xlu0 %v2366
    %v2368 = vpop.xlane.xlu0 %2367
    %v2369 = vsel %vm168, %v2365, 0.0
    %2370 = vadd.xlane.f32.xlu0 %v2369
    %v2371 = vpop.xlane.xlu0 %2370
    %v2372 = vmul.f32 %v2368, %v175
    %v2373 = vmul.f32 %v2371, %v175
    %v2374 = vadd.f32 %v2372, 1e-05
    %v2375 = vadd.f32 %v2373, 1e-05
    %v2376 = vrsqrt.pop %v2374
    %v2377 = vrsqrt.pop %v2375
    %v2378 = vmul.f32 %v2362, %v2376
    %v2379 = vmul.f32 %v2363, %v2377
    %v2380 = vpack.c.bf16 %v2379, %v2378
    %v2381 = vld [vmem:[#allocation14] sm:$0xf]
    %v2382 = vld [vmem:[#allocation14 + $0x4] sm:$0xf]
    %v2383 = vld [vmem:[#allocation14 + $0x8] sm:$0xf]
    %v2384 = vld [vmem:[#allocation14 + $0xc] sm:$0xf]
    %v2385 = vld [vmem:[%s14] sm:$0x1]
    %v2387 = vlaneseq
    %v2388 = vshrl.u32 %v2387, 7
    %v2389 = vsub.s32 0, %v2388
    %v2390 = vrot.slane %v2385, %v2389
    %v2396 = vunpack.c.l.b16 %v2381
    %v2397 = vunpack.c.l.b16 %v2382
    %v2398 = vunpack.c.l.b16 %v2383
    %v2399 = vunpack.c.l.b16 %v2384
    %v2400 = vpack.c.b16 %v2397, %v2396
    %v2401 = vpack.c.b16 %v2399, %v2398
    %v2405 = vsel %vm168, %v2380, 0
    %2407 = vmatprep.subr.bf16.mxu0 0
    %2408 = vmatpush1.bf16.msra.mxu0 0
    %2409 = vmatprep.subr.bf16.mxu0 0
    %2410 = vmatpush1.bf16.msra.mxu0 0
    %2411 = vmatprep.subr.bf16.mxu0 0
    %2412 = vmatpush1.bf16.msra.mxu0 0
    %2413 = vmatprep.subr.bf16.mxu0 0
    %2414 = vmatpush1.bf16.msra.mxu0 0
    %2415 = vmatprep.subr.bf16.mxu0 0
    %2416 = vmatpush1.bf16.msra.mxu0 0
    %2417 = vmatprep.subr.bf16.mxu0 0
    %2418 = vmatpush1.bf16.msra.mxu0 0
    %2419 = vmatprep.subr.bf16.mxu0 0
    %2420 = vmatpush1.bf16.msra.mxu0 %v2401
    %2421 = vmatprep.subr.bf16.mxu0 0
    %2422 = vmatpush1.bf16.msra.mxu0 %v2400
    %2423 = vmatprep.subr.bf16.mxu0 0
    %2424 = vmatpush2.bf16.msra.mxu0 0
    %2425 = vmatprep.subr.bf16.mxu0 0
    %2426 = vmatpush2.bf16.msra.mxu0 0
    %2427 = vmatprep.subr.bf16.mxu0 0
    %2428 = vmatpush2.bf16.msra.mxu0 0
    %2429 = vmatprep.subr.bf16.mxu0 0
    %2430 = vmatpush2.bf16.msra.mxu0 0
    %2431 = vmatprep.subr.bf16.mxu0 0
    %2432 = vmatpush2.bf16.msra.mxu0 0
    %2433 = vmatprep.subr.bf16.mxu0 0
    %2434 = vmatpush2.bf16.msra.mxu0 0
    %2435 = vmatprep.subr.bf16.mxu0 0
    %2436 = vmatpush2.bf16.msra.mxu0 0
    %2437 = vmatprep.subr.bf16.mxu0 0
    %2438 = vmatpush2.bf16.msra.mxu0 0
    %2439 = vmatprep.mubr.bf16.mxu0 0
    %2440 = vmatmul.mubr.bf16.gmra.mxu0 %v2405
    %v2441 = vpop.f32.mrf.mxu0
    %v2442 = vadd.f32 %v2390, %v2441
    %v2443 = vpop.f32.mrf.mxu0
    %v2444 = vpop.f32.mrf.mxu0
    %v2445 = vadd.f32 %v2390, %v2444
    %v2446 = vpop.f32.mrf.mxu0
    %2447 = vdwg.mxu0
    %v2448 = vmax.f32 %v2442, 0.0
    %v2449 = vmax.f32 %v2445, 0.0
    %v2450 = vpack.c.bf16 %v2449, %v2448
    %v2451 = vld [vmem:[%s15] sm:$0xf]
    %v2452 = vld [vmem:[%s15 + $0x4] sm:$0xf]
    %v2453 = vld [vmem:[%s15 + $0x8] sm:$0xf]
    %v2454 = vld [vmem:[%s15 + $0xc] sm:$0xf]
    %v2455 = vld [vmem:[%s15 + $0x10] sm:$0xf]
    %v2456 = vld [vmem:[%s15 + $0x14] sm:$0xf]
    %v2457 = vld [vmem:[%s15 + $0x18] sm:$0xf]
    %v2458 = vld [vmem:[%s15 + $0x1c] sm:$0xf]
    %v2467 = vunpack.c.l.b16 %v2451
    %v2468 = vunpack.c.l.b16 %v2452
    %v2469 = vunpack.c.l.b16 %v2453
    %v2470 = vunpack.c.l.b16 %v2454
    %v2471 = vunpack.c.l.b16 %v2455
    %v2472 = vunpack.c.l.b16 %v2456
    %v2473 = vunpack.c.l.b16 %v2457
    %v2474 = vunpack.c.l.b16 %v2458
    %v2475 = vpack.c.b16 %v2468, %v2467
    %v2476 = vpack.c.b16 %v2470, %v2469
    %v2477 = vpack.c.b16 %v2472, %v2471
    %v2478 = vpack.c.b16 %v2474, %v2473
    %vm2483 = vcmask 523264
    %v2485 = vsel %vm2483, %v2450, 0
    %2487 = vmatprep.subr.bf16.mxu0 0
    %2488 = vmatpush1.bf16.msra.mxu0 0
    %2489 = vmatprep.subr.bf16.mxu0 0
    %2490 = vmatpush1.bf16.msra.mxu0 0
    %2491 = vmatprep.subr.bf16.mxu0 0
    %2492 = vmatpush1.bf16.msra.mxu0 0
    %2493 = vmatprep.subr.bf16.mxu0 0
    %2494 = vmatpush1.bf16.msra.mxu0 0
    %2495 = vmatprep.subr.bf16.mxu0 0
    %2496 = vmatpush1.bf16.msra.mxu0 %v2478
    %2497 = vmatprep.subr.bf16.mxu0 0
    %2498 = vmatpush1.bf16.msra.mxu0 %v2477
    %2499 = vmatprep.subr.bf16.mxu0 0
    %2500 = vmatpush1.bf16.msra.mxu0 %v2476
    %2501 = vmatprep.subr.bf16.mxu0 0
    %2502 = vmatpush1.bf16.msra.mxu0 %v2475
    %2503 = vmatprep.subr.bf16.mxu0 0
    %2504 = vmatpush2.bf16.msra.mxu0 0
    %2505 = vmatprep.subr.bf16.mxu0 0
    %2506 = vmatpush2.bf16.msra.mxu0 0
    %2507 = vmatprep.subr.bf16.mxu0 0
    %2508 = vmatpush2.bf16.msra.mxu0 0
    %2509 = vmatprep.subr.bf16.mxu0 0
    %2510 = vmatpush2.bf16.msra.mxu0 0
    %2511 = vmatprep.subr.bf16.mxu0 0
    %2512 = vmatpush2.bf16.msra.mxu0 0
    %2513 = vmatprep.subr.bf16.mxu0 0
    %2514 = vmatpush2.bf16.msra.mxu0 0
    %2515 = vmatprep.subr.bf16.mxu0 0
    %2516 = vmatpush2.bf16.msra.mxu0 0
    %2517 = vmatprep.subr.bf16.mxu0 0
    %2518 = vmatpush2.bf16.msra.mxu0 0
    %2519 = vmatprep.mubr.bf16.mxu0 0
    %2520 = vmatmul.mubr.bf16.gmra.mxu0 %v2485
    %v2521 = vpop.f32.mrf.mxu0
    %v2522 = vadd.f32 0.0, %v2521
    %v2523 = vpop.f32.mrf.mxu0
    %v2524 = vpop.f32.mrf.mxu0
    %v2525 = vadd.f32 0.0, %v2524
    %v2526 = vpop.f32.mrf.mxu0
    %2527 = vdwg.mxu0
    %v2528 = vadd.f32 %v2352, %v2522
    %v2529 = vadd.f32 %v2353, %v2525
    %v2530 = vld [vmem:[%s16] sm:$0x1]
    %v2532 = vlaneseq
    %v2533 = vshrl.u32 %v2532, 7
    %v2534 = vsub.s32 0, %v2533
    %v2535 = vrot.slane %v2530, %v2534
    %v2537 = vadd.f32 %v2528, %v2535
    %v2538 = vadd.f32 %v2529, %v2535
    %2539 = vst.msk [vmem:[#allocation16] sm:$0xff] %vm168, %v2537
    %2540 = vst.msk [vmem:[#allocation16 + $0x8] sm:$0xff] %vm168, %v2538
    // Predicated region
    $region102: #{tpu_custom_call.1} parent=1 // pred_check
      _
    $region103: #{tpu_custom_call.1} parent=1 // pred_check_branch
      %2542 = sbr.rel (0) target = $region105
    $region104: #{tpu_custom_call.1} parent=1 // pred_region
      %s2544 = ssub.s32 256, 256
      %2545 = vsyncadd [#allocation4], %s2544
      %s2546 = sshll.u32 [#allocation16], 4
      %s2547 = int_to_ptr.vmem [resolvable:$true] %s2546
      %2552 = dma.vmem_to_hbm [thread:$0]  %s2547, 256, %s17, [#allocation4], 128, 128, 8
    $region105: #{tpu_custom_call.1} parent=1 // pred_fallthru
      _
    // Predicated region
    $region106: #{tpu_custom_call.1} parent=1 // pred_check
      _
    $region107: #{tpu_custom_call.1} parent=1 // pred_check_branch
      %2554 = sbr.rel (0) target = $region109
    $region108: #{tpu_custom_call.1} parent=1 // pred_region
      %2555 = dma.done [#allocation4], 256
    $region109: #{tpu_custom_call.1} parent=1 // pred_fallthru
      _
    %2556 = vsyncpa [#allocation3], 1
    %2557 = vsyncpa [#allocation6], 1
    %2558 = vsyncpa [#allocation9], 1
    %2559 = vsyncpa [#allocation12], 1
    %2560 = vsyncpa [#allocation15], 1
    %2561 = vsyncpa [#allocation4], 1

</llo_original>
